<compile_context>
chip_gen: v6e
topology: v6e:2x2x1
jax: 0.10.0
libtpu: 0.0.40
codegen_flags: <defaults>
</compile_context>

<pallas_src>
import jax
import jax.numpy as jnp
from jax.experimental import pallas as pl
from jax.experimental.pallas import tpu as pltpu


def _round_up(n, m):
    return ((n + m - 1) // m) * m


# ----------------------------------------------------------------------------
# Pallas kernel: one batch tile through all 6 fused layers.
# ----------------------------------------------------------------------------
def _msae_kernel(x_ref,
                 w1, w2, w3, w4, w5, w6,
                 s1, s2, s3, s4, s5, s6,
                 recon_ref, latent_ref):

    def layer(h_bf16, w_ref, s_ref):
        # MXU matmul in bf16 with f32 accumulation.
        z = jnp.dot(h_bf16, w_ref[...], preferred_element_type=jnp.float32)
        # sigmoid(z) == 0.5*tanh(0.5*z) + 0.5 : a single EUP op (no exp+divide).
        # Kept in f32 so the identical kernel also lowers on v5e (no bf16 EUP).
        return 0.5 * jnp.tanh(0.5 * (z + s_ref[...])) + 0.5

    h = x_ref[...].astype(jnp.bfloat16)
    # Encoder
    h = layer(h, w1, s1).astype(jnp.bfloat16)
    h = layer(h, w2, s2).astype(jnp.bfloat16)
    lat = layer(h, w3, s3)                           # f32 latent [tb, L]
    latent_ref[...] = lat.astype(latent_ref.dtype)
    # Decoder
    h = layer(lat.astype(jnp.bfloat16), w4, s4).astype(jnp.bfloat16)
    h = layer(h, w5, s5).astype(jnp.bfloat16)
    recon_ref[...] = layer(h, w6, s6).astype(recon_ref.dtype)


# ----------------------------------------------------------------------------
# Parameter packing: fold BN scale into W (column-wise), cast to bf16 for the
# MXU, keep per-feature shifts as (1, d_out) f32 rows.
# ----------------------------------------------------------------------------
def pack_msae_params(params):
    weights, shifts = [], []
    for p in params:
        weights.append((p["w"] * p["scale"]).astype(jnp.bfloat16))
        shifts.append(p["shift"].astype(jnp.float32))
    return weights, shifts


# ----------------------------------------------------------------------------
# Wrapper: batch-tiled grid, exact-size (unpadded) inputs/outputs.
# ----------------------------------------------------------------------------
def msae_forward(x, params, *, batch_tile=512, vmem_limit_bytes=None):
    """x: [B, D] f32.  params: list of 6 layer dicts (see build_msae_params)."""
    B, D = x.shape
    L = params[2]["w"].shape[1]
    weights, shifts = pack_msae_params(params)

    # Batch tile: multiple of 8, capped at the batch; prefer >= 2 tiles so the
    # 'parallel' grid axis shards across both TensorCores on v7x.
    B8 = _round_up(B, 8)
    tb = max(8, min(_round_up(batch_tile, 8), B8))
    if B8 > 8:
        tb = min(tb, _round_up(pl.cdiv(B8, 2), 8))
    grid = (pl.cdiv(B, tb),)

    itemsize = x.dtype.itemsize
    w_bytes = sum(int(w.size) * 2 for w in weights)
    s_bytes = sum(int(s.size) * 4 for s in shifts)

    if vmem_limit_bytes is None:
        # Derive from the actual footprint: double-buffered activation tiles,
        # (effectively single-buffered) weights/shifts, plus headroom for the
        # live f32 intermediates inside the kernel body.
        io_tile = tb * (D * itemsize + D * 4 + L * 4)
        act_headroom = 8 * tb * 512 * 4
        est = 2 * io_tile + 2 * (w_bytes + s_bytes) + act_headroom + (4 << 20)
        vmem_limit_bytes = int(min(max(est, 16 << 20), 48 << 20))

    flops = 2 * B * sum(int(w.shape[0]) * int(w.shape[1]) for w in weights)
    transcendentals = B * sum(int(w.shape[1]) for w in weights)
    bytes_accessed = int(B * D * itemsize + w_bytes + s_bytes
                         + B * D * 4 + B * L * 4)

    in_specs = [pl.BlockSpec((tb, D), lambda i: (i, 0))]
    in_specs += [pl.BlockSpec(w.shape, lambda i: (0, 0)) for w in weights]
    in_specs += [pl.BlockSpec(s.shape, lambda i: (0, 0)) for s in shifts]
    out_specs = (pl.BlockSpec((tb, D), lambda i: (i, 0)),
                 pl.BlockSpec((tb, L), lambda i: (i, 0)))
    out_shape = (jax.ShapeDtypeStruct((B, D), jnp.float32),   # reconstructed
                 jax.ShapeDtypeStruct((B, L), jnp.float32))   # latent

    recon, latent = pl.pallas_call(
        _msae_kernel,
        grid=grid,
        in_specs=in_specs,
        out_specs=out_specs,
        out_shape=out_shape,
        compiler_params=pltpu.CompilerParams(
            dimension_semantics=("parallel",),
            vmem_limit_bytes=vmem_limit_bytes),
        cost_estimate=pl.CostEstimate(
            flops=flops,
            transcendentals=transcendentals,
            bytes_accessed=bytes_accessed),
    )(x, *weights, *shifts)
    return recon, latent


# ----------------------------------------------------------------------------
# Deterministic parameter construction (mirrors the PyTorch __init__, eval mode).
# ----------------------------------------------------------------------------
def _kaiming_normal_fan_out(key, out_features, in_features):
    # nn.init.kaiming_normal_(w, mode='fan_out', nonlinearity='sigmoid'):
    # gain = 1, std = 1 / sqrt(fan_out) with fan_out = out_features.
    std = 1.0 / jnp.sqrt(jnp.float32(out_features))
    w_pt = std * jax.random.normal(key, (out_features, in_features), jnp.float32)
    return w_pt.T  # store as [d_in, d_out]


def build_msae_params(key, input_dim, hidden_dim, latent_dim):
    dims = [
        (input_dim, hidden_dim, True),        # enc L1 + BN
        (hidden_dim, hidden_dim // 2, True),  # enc L2 + BN
        (hidden_dim // 2, latent_dim, True),  # enc L3 + BN
        (latent_dim, hidden_dim // 2, True),  # dec L1 + BN
        (hidden_dim // 2, hidden_dim, True),  # dec L2 + BN
        (hidden_dim, input_dim, False),       # dec L3 (no BN)
    ]
    eps = 1e-5
    params = []
    keys = jax.random.split(key, len(dims))
    for k, (d_in, d_out, has_bn) in zip(keys, dims):
        w = _kaiming_normal_fan_out(k, d_out, d_in)          # [d_in, d_out]
        b = jnp.zeros((d_out,), jnp.float32)                 # bias init = 0
        if has_bn:
            # BatchNorm1d defaults: gamma=1, beta=0, running_mean=0, running_var=1.
            gamma = jnp.ones((d_out,), jnp.float32)
            beta = jnp.zeros((d_out,), jnp.float32)
            running_mean = jnp.zeros((d_out,), jnp.float32)
            running_var = jnp.ones((d_out,), jnp.float32)
            s = gamma / jnp.sqrt(running_var + eps)
            scale = s
            shift = b * s + (beta - running_mean * s)
        else:
            scale = jnp.ones((d_out,), jnp.float32)
            shift = b
        params.append({
            "w": w,
            "scale": scale.reshape(1, d_out),
            "shift": shift.reshape(1, d_out),
        })
    return params


def msae_reference(x, params):
    """Pure-JAX f32 reference of the same eval-mode forward pass."""
    h = x.astype(jnp.float32)
    acts = []
    for p in params:
        h = jax.nn.sigmoid(h @ p["w"] * p["scale"] + p["shift"])
        acts.append(h)
    return acts[-1], acts[2]  # reconstructed, latent


if __name__ == "__main__":
    # Module-default dims; B=512 gives an even 2-tile grid (tb=256) -> both
    # v7x TensorCores get work.
    INPUT_DIM, HIDDEN_DIM, LATENT_DIM = 500, 256, 64
    B = 512

    root = jax.random.PRNGKey(0)
    k_x, k_p = jax.random.split(root)
    x = jax.random.normal(k_x, (B, INPUT_DIM), jnp.float32)
    params = build_msae_params(k_p, INPUT_DIM, HIDDEN_DIM, LATENT_DIM)

    recon, latent = msae_forward(x, params, batch_tile=512)
    recon, latent = jax.block_until_ready((recon, latent))

    # Sanity check against the pure-JAX f32 reference (bf16 MXU path -> relaxed tol).
    recon_ref, latent_ref = msae_reference(x, params)
    assert recon.shape == (B, INPUT_DIM) and latent.shape == (B, LATENT_DIM)
    assert jnp.allclose(recon, recon_ref, atol=2e-2, rtol=2e-2), \
        float(jnp.max(jnp.abs(recon - recon_ref)))
    assert jnp.allclose(latent, latent_ref, atol=2e-2, rtol=2e-2), \
        float(jnp.max(jnp.abs(latent - latent_ref)))

    print("KERNEL_OK")
</pallas_src>

<mosaic_0001>
module attributes {stable_mosaic.version = 11 : i64} {
  func.func @_msae_kernel(%arg0: i32, %arg1: memref<256x500xf32, #tpu.memory_space<vmem>>, %arg2: memref<500x256xbf16, #tpu.memory_space<vmem>>, %arg3: memref<256x128xbf16, #tpu.memory_space<vmem>>, %arg4: memref<128x64xbf16, #tpu.memory_space<vmem>>, %arg5: memref<64x128xbf16, #tpu.memory_space<vmem>>, %arg6: memref<128x256xbf16, #tpu.memory_space<vmem>>, %arg7: memref<256x500xbf16, #tpu.memory_space<vmem>>, %arg8: memref<1x256xf32, #tpu.memory_space<vmem>>, %arg9: memref<1x128xf32, #tpu.memory_space<vmem>>, %arg10: memref<1x64xf32, #tpu.memory_space<vmem>>, %arg11: memref<1x128xf32, #tpu.memory_space<vmem>>, %arg12: memref<1x256xf32, #tpu.memory_space<vmem>>, %arg13: memref<1x500xf32, #tpu.memory_space<vmem>>, %arg14: memref<256x500xf32, #tpu.memory_space<vmem>>, %arg15: memref<256x64xf32, #tpu.memory_space<vmem>>) attributes {dimension_semantics = [#tpu.dimension_semantics<parallel>], iteration_bounds = array<i64: 2>, scalar_prefetch = 0 : i64, scratch_operands = 0 : i64, tpu.core_type = #tpu.core_type<tc>, window_params = [{transform_indices = @transform_0, window_bounds = array<i64: 256, 500>}, {pipeline_mode = #tpu.pipeline_mode<synchronous>, transform_indices = @transform_1, window_bounds = array<i64: 500, 256>}, {pipeline_mode = #tpu.pipeline_mode<synchronous>, transform_indices = @transform_2, window_bounds = array<i64: 256, 128>}, {pipeline_mode = #tpu.pipeline_mode<synchronous>, transform_indices = @transform_3, window_bounds = array<i64: 128, 64>}, {pipeline_mode = #tpu.pipeline_mode<synchronous>, transform_indices = @transform_4, window_bounds = array<i64: 64, 128>}, {pipeline_mode = #tpu.pipeline_mode<synchronous>, transform_indices = @transform_5, window_bounds = array<i64: 128, 256>}, {pipeline_mode = #tpu.pipeline_mode<synchronous>, transform_indices = @transform_6, window_bounds = array<i64: 256, 500>}, {pipeline_mode = #tpu.pipeline_mode<synchronous>, transform_indices = @transform_7, window_bounds = array<i64: 1, 256>}, {pipeline_mode = #tpu.pipeline_mode<synchronous>, transform_indices = @transform_8, window_bounds = array<i64: 1, 128>}, {pipeline_mode = #tpu.pipeline_mode<synchronous>, transform_indices = @transform_9, window_bounds = array<i64: 1, 64>}, {pipeline_mode = #tpu.pipeline_mode<synchronous>, transform_indices = @transform_10, window_bounds = array<i64: 1, 128>}, {pipeline_mode = #tpu.pipeline_mode<synchronous>, transform_indices = @transform_11, window_bounds = array<i64: 1, 256>}, {pipeline_mode = #tpu.pipeline_mode<synchronous>, transform_indices = @transform_12, window_bounds = array<i64: 1, 500>}, {transform_indices = @transform_13, window_bounds = array<i64: 256, 500>}, {transform_indices = @transform_14, window_bounds = array<i64: 256, 64>}]} {
    %c0 = arith.constant 0 : index
    %c0_0 = arith.constant 0 : index
    %0 = vector.load %arg1[%c0, %c0_0] : memref<256x500xf32, #tpu.memory_space<vmem>>, vector<256x500xf32>
    %1 = arith.truncf %0 : vector<256x500xf32> to vector<256x500xbf16>
    %c0_1 = arith.constant 0 : index
    %c0_2 = arith.constant 0 : index
    %2 = vector.load %arg2[%c0_1, %c0_2] : memref<500x256xbf16, #tpu.memory_space<vmem>>, vector<500x256xbf16>
    %cst = arith.constant dense<0.000000e+00> : vector<256x256xf32>
    %3 = tpu.matmul %1, %2, %cst {dimension_numbers = #tpu.dot_dimension_numbers<[1], [0], [0], [1], [0, 0, 1, 1], [], []>} : vector<256x500xbf16>, vector<500x256xbf16>, vector<256x256xf32> -> vector<256x256xf32>
    %c0_3 = arith.constant 0 : index
    %c0_4 = arith.constant 0 : index
    %4 = vector.load %arg8[%c0_3, %c0_4] : memref<1x256xf32, #tpu.memory_space<vmem>>, vector<1x256xf32>
    %5 = vector.broadcast %4 : vector<1x256xf32> to vector<256x256xf32>
    %6 = arith.addf %3, %5 : vector<256x256xf32>
    %cst_5 = arith.constant 5.000000e-01 : f32
    %7 = vector.broadcast %cst_5 : f32 to vector<256x256xf32>
    %8 = arith.mulf %7, %6 : vector<256x256xf32>
    %9 = math.tanh %8 : vector<256x256xf32>
    %cst_6 = arith.constant 5.000000e-01 : f32
    %10 = vector.broadcast %cst_6 : f32 to vector<256x256xf32>
    %11 = arith.mulf %10, %9 : vector<256x256xf32>
    %cst_7 = arith.constant 5.000000e-01 : f32
    %12 = vector.broadcast %cst_7 : f32 to vector<256x256xf32>
    %13 = arith.addf %11, %12 : vector<256x256xf32>
    %14 = arith.truncf %13 : vector<256x256xf32> to vector<256x256xbf16>
    %c0_8 = arith.constant 0 : index
    %c0_9 = arith.constant 0 : index
    %15 = vector.load %arg3[%c0_8, %c0_9] : memref<256x128xbf16, #tpu.memory_space<vmem>>, vector<256x128xbf16>
    %cst_10 = arith.constant dense<0.000000e+00> : vector<256x128xf32>
    %16 = tpu.matmul %14, %15, %cst_10 {dimension_numbers = #tpu.dot_dimension_numbers<[1], [0], [0], [1], [0, 0, 1, 1], [], []>} : vector<256x256xbf16>, vector<256x128xbf16>, vector<256x128xf32> -> vector<256x128xf32>
    %c0_11 = arith.constant 0 : index
    %c0_12 = arith.constant 0 : index
    %17 = vector.load %arg9[%c0_11, %c0_12] : memref<1x128xf32, #tpu.memory_space<vmem>>, vector<1x128xf32>
    %18 = vector.broadcast %17 : vector<1x128xf32> to vector<256x128xf32>
    %19 = arith.addf %16, %18 : vector<256x128xf32>
    %cst_13 = arith.constant 5.000000e-01 : f32
    %20 = vector.broadcast %cst_13 : f32 to vector<256x128xf32>
    %21 = arith.mulf %20, %19 : vector<256x128xf32>
    %22 = math.tanh %21 : vector<256x128xf32>
    %cst_14 = arith.constant 5.000000e-01 : f32
    %23 = vector.broadcast %cst_14 : f32 to vector<256x128xf32>
    %24 = arith.mulf %23, %22 : vector<256x128xf32>
    %cst_15 = arith.constant 5.000000e-01 : f32
    %25 = vector.broadcast %cst_15 : f32 to vector<256x128xf32>
    %26 = arith.addf %24, %25 : vector<256x128xf32>
    %27 = arith.truncf %26 : vector<256x128xf32> to vector<256x128xbf16>
    %c0_16 = arith.constant 0 : index
    %c0_17 = arith.constant 0 : index
    %28 = vector.load %arg4[%c0_16, %c0_17] : memref<128x64xbf16, #tpu.memory_space<vmem>>, vector<128x64xbf16>
    %cst_18 = arith.constant dense<0.000000e+00> : vector<256x64xf32>
    %29 = tpu.matmul %27, %28, %cst_18 {dimension_numbers = #tpu.dot_dimension_numbers<[1], [0], [0], [1], [0, 0, 1, 1], [], []>} : vector<256x128xbf16>, vector<128x64xbf16>, vector<256x64xf32> -> vector<256x64xf32>
    %c0_19 = arith.constant 0 : index
    %c0_20 = arith.constant 0 : index
    %30 = vector.load %arg10[%c0_19, %c0_20] : memref<1x64xf32, #tpu.memory_space<vmem>>, vector<1x64xf32>
    %31 = vector.broadcast %30 : vector<1x64xf32> to vector<256x64xf32>
    %32 = arith.addf %29, %31 : vector<256x64xf32>
    %cst_21 = arith.constant 5.000000e-01 : f32
    %33 = vector.broadcast %cst_21 : f32 to vector<256x64xf32>
    %34 = arith.mulf %33, %32 : vector<256x64xf32>
    %35 = math.tanh %34 : vector<256x64xf32>
    %cst_22 = arith.constant 5.000000e-01 : f32
    %36 = vector.broadcast %cst_22 : f32 to vector<256x64xf32>
    %37 = arith.mulf %36, %35 : vector<256x64xf32>
    %cst_23 = arith.constant 5.000000e-01 : f32
    %38 = vector.broadcast %cst_23 : f32 to vector<256x64xf32>
    %39 = arith.addf %37, %38 : vector<256x64xf32>
    %c0_24 = arith.constant 0 : index
    %c0_25 = arith.constant 0 : index
    %40 = vector.load %arg15[%c0_24, %c0_25] : memref<256x64xf32, #tpu.memory_space<vmem>>, vector<256x64xf32>
    tpu.vector_store %arg15[%c0_24, %c0_25], %39 {strides = array<i32>} : memref<256x64xf32, #tpu.memory_space<vmem>>, vector<256x64xf32>,
    %41 = arith.truncf %39 : vector<256x64xf32> to vector<256x64xbf16>
    %c0_26 = arith.constant 0 : index
    %c0_27 = arith.constant 0 : index
    %42 = vector.load %arg5[%c0_26, %c0_27] : memref<64x128xbf16, #tpu.memory_space<vmem>>, vector<64x128xbf16>
    %cst_28 = arith.constant dense<0.000000e+00> : vector<256x128xf32>
    %43 = tpu.matmul %41, %42, %cst_28 {dimension_numbers = #tpu.dot_dimension_numbers<[1], [0], [0], [1], [0, 0, 1, 1], [], []>} : vector<256x64xbf16>, vector<64x128xbf16>, vector<256x128xf32> -> vector<256x128xf32>
    %c0_29 = arith.constant 0 : index
    %c0_30 = arith.constant 0 : index
    %44 = vector.load %arg11[%c0_29, %c0_30] : memref<1x128xf32, #tpu.memory_space<vmem>>, vector<1x128xf32>
    %45 = vector.broadcast %44 : vector<1x128xf32> to vector<256x128xf32>
    %46 = arith.addf %43, %45 : vector<256x128xf32>
    %cst_31 = arith.constant 5.000000e-01 : f32
    %47 = vector.broadcast %cst_31 : f32 to vector<256x128xf32>
    %48 = arith.mulf %47, %46 : vector<256x128xf32>
    %49 = math.tanh %48 : vector<256x128xf32>
    %cst_32 = arith.constant 5.000000e-01 : f32
    %50 = vector.broadcast %cst_32 : f32 to vector<256x128xf32>
    %51 = arith.mulf %50, %49 : vector<256x128xf32>
    %cst_33 = arith.constant 5.000000e-01 : f32
    %52 = vector.broadcast %cst_33 : f32 to vector<256x128xf32>
    %53 = arith.addf %51, %52 : vector<256x128xf32>
    %54 = arith.truncf %53 : vector<256x128xf32> to vector<256x128xbf16>
    %c0_34 = arith.constant 0 : index
    %c0_35 = arith.constant 0 : index
    %55 = vector.load %arg6[%c0_34, %c0_35] : memref<128x256xbf16, #tpu.memory_space<vmem>>, vector<128x256xbf16>
    %cst_36 = arith.constant dense<0.000000e+00> : vector<256x256xf32>
    %56 = tpu.matmul %54, %55, %cst_36 {dimension_numbers = #tpu.dot_dimension_numbers<[1], [0], [0], [1], [0, 0, 1, 1], [], []>} : vector<256x128xbf16>, vector<128x256xbf16>, vector<256x256xf32> -> vector<256x256xf32>
    %c0_37 = arith.constant 0 : index
    %c0_38 = arith.constant 0 : index
    %57 = vector.load %arg12[%c0_37, %c0_38] : memref<1x256xf32, #tpu.memory_space<vmem>>, vector<1x256xf32>
    %58 = vector.broadcast %57 : vector<1x256xf32> to vector<256x256xf32>
    %59 = arith.addf %56, %58 : vector<256x256xf32>
    %cst_39 = arith.constant 5.000000e-01 : f32
    %60 = vector.broadcast %cst_39 : f32 to vector<256x256xf32>
    %61 = arith.mulf %60, %59 : vector<256x256xf32>
    %62 = math.tanh %61 : vector<256x256xf32>
    %cst_40 = arith.constant 5.000000e-01 : f32
    %63 = vector.broadcast %cst_40 : f32 to vector<256x256xf32>
    %64 = arith.mulf %63, %62 : vector<256x256xf32>
    %cst_41 = arith.constant 5.000000e-01 : f32
    %65 = vector.broadcast %cst_41 : f32 to vector<256x256xf32>
    %66 = arith.addf %64, %65 : vector<256x256xf32>
    %67 = arith.truncf %66 : vector<256x256xf32> to vector<256x256xbf16>
    %c0_42 = arith.constant 0 : index
    %c0_43 = arith.constant 0 : index
    %68 = vector.load %arg7[%c0_42, %c0_43] : memref<256x500xbf16, #tpu.memory_space<vmem>>, vector<256x500xbf16>
    %cst_44 = arith.constant dense<0.000000e+00> : vector<256x500xf32>
    %69 = tpu.matmul %67, %68, %cst_44 {dimension_numbers = #tpu.dot_dimension_numbers<[1], [0], [0], [1], [0, 0, 1, 1], [], []>} : vector<256x256xbf16>, vector<256x500xbf16>, vector<256x500xf32> -> vector<256x500xf32>
    %c0_45 = arith.constant 0 : index
    %c0_46 = arith.constant 0 : index
    %70 = vector.load %arg13[%c0_45, %c0_46] : memref<1x500xf32, #tpu.memory_space<vmem>>, vector<1x500xf32>
    %71 = vector.broadcast %70 : vector<1x500xf32> to vector<256x500xf32>
    %72 = arith.addf %69, %71 : vector<256x500xf32>
    %cst_47 = arith.constant 5.000000e-01 : f32
    %73 = vector.broadcast %cst_47 : f32 to vector<256x500xf32>
    %74 = arith.mulf %73, %72 : vector<256x500xf32>
    %75 = math.tanh %74 : vector<256x500xf32>
    %cst_48 = arith.constant 5.000000e-01 : f32
    %76 = vector.broadcast %cst_48 : f32 to vector<256x500xf32>
    %77 = arith.mulf %76, %75 : vector<256x500xf32>
    %cst_49 = arith.constant 5.000000e-01 : f32
    %78 = vector.broadcast %cst_49 : f32 to vector<256x500xf32>
    %79 = arith.addf %77, %78 : vector<256x500xf32>
    %c0_50 = arith.constant 0 : index
    %c0_51 = arith.constant 0 : index
    %80 = vector.load %arg14[%c0_50, %c0_51] : memref<256x500xf32, #tpu.memory_space<vmem>>, vector<256x500xf32>
    tpu.vector_store %arg14[%c0_50, %c0_51], %79 {strides = array<i32>} : memref<256x500xf32, #tpu.memory_space<vmem>>, vector<256x500xf32>,
    return
  }
  func.func @transform_0(%arg0: i32) -> (i32, i32) {
    %c0_i32 = arith.constant 0 : i32
    %c0_i32_0 = arith.constant 0 : i32
    return %arg0, %c0_i32 : i32, i32
  }
  func.func @transform_1(%arg0: i32) -> (i32, i32) {
    %c0_i32 = arith.constant 0 : i32
    %c0_i32_0 = arith.constant 0 : i32
    %c0_i32_1 = arith.constant 0 : i32
    return %c0_i32, %c0_i32_0 : i32, i32
  }
  func.func @transform_2(%arg0: i32) -> (i32, i32) {
    %c0_i32 = arith.constant 0 : i32
    %c0_i32_0 = arith.constant 0 : i32
    %c0_i32_1 = arith.constant 0 : i32
    return %c0_i32, %c0_i32_0 : i32, i32
  }
  func.func @transform_3(%arg0: i32) -> (i32, i32) {
    %c0_i32 = arith.constant 0 : i32
    %c0_i32_0 = arith.constant 0 : i32
    %c0_i32_1 = arith.constant 0 : i32
    return %c0_i32, %c0_i32_0 : i32, i32
  }
  func.func @transform_4(%arg0: i32) -> (i32, i32) {
    %c0_i32 = arith.constant 0 : i32
    %c0_i32_0 = arith.constant 0 : i32
    %c0_i32_1 = arith.constant 0 : i32
    return %c0_i32, %c0_i32_0 : i32, i32
  }
  func.func @transform_5(%arg0: i32) -> (i32, i32) {
    %c0_i32 = arith.constant 0 : i32
    %c0_i32_0 = arith.constant 0 : i32
    %c0_i32_1 = arith.constant 0 : i32
    return %c0_i32, %c0_i32_0 : i32, i32
  }
  func.func @transform_6(%arg0: i32) -> (i32, i32) {
    %c0_i32 = arith.constant 0 : i32
    %c0_i32_0 = arith.constant 0 : i32
    %c0_i32_1 = arith.constant 0 : i32
    return %c0_i32, %c0_i32_0 : i32, i32
  }
  func.func @transform_7(%arg0: i32) -> (i32, i32) {
    %c0_i32 = arith.constant 0 : i32
    %c0_i32_0 = arith.constant 0 : i32
    %c0_i32_1 = arith.constant 0 : i32
    return %c0_i32, %c0_i32_0 : i32, i32
  }
  func.func @transform_8(%arg0: i32) -> (i32, i32) {
    %c0_i32 = arith.constant 0 : i32
    %c0_i32_0 = arith.constant 0 : i32
    %c0_i32_1 = arith.constant 0 : i32
    return %c0_i32, %c0_i32_0 : i32, i32
  }
  func.func @transform_9(%arg0: i32) -> (i32, i32) {
    %c0_i32 = arith.constant 0 : i32
    %c0_i32_0 = arith.constant 0 : i32
    %c0_i32_1 = arith.constant 0 : i32
    return %c0_i32, %c0_i32_0 : i32, i32
  }
  func.func @transform_10(%arg0: i32) -> (i32, i32) {
    %c0_i32 = arith.constant 0 : i32
    %c0_i32_0 = arith.constant 0 : i32
    %c0_i32_1 = arith.constant 0 : i32
    return %c0_i32, %c0_i32_0 : i32, i32
  }
  func.func @transform_11(%arg0: i32) -> (i32, i32) {
    %c0_i32 = arith.constant 0 : i32
    %c0_i32_0 = arith.constant 0 : i32
    %c0_i32_1 = arith.constant 0 : i32
    return %c0_i32, %c0_i32_0 : i32, i32
  }
  func.func @transform_12(%arg0: i32) -> (i32, i32) {
    %c0_i32 = arith.constant 0 : i32
    %c0_i32_0 = arith.constant 0 : i32
    %c0_i32_1 = arith.constant 0 : i32
    return %c0_i32, %c0_i32_0 : i32, i32
  }
  func.func @transform_13(%arg0: i32) -> (i32, i32) {
    %c0_i32 = arith.constant 0 : i32
    %c0_i32_0 = arith.constant 0 : i32
    return %arg0, %c0_i32 : i32, i32
  }
  func.func @transform_14(%arg0: i32) -> (i32, i32) {
    %c0_i32 = arith.constant 0 : i32
    %c0_i32_0 = arith.constant 0 : i32
    return %arg0, %c0_i32 : i32, i32
  }
}

</mosaic_0001>

<llo_original>
// kernel: tpu_custom_call.1
$region0: #{tpu_custom_call.1}
  #allocation0 [shape = 'u32[]', space=smem, size = 0x4, offset = 0x4, fixed_abs, tag = 'smem constant byte address 0x4 - core index']
  #allocation1 [shape = 'u32[144,128]{1,0:T(1,128)}', space=vmem, size = 0x12000, scoped, tag = 'internal scratch']
  %s0 = inlined_call_operand.vmem [shape: f32[512,500], index: 0, kind: input, shape index: {}]
  %s1 = inlined_call_operand.vmem [shape: bf16[500,256], index: 1, kind: input, shape index: {}]
  %s2 = inlined_call_operand.vmem [shape: bf16[256,128], index: 2, kind: input, shape index: {}]
  %s3 = inlined_call_operand.vmem [shape: bf16[128,64], index: 3, kind: input, shape index: {}]
  %s4 = inlined_call_operand.vmem [shape: bf16[64,128], index: 4, kind: input, shape index: {}]
  %s5 = inlined_call_operand.vmem [shape: bf16[128,256], index: 5, kind: input, shape index: {}]
  %s6 = inlined_call_operand.vmem [shape: bf16[256,500], index: 6, kind: input, shape index: {}]
  %s7 = inlined_call_operand.vmem [shape: f32[1,256], index: 7, kind: input, shape index: {}]
  %s8 = inlined_call_operand.vmem [shape: f32[1,128], index: 8, kind: input, shape index: {}]
  %s9 = inlined_call_operand.vmem [shape: f32[1,64], index: 9, kind: input, shape index: {}]
  %s10 = inlined_call_operand.vmem [shape: f32[1,128], index: 10, kind: input, shape index: {}]
  %s11 = inlined_call_operand.vmem [shape: f32[1,256], index: 11, kind: input, shape index: {}]
  %s12 = inlined_call_operand.vmem [shape: f32[1,500], index: 12, kind: input, shape index: {}]
  %s13 = inlined_call_operand.vmem [shape: f32[512,500], index: 13, kind: output, shape index: {0}]
  %s14 = inlined_call_operand.vmem [shape: f32[512,64], index: 14, kind: output, shape index: {1}]
  %15 = xla_tuple %s13, %s14
  %s16 = sld [smem:[#allocation0]]
  $region93: #{tpu_custom_call.1} parent=0
    _
  %s18 = ssub.s32 1, %s16
  %s19 = scalar_select 0, %s18, %s16
  loop: start=0, step=1, limit=4
  $region2: #{tpu_custom_call.1} parent=0 // loop_pre_header
    _
  $region3: #{tpu_custom_call.1} parent=0 // loop_header
    %s21 = sphi 0, %s25
    %p22 = scmp.ge.s32.totalorder %s21, 4
    %s31 = sphi 0, %s33
    %s34 = sphi 0, %s31
    %s35 = sphi 0, %s34
    %s51 = sphi 0, %s35
    %s55 = sphi 0, %s55
    %s57 = sphi 0, %s55
    %s58 = sphi 0, %s57
    %s72 = sphi 0, %s58
    %s76 = sphi 0, %s76
    %s78 = sphi 0, %s76
    %s79 = sphi 0, %s78
    %s93 = sphi 0, %s79
    %s97 = sphi 0, %s97
    %s99 = sphi 0, %s97
    %s100 = sphi 0, %s99
    %s114 = sphi 0, %s100
    %s118 = sphi 0, %s118
    %s120 = sphi 0, %s118
    %s121 = sphi 0, %s120
    %s135 = sphi 0, %s121
    %s139 = sphi 0, %s139
    %s141 = sphi 0, %s139
    %s142 = sphi 0, %s141
    %s156 = sphi 0, %s142
    %s160 = sphi 0, %s160
    %s162 = sphi 0, %s160
    %s163 = sphi 0, %s162
    %s177 = sphi 0, %s163
    %s181 = sphi 0, %s181
    %s183 = sphi 0, %s181
    %s184 = sphi 0, %s183
    %s198 = sphi 0, %s184
    %s202 = sphi 0, %s202
    %s204 = sphi 0, %s202
    %s205 = sphi 0, %s204
    %s219 = sphi 0, %s205
    %s223 = sphi 0, %s223
    %s225 = sphi 0, %s223
    %s226 = sphi 0, %s225
    %s240 = sphi 0, %s226
    %s244 = sphi 0, %s244
    %s246 = sphi 0, %s244
    %s247 = sphi 0, %s246
    %s261 = sphi 0, %s247
    %s265 = sphi 0, %s265
    %s267 = sphi 0, %s265
    %s268 = sphi 0, %s267
    %s282 = sphi 0, %s268
    %s286 = sphi 0, %s286
    %s288 = sphi 0, %s286
    %s289 = sphi 0, %s288
    %s303 = sphi 0, %s289
    %s309 = sphi 0, %s311
    %s312 = sphi 0, %s309
    %s313 = sphi 0, %s312
    %s329 = sphi 0, %s313
    %s335 = sphi 0, %s337
    %s338 = sphi 0, %s335
    %s339 = sphi 0, %s338
    %s355 = sphi 0, %s339
  $region4: #{tpu_custom_call.1} parent=0 // loop_header_branch
    %24 = sbr.rel (%p22) target = $region8
  $region5: #{tpu_custom_call.1} parent=0 // loop_body
    %s26 = ssub.s32 %s21, 1
    %s27 = ssub.s32 %s21, 2
    %s28 = sadd.s32 %s21, 1
    %s29 = ssub.s32 %s21, %s28
    %p30 = scmp.eq.s32.totalorder %s29, 0
    %s32 = sadd.s32 %s31, 1
    %s33 = scalar_select %p30, %s31, %s32
    %p36 = pneg %p30
    %p37 = scmp.eq.s32.totalorder %s21, 1
    %p38 = por %p36, %p37
    %p39 = scmp.ne.s32.totalorder %s31, %s34
    %p40 = scmp.eq.s32.totalorder %s21, 0
    %p41 = por %p39, %p40
    %p42 = scmp.ne.s32.totalorder %s31, %s34
    %p43 = scmp.eq.s32.totalorder %s26, 1
    %p44 = por %p42, %p43
    %p45 = scmp.ne.s32.totalorder %s34, %s35
    %p46 = scmp.eq.s32.totalorder %s26, 0
    %p47 = por %p45, %p46
    %p48 = scmp.ne.s32.totalorder %s34, %s35
    %p49 = scmp.eq.s32.totalorder %s27, 1
    %p50 = por %p48, %p49
    %p52 = scmp.ne.s32.totalorder %s35, %s51
    %p53 = scmp.eq.s32.totalorder %s27, 0
    %p54 = por %p52, %p53
    %s56 = sadd.s32 %s55, 1
    %p59 = scmp.eq.s32.totalorder %s21, 1
    %p60 = scmp.ne.s32.totalorder %s55, %s57
    %p61 = scmp.eq.s32.totalorder %s21, 0
    %p62 = por %p60, %p61
    %p63 = scmp.ne.s32.totalorder %s55, %s57
    %p64 = scmp.eq.s32.totalorder %s26, 1
    %p65 = por %p63, %p64
    %p66 = scmp.ne.s32.totalorder %s57, %s58
    %p67 = scmp.eq.s32.totalorder %s26, 0
    %p68 = por %p66, %p67
    %p69 = scmp.ne.s32.totalorder %s57, %s58
    %p70 = scmp.eq.s32.totalorder %s27, 1
    %p71 = por %p69, %p70
    %p73 = scmp.ne.s32.totalorder %s58, %s72
    %p74 = scmp.eq.s32.totalorder %s27, 0
    %p75 = por %p73, %p74
    %s77 = sadd.s32 %s76, 1
    %p80 = scmp.eq.s32.totalorder %s21, 1
    %p81 = scmp.ne.s32.totalorder %s76, %s78
    %p82 = scmp.eq.s32.totalorder %s21, 0
    %p83 = por %p81, %p82
    %p84 = scmp.ne.s32.totalorder %s76, %s78
    %p85 = scmp.eq.s32.totalorder %s26, 1
    %p86 = por %p84, %p85
    %p87 = scmp.ne.s32.totalorder %s78, %s79
    %p88 = scmp.eq.s32.totalorder %s26, 0
    %p89 = por %p87, %p88
    %p90 = scmp.ne.s32.totalorder %s78, %s79
    %p91 = scmp.eq.s32.totalorder %s27, 1
    %p92 = por %p90, %p91
    %p94 = scmp.ne.s32.totalorder %s79, %s93
    %p95 = scmp.eq.s32.totalorder %s27, 0
    %p96 = por %p94, %p95
    %s98 = sadd.s32 %s97, 1
    %p101 = scmp.eq.s32.totalorder %s21, 1
    %p102 = scmp.ne.s32.totalorder %s97, %s99
    %p103 = scmp.eq.s32.totalorder %s21, 0
    %p104 = por %p102, %p103
    %p105 = scmp.ne.s32.totalorder %s97, %s99
    %p106 = scmp.eq.s32.totalorder %s26, 1
    %p107 = por %p105, %p106
    %p108 = scmp.ne.s32.totalorder %s99, %s100
    %p109 = scmp.eq.s32.totalorder %s26, 0
    %p110 = por %p108, %p109
    %p111 = scmp.ne.s32.totalorder %s99, %s100
    %p112 = scmp.eq.s32.totalorder %s27, 1
    %p113 = por %p111, %p112
    %p115 = scmp.ne.s32.totalorder %s100, %s114
    %p116 = scmp.eq.s32.totalorder %s27, 0
    %p117 = por %p115, %p116
    %s119 = sadd.s32 %s118, 1
    %p122 = scmp.eq.s32.totalorder %s21, 1
    %p123 = scmp.ne.s32.totalorder %s118, %s120
    %p124 = scmp.eq.s32.totalorder %s21, 0
    %p125 = por %p123, %p124
    %p126 = scmp.ne.s32.totalorder %s118, %s120
    %p127 = scmp.eq.s32.totalorder %s26, 1
    %p128 = por %p126, %p127
    %p129 = scmp.ne.s32.totalorder %s120, %s121
    %p130 = scmp.eq.s32.totalorder %s26, 0
    %p131 = por %p129, %p130
    %p132 = scmp.ne.s32.totalorder %s120, %s121
    %p133 = scmp.eq.s32.totalorder %s27, 1
    %p134 = por %p132, %p133
    %p136 = scmp.ne.s32.totalorder %s121, %s135
    %p137 = scmp.eq.s32.totalorder %s27, 0
    %p138 = por %p136, %p137
    %s140 = sadd.s32 %s139, 1
    %p143 = scmp.eq.s32.totalorder %s21, 1
    %p144 = scmp.ne.s32.totalorder %s139, %s141
    %p145 = scmp.eq.s32.totalorder %s21, 0
    %p146 = por %p144, %p145
    %p147 = scmp.ne.s32.totalorder %s139, %s141
    %p148 = scmp.eq.s32.totalorder %s26, 1
    %p149 = por %p147, %p148
    %p150 = scmp.ne.s32.totalorder %s141, %s142
    %p151 = scmp.eq.s32.totalorder %s26, 0
    %p152 = por %p150, %p151
    %p153 = scmp.ne.s32.totalorder %s141, %s142
    %p154 = scmp.eq.s32.totalorder %s27, 1
    %p155 = por %p153, %p154
    %p157 = scmp.ne.s32.totalorder %s142, %s156
    %p158 = scmp.eq.s32.totalorder %s27, 0
    %p159 = por %p157, %p158
    %s161 = sadd.s32 %s160, 1
    %p164 = scmp.eq.s32.totalorder %s21, 1
    %p165 = scmp.ne.s32.totalorder %s160, %s162
    %p166 = scmp.eq.s32.totalorder %s21, 0
    %p167 = por %p165, %p166
    %p168 = scmp.ne.s32.totalorder %s160, %s162
    %p169 = scmp.eq.s32.totalorder %s26, 1
    %p170 = por %p168, %p169
    %p171 = scmp.ne.s32.totalorder %s162, %s163
    %p172 = scmp.eq.s32.totalorder %s26, 0
    %p173 = por %p171, %p172
    %p174 = scmp.ne.s32.totalorder %s162, %s163
    %p175 = scmp.eq.s32.totalorder %s27, 1
    %p176 = por %p174, %p175
    %p178 = scmp.ne.s32.totalorder %s163, %s177
    %p179 = scmp.eq.s32.totalorder %s27, 0
    %p180 = por %p178, %p179
    %s182 = sadd.s32 %s181, 1
    %p185 = scmp.eq.s32.totalorder %s21, 1
    %p186 = scmp.ne.s32.totalorder %s181, %s183
    %p187 = scmp.eq.s32.totalorder %s21, 0
    %p188 = por %p186, %p187
    %p189 = scmp.ne.s32.totalorder %s181, %s183
    %p190 = scmp.eq.s32.totalorder %s26, 1
    %p191 = por %p189, %p190
    %p192 = scmp.ne.s32.totalorder %s183, %s184
    %p193 = scmp.eq.s32.totalorder %s26, 0
    %p194 = por %p192, %p193
    %p195 = scmp.ne.s32.totalorder %s183, %s184
    %p196 = scmp.eq.s32.totalorder %s27, 1
    %p197 = por %p195, %p196
    %p199 = scmp.ne.s32.totalorder %s184, %s198
    %p200 = scmp.eq.s32.totalorder %s27, 0
    %p201 = por %p199, %p200
    %s203 = sadd.s32 %s202, 1
    %p206 = scmp.eq.s32.totalorder %s21, 1
    %p207 = scmp.ne.s32.totalorder %s202, %s204
    %p208 = scmp.eq.s32.totalorder %s21, 0
    %p209 = por %p207, %p208
    %p210 = scmp.ne.s32.totalorder %s202, %s204
    %p211 = scmp.eq.s32.totalorder %s26, 1
    %p212 = por %p210, %p211
    %p213 = scmp.ne.s32.totalorder %s204, %s205
    %p214 = scmp.eq.s32.totalorder %s26, 0
    %p215 = por %p213, %p214
    %p216 = scmp.ne.s32.totalorder %s204, %s205
    %p217 = scmp.eq.s32.totalorder %s27, 1
    %p218 = por %p216, %p217
    %p220 = scmp.ne.s32.totalorder %s205, %s219
    %p221 = scmp.eq.s32.totalorder %s27, 0
    %p222 = por %p220, %p221
    %s224 = sadd.s32 %s223, 1
    %p227 = scmp.eq.s32.totalorder %s21, 1
    %p228 = scmp.ne.s32.totalorder %s223, %s225
    %p229 = scmp.eq.s32.totalorder %s21, 0
    %p230 = por %p228, %p229
    %p231 = scmp.ne.s32.totalorder %s223, %s225
    %p232 = scmp.eq.s32.totalorder %s26, 1
    %p233 = por %p231, %p232
    %p234 = scmp.ne.s32.totalorder %s225, %s226
    %p235 = scmp.eq.s32.totalorder %s26, 0
    %p236 = por %p234, %p235
    %p237 = scmp.ne.s32.totalorder %s225, %s226
    %p238 = scmp.eq.s32.totalorder %s27, 1
    %p239 = por %p237, %p238
    %p241 = scmp.ne.s32.totalorder %s226, %s240
    %p242 = scmp.eq.s32.totalorder %s27, 0
    %p243 = por %p241, %p242
    %s245 = sadd.s32 %s244, 1
    %p248 = scmp.eq.s32.totalorder %s21, 1
    %p249 = scmp.ne.s32.totalorder %s244, %s246
    %p250 = scmp.eq.s32.totalorder %s21, 0
    %p251 = por %p249, %p250
    %p252 = scmp.ne.s32.totalorder %s244, %s246
    %p253 = scmp.eq.s32.totalorder %s26, 1
    %p254 = por %p252, %p253
    %p255 = scmp.ne.s32.totalorder %s246, %s247
    %p256 = scmp.eq.s32.totalorder %s26, 0
    %p257 = por %p255, %p256
    %p258 = scmp.ne.s32.totalorder %s246, %s247
    %p259 = scmp.eq.s32.totalorder %s27, 1
    %p260 = por %p258, %p259
    %p262 = scmp.ne.s32.totalorder %s247, %s261
    %p263 = scmp.eq.s32.totalorder %s27, 0
    %p264 = por %p262, %p263
    %s266 = sadd.s32 %s265, 1
    %p269 = scmp.eq.s32.totalorder %s21, 1
    %p270 = scmp.ne.s32.totalorder %s265, %s267
    %p271 = scmp.eq.s32.totalorder %s21, 0
    %p272 = por %p270, %p271
    %p273 = scmp.ne.s32.totalorder %s265, %s267
    %p274 = scmp.eq.s32.totalorder %s26, 1
    %p275 = por %p273, %p274
    %p276 = scmp.ne.s32.totalorder %s267, %s268
    %p277 = scmp.eq.s32.totalorder %s26, 0
    %p278 = por %p276, %p277
    %p279 = scmp.ne.s32.totalorder %s267, %s268
    %p280 = scmp.eq.s32.totalorder %s27, 1
    %p281 = por %p279, %p280
    %p283 = scmp.ne.s32.totalorder %s268, %s282
    %p284 = scmp.eq.s32.totalorder %s27, 0
    %p285 = por %p283, %p284
    %s287 = sadd.s32 %s286, 1
    %p290 = scmp.eq.s32.totalorder %s21, 1
    %p291 = scmp.ne.s32.totalorder %s286, %s288
    %p292 = scmp.eq.s32.totalorder %s21, 0
    %p293 = por %p291, %p292
    %p294 = scmp.ne.s32.totalorder %s286, %s288
    %p295 = scmp.eq.s32.totalorder %s26, 1
    %p296 = por %p294, %p295
    %p297 = scmp.ne.s32.totalorder %s288, %s289
    %p298 = scmp.eq.s32.totalorder %s26, 0
    %p299 = por %p297, %p298
    %p300 = scmp.ne.s32.totalorder %s288, %s289
    %p301 = scmp.eq.s32.totalorder %s27, 1
    %p302 = por %p300, %p301
    %p304 = scmp.ne.s32.totalorder %s289, %s303
    %p305 = scmp.eq.s32.totalorder %s27, 0
    %p306 = por %p304, %p305
    %s307 = ssub.s32 %s21, %s28
    %p308 = scmp.eq.s32.totalorder %s307, 0
    %s310 = sadd.s32 %s309, 1
    %s311 = scalar_select %p308, %s309, %s310
    %p314 = pneg %p308
    %p315 = scmp.eq.s32.totalorder %s21, 1
    %p316 = por %p314, %p315
    %p317 = scmp.ne.s32.totalorder %s309, %s312
    %p318 = scmp.eq.s32.totalorder %s21, 0
    %p319 = por %p317, %p318
    %p320 = scmp.ne.s32.totalorder %s309, %s312
    %p321 = scmp.eq.s32.totalorder %s26, 1
    %p322 = por %p320, %p321
    %p323 = scmp.ne.s32.totalorder %s312, %s313
    %p324 = scmp.eq.s32.totalorder %s26, 0
    %p325 = por %p323, %p324
    %p326 = scmp.ne.s32.totalorder %s312, %s313
    %p327 = scmp.eq.s32.totalorder %s27, 1
    %p328 = por %p326, %p327
    %p330 = scmp.ne.s32.totalorder %s313, %s329
    %p331 = scmp.eq.s32.totalorder %s27, 0
    %p332 = por %p330, %p331
    %s333 = ssub.s32 %s21, %s28
    %p334 = scmp.eq.s32.totalorder %s333, 0
    %s336 = sadd.s32 %s335, 1
    %s337 = scalar_select %p334, %s335, %s336
    %p340 = pneg %p334
    %p341 = scmp.eq.s32.totalorder %s21, 1
    %p342 = por %p340, %p341
    %p343 = scmp.ne.s32.totalorder %s335, %s338
    %p344 = scmp.eq.s32.totalorder %s21, 0
    %p345 = por %p343, %p344
    %p346 = scmp.ne.s32.totalorder %s335, %s338
    %p347 = scmp.eq.s32.totalorder %s26, 1
    %p348 = por %p346, %p347
    %p349 = scmp.ne.s32.totalorder %s338, %s339
    %p350 = scmp.eq.s32.totalorder %s26, 0
    %p351 = por %p349, %p350
    %p352 = scmp.ne.s32.totalorder %s338, %s339
    %p353 = scmp.eq.s32.totalorder %s27, 1
    %p354 = por %p352, %p353
    %p356 = scmp.ne.s32.totalorder %s339, %s355
    %p357 = scmp.eq.s32.totalorder %s27, 0
    %p358 = por %p356, %p357
    %p359 = scmp.le.s32.totalorder 1, %s21
    %p360 = scmp.lt.s32.totalorder %s21, 3
    %p361 = pnand %p359, %p360
    %p362 = pneg %p361
    // Predicated region
    $region9: #{tpu_custom_call.1} parent=5 // pred_check
      _
    $region10: #{tpu_custom_call.1} parent=5 // pred_check_branch
      %364 = sbr.rel (%p361) target = $region12
    $region11: #{tpu_custom_call.1} parent=5 // pred_region
      %s365 = ssub.s32 %s21, 1
      // Predicated region
      $region13: #{tpu_custom_call.1} parent=11 // pred_check
        %p366 = pneg %p68
      $region14: #{tpu_custom_call.1} parent=11 // pred_check_branch
        %368 = sbr.rel (%p366) target = $region16
      $region15: #{tpu_custom_call.1} parent=11 // pred_region
        _
      $region16: #{tpu_custom_call.1} parent=11 // pred_fallthru
        _
      // Predicated region
      $region17: #{tpu_custom_call.1} parent=11 // pred_check
        %p369 = pneg %p89
      $region18: #{tpu_custom_call.1} parent=11 // pred_check_branch
        %371 = sbr.rel (%p369) target = $region20
      $region19: #{tpu_custom_call.1} parent=11 // pred_region
        _
      $region20: #{tpu_custom_call.1} parent=11 // pred_fallthru
        _
      // Predicated region
      $region21: #{tpu_custom_call.1} parent=11 // pred_check
        %p372 = pneg %p110
      $region22: #{tpu_custom_call.1} parent=11 // pred_check_branch
        %374 = sbr.rel (%p372) target = $region24
      $region23: #{tpu_custom_call.1} parent=11 // pred_region
        _
      $region24: #{tpu_custom_call.1} parent=11 // pred_fallthru
        _
      // Predicated region
      $region25: #{tpu_custom_call.1} parent=11 // pred_check
        %p375 = pneg %p131
      $region26: #{tpu_custom_call.1} parent=11 // pred_check_branch
        %377 = sbr.rel (%p375) target = $region28
      $region27: #{tpu_custom_call.1} parent=11 // pred_region
        _
      $region28: #{tpu_custom_call.1} parent=11 // pred_fallthru
        _
      // Predicated region
      $region29: #{tpu_custom_call.1} parent=11 // pred_check
        %p378 = pneg %p152
      $region30: #{tpu_custom_call.1} parent=11 // pred_check_branch
        %380 = sbr.rel (%p378) target = $region32
      $region31: #{tpu_custom_call.1} parent=11 // pred_region
        _
      $region32: #{tpu_custom_call.1} parent=11 // pred_fallthru
        _
      // Predicated region
      $region33: #{tpu_custom_call.1} parent=11 // pred_check
        %p381 = pneg %p173
      $region34: #{tpu_custom_call.1} parent=11 // pred_check_branch
        %383 = sbr.rel (%p381) target = $region36
      $region35: #{tpu_custom_call.1} parent=11 // pred_region
        _
      $region36: #{tpu_custom_call.1} parent=11 // pred_fallthru
        _
      // Predicated region
      $region37: #{tpu_custom_call.1} parent=11 // pred_check
        %p384 = pneg %p194
      $region38: #{tpu_custom_call.1} parent=11 // pred_check_branch
        %386 = sbr.rel (%p384) target = $region40
      $region39: #{tpu_custom_call.1} parent=11 // pred_region
        _
      $region40: #{tpu_custom_call.1} parent=11 // pred_fallthru
        _
      // Predicated region
      $region41: #{tpu_custom_call.1} parent=11 // pred_check
        %p387 = pneg %p215
      $region42: #{tpu_custom_call.1} parent=11 // pred_check_branch
        %389 = sbr.rel (%p387) target = $region44
      $region43: #{tpu_custom_call.1} parent=11 // pred_region
        _
      $region44: #{tpu_custom_call.1} parent=11 // pred_fallthru
        _
      // Predicated region
      $region45: #{tpu_custom_call.1} parent=11 // pred_check
        %p390 = pneg %p236
      $region46: #{tpu_custom_call.1} parent=11 // pred_check_branch
        %392 = sbr.rel (%p390) target = $region48
      $region47: #{tpu_custom_call.1} parent=11 // pred_region
        _
      $region48: #{tpu_custom_call.1} parent=11 // pred_fallthru
        _
      // Predicated region
      $region49: #{tpu_custom_call.1} parent=11 // pred_check
        %p393 = pneg %p257
      $region50: #{tpu_custom_call.1} parent=11 // pred_check_branch
        %395 = sbr.rel (%p393) target = $region52
      $region51: #{tpu_custom_call.1} parent=11 // pred_region
        _
      $region52: #{tpu_custom_call.1} parent=11 // pred_fallthru
        _
      // Predicated region
      $region53: #{tpu_custom_call.1} parent=11 // pred_check
        %p396 = pneg %p278
      $region54: #{tpu_custom_call.1} parent=11 // pred_check_branch
        %398 = sbr.rel (%p396) target = $region56
      $region55: #{tpu_custom_call.1} parent=11 // pred_region
        _
      $region56: #{tpu_custom_call.1} parent=11 // pred_fallthru
        _
      // Predicated region
      $region57: #{tpu_custom_call.1} parent=11 // pred_check
        %p399 = pneg %p299
      $region58: #{tpu_custom_call.1} parent=11 // pred_check_branch
        %401 = sbr.rel (%p399) target = $region60
      $region59: #{tpu_custom_call.1} parent=11 // pred_region
        _
      $region60: #{tpu_custom_call.1} parent=11 // pred_fallthru
        _
    $region12: #{tpu_custom_call.1} parent=5 // pred_fallthru
      _
    %p402 = scmp.lt.s32.totalorder %s21, 2
    // Predicated region
    $region61: #{tpu_custom_call.1} parent=5 // pred_check
      %p403 = pneg %p402
    $region62: #{tpu_custom_call.1} parent=5 // pred_check_branch
      %405 = sbr.rel (%p403) target = $region64
    $region63: #{tpu_custom_call.1} parent=5 // pred_region
      // Predicated region
      $region65: #{tpu_custom_call.1} parent=63 // pred_check
        %p406 = pneg %p41
      $region66: #{tpu_custom_call.1} parent=63 // pred_check_branch
        %408 = sbr.rel (%p406) target = $region68
      $region67: #{tpu_custom_call.1} parent=63 // pred_region
        %s409 = smul.u32 32, %s21
        %p410 = scmp.lt.s32.totalorder %s409, 63
        %s411 = scalar_select %p410, %s409, 63
        %s412 = smul.addr %s411, 4
        %s413 = smul.addr %s412, 8
        %s414 = scalar_lea.vmem %s0, %s413
        %s415 = smul.u32 32, %s21
      $region68: #{tpu_custom_call.1} parent=63 // pred_fallthru
        _
    $region64: #{tpu_custom_call.1} parent=5 // pred_fallthru
      _
    %p416 = scmp.le.s32.totalorder 1, %s21
    %p417 = scmp.lt.s32.totalorder %s21, 3
    %p418 = pnand %p416, %p417
    %p419 = pneg %p418
    // Predicated region
    $region69: #{tpu_custom_call.1} parent=5 // pred_check
      _
    $region70: #{tpu_custom_call.1} parent=5 // pred_check_branch
      %421 = sbr.rel (%p418) target = $region72
    $region71: #{tpu_custom_call.1} parent=5 // pred_region
      %s422 = ssub.s32 %s21, 1
      %s423 = smul.u32 32, %s26
      %p424 = scmp.lt.s32.totalorder %s423, 63
      %s425 = scalar_select %p424, %s423, 63
      %s426 = smul.addr %s425, 4
      %s427 = smul.addr %s426, 8
      %s428 = scalar_lea.vmem %s0, %s427
      %p429 = pneg %p47
      %p430 = pneg %p44
      %p431 = pneg %p68
      %p432 = pneg %p65
      %p433 = pneg %p89
      %p434 = pneg %p86
      %p435 = pneg %p110
      %p436 = pneg %p107
      %p437 = pneg %p131
      %p438 = pneg %p128
      %p439 = pneg %p152
      %p440 = pneg %p149
      %p441 = pneg %p173
      %p442 = pneg %p170
      %p443 = pneg %p194
      %p444 = pneg %p191
      %p445 = pneg %p215
      %p446 = pneg %p212
      %p447 = pneg %p236
      %p448 = pneg %p233
      %p449 = pneg %p257
      %p450 = pneg %p254
      %p451 = pneg %p278
      %p452 = pneg %p275
      %p453 = pneg %p299
      %p454 = pneg %p296
      %p455 = pneg %p325
      %p456 = pneg %p322
      %s457 = smul.u32 32, %s26
      %p458 = scmp.lt.s32.totalorder %s457, 63
      %s459 = scalar_select %p458, %s457, 63
      %s460 = smul.addr %s459, 4
      %s461 = smul.addr %s460, 8
      %s462 = scalar_lea.vmem %s13, %s461
      %p463 = pneg %p351
      %p464 = pneg %p348
      %s465 = smul.u32 32, %s26
      %p466 = scmp.lt.s32.totalorder %s465, 63
      %s467 = scalar_select %p466, %s465, 63
      %s468 = smul.addr %s467, 8
      %s469 = scalar_lea.vmem %s14, %s468
      %s470 = smul.u32 32, %s26
      %p471 = scmp.lt.s32.totalorder %s470, 63
      %s472 = scalar_select %p471, %s470, 63
      %s473 = smul.addr %s472, 4
      %s474 = smul.addr %s473, 8
      %s475 = scalar_lea.vmem %s0, %s474
      %s476 = smul.u32 32, %s26
      %s477 = smul.u32 32, %s26
      %p478 = scmp.lt.s32.totalorder %s477, 63
      %s479 = scalar_select %p478, %s477, 63
      %s480 = smul.addr %s479, 4
      %s481 = smul.addr %s480, 8
      %s482 = scalar_lea.vmem %s13, %s481
      %s483 = smul.u32 32, %s26
      %s484 = smul.u32 32, %s26
      %p485 = scmp.lt.s32.totalorder %s484, 63
      %s486 = scalar_select %p485, %s484, 63
      %s487 = smul.addr %s486, 8
      %s488 = scalar_lea.vmem %s14, %s487
      %s489 = smul.u32 32, %s26
      %v491 = vld [vmem:[%s475] sm:$0xff]
      %v492 = vld [vmem:[%s475 + $0x8] sm:$0xff]
      %v493 = vld [vmem:[%s475 + $0x10] sm:$0xff]
      %v494 = vld [vmem:[%s475 + $0x18] sm:$0xff]
      %v495 = vld [vmem:[%s475 + $0x20] sm:$0xff]
      %v496 = vld [vmem:[%s475 + $0x28] sm:$0xff]
      %v497 = vld [vmem:[%s475 + $0x30] sm:$0xff]
      %v498 = vld [vmem:[%s475 + $0x38] sm:$0xff]
      %v499 = vld [vmem:[%s475 + $0x40] sm:$0xff]
      %v500 = vld [vmem:[%s475 + $0x48] sm:$0xff]
      %v501 = vld [vmem:[%s475 + $0x50] sm:$0xff]
      %v502 = vld [vmem:[%s475 + $0x58] sm:$0xff]
      %v503 = vld [vmem:[%s475 + $0x60] sm:$0xff]
      %v504 = vld [vmem:[%s475 + $0x68] sm:$0xff]
      %v505 = vld [vmem:[%s475 + $0x70] sm:$0xff]
      %v506 = vld [vmem:[%s475 + $0x78] sm:$0xff]
      %v507 = vld [vmem:[%s475 + $0x80] sm:$0xff]
      %v508 = vld [vmem:[%s475 + $0x88] sm:$0xff]
      %v509 = vld [vmem:[%s475 + $0x90] sm:$0xff]
      %v510 = vld [vmem:[%s475 + $0x98] sm:$0xff]
      %v511 = vld [vmem:[%s475 + $0xa0] sm:$0xff]
      %v512 = vld [vmem:[%s475 + $0xa8] sm:$0xff]
      %v513 = vld [vmem:[%s475 + $0xb0] sm:$0xff]
      %v514 = vld [vmem:[%s475 + $0xb8] sm:$0xff]
      %v515 = vld [vmem:[%s475 + $0xc0] sm:$0xff]
      %v516 = vld [vmem:[%s475 + $0xc8] sm:$0xff]
      %v517 = vld [vmem:[%s475 + $0xd0] sm:$0xff]
      %v518 = vld [vmem:[%s475 + $0xd8] sm:$0xff]
      %v519 = vld [vmem:[%s475 + $0xe0] sm:$0xff]
      %v520 = vld [vmem:[%s475 + $0xe8] sm:$0xff]
      %v521 = vld [vmem:[%s475 + $0xf0] sm:$0xff]
      %v522 = vld [vmem:[%s475 + $0xf8] sm:$0xff]
      %v523 = vld [vmem:[%s475 + $0x100] sm:$0xff]
      %v524 = vld [vmem:[%s475 + $0x108] sm:$0xff]
      %v525 = vld [vmem:[%s475 + $0x110] sm:$0xff]
      %v526 = vld [vmem:[%s475 + $0x118] sm:$0xff]
      %v527 = vld [vmem:[%s475 + $0x120] sm:$0xff]
      %v528 = vld [vmem:[%s475 + $0x128] sm:$0xff]
      %v529 = vld [vmem:[%s475 + $0x130] sm:$0xff]
      %v530 = vld [vmem:[%s475 + $0x138] sm:$0xff]
      %v531 = vld [vmem:[%s475 + $0x140] sm:$0xff]
      %v532 = vld [vmem:[%s475 + $0x148] sm:$0xff]
      %v533 = vld [vmem:[%s475 + $0x150] sm:$0xff]
      %v534 = vld [vmem:[%s475 + $0x158] sm:$0xff]
      %v535 = vld [vmem:[%s475 + $0x160] sm:$0xff]
      %v536 = vld [vmem:[%s475 + $0x168] sm:$0xff]
      %v537 = vld [vmem:[%s475 + $0x170] sm:$0xff]
      %v538 = vld [vmem:[%s475 + $0x178] sm:$0xff]
      %v539 = vld [vmem:[%s475 + $0x180] sm:$0xff]
      %v540 = vld [vmem:[%s475 + $0x188] sm:$0xff]
      %v541 = vld [vmem:[%s475 + $0x190] sm:$0xff]
      %v542 = vld [vmem:[%s475 + $0x198] sm:$0xff]
      %v543 = vld [vmem:[%s475 + $0x1a0] sm:$0xff]
      %v544 = vld [vmem:[%s475 + $0x1a8] sm:$0xff]
      %v545 = vld [vmem:[%s475 + $0x1b0] sm:$0xff]
      %v546 = vld [vmem:[%s475 + $0x1b8] sm:$0xff]
      %v547 = vld [vmem:[%s475 + $0x1c0] sm:$0xff]
      %v548 = vld [vmem:[%s475 + $0x1c8] sm:$0xff]
      %v549 = vld [vmem:[%s475 + $0x1d0] sm:$0xff]
      %v550 = vld [vmem:[%s475 + $0x1d8] sm:$0xff]
      %v551 = vld [vmem:[%s475 + $0x1e0] sm:$0xff]
      %v552 = vld [vmem:[%s475 + $0x1e8] sm:$0xff]
      %v553 = vld [vmem:[%s475 + $0x1f0] sm:$0xff]
      %v554 = vld [vmem:[%s475 + $0x1f8] sm:$0xff]
      %v555 = vld [vmem:[%s475 + $0x200] sm:$0xff]
      %v556 = vld [vmem:[%s475 + $0x208] sm:$0xff]
      %v557 = vld [vmem:[%s475 + $0x210] sm:$0xff]
      %v558 = vld [vmem:[%s475 + $0x218] sm:$0xff]
      %v559 = vld [vmem:[%s475 + $0x220] sm:$0xff]
      %v560 = vld [vmem:[%s475 + $0x228] sm:$0xff]
      %v561 = vld [vmem:[%s475 + $0x230] sm:$0xff]
      %v562 = vld [vmem:[%s475 + $0x238] sm:$0xff]
      %v563 = vld [vmem:[%s475 + $0x240] sm:$0xff]
      %v564 = vld [vmem:[%s475 + $0x248] sm:$0xff]
      %v565 = vld [vmem:[%s475 + $0x250] sm:$0xff]
      %v566 = vld [vmem:[%s475 + $0x258] sm:$0xff]
      %v567 = vld [vmem:[%s475 + $0x260] sm:$0xff]
      %v568 = vld [vmem:[%s475 + $0x268] sm:$0xff]
      %v569 = vld [vmem:[%s475 + $0x270] sm:$0xff]
      %v570 = vld [vmem:[%s475 + $0x278] sm:$0xff]
      %v571 = vld [vmem:[%s475 + $0x280] sm:$0xff]
      %v572 = vld [vmem:[%s475 + $0x288] sm:$0xff]
      %v573 = vld [vmem:[%s475 + $0x290] sm:$0xff]
      %v574 = vld [vmem:[%s475 + $0x298] sm:$0xff]
      %v575 = vld [vmem:[%s475 + $0x2a0] sm:$0xff]
      %v576 = vld [vmem:[%s475 + $0x2a8] sm:$0xff]
      %v577 = vld [vmem:[%s475 + $0x2b0] sm:$0xff]
      %v578 = vld [vmem:[%s475 + $0x2b8] sm:$0xff]
      %v579 = vld [vmem:[%s475 + $0x2c0] sm:$0xff]
      %v580 = vld [vmem:[%s475 + $0x2c8] sm:$0xff]
      %v581 = vld [vmem:[%s475 + $0x2d0] sm:$0xff]
      %v582 = vld [vmem:[%s475 + $0x2d8] sm:$0xff]
      %v583 = vld [vmem:[%s475 + $0x2e0] sm:$0xff]
      %v584 = vld [vmem:[%s475 + $0x2e8] sm:$0xff]
      %v585 = vld [vmem:[%s475 + $0x2f0] sm:$0xff]
      %v586 = vld [vmem:[%s475 + $0x2f8] sm:$0xff]
      %v587 = vld [vmem:[%s475 + $0x300] sm:$0xff]
      %v588 = vld [vmem:[%s475 + $0x308] sm:$0xff]
      %v589 = vld [vmem:[%s475 + $0x310] sm:$0xff]
      %v590 = vld [vmem:[%s475 + $0x318] sm:$0xff]
      %v591 = vld [vmem:[%s475 + $0x320] sm:$0xff]
      %v592 = vld [vmem:[%s475 + $0x328] sm:$0xff]
      %v593 = vld [vmem:[%s475 + $0x330] sm:$0xff]
      %v594 = vld [vmem:[%s475 + $0x338] sm:$0xff]
      %v595 = vld [vmem:[%s475 + $0x340] sm:$0xff]
      %v596 = vld [vmem:[%s475 + $0x348] sm:$0xff]
      %v597 = vld [vmem:[%s475 + $0x350] sm:$0xff]
      %v598 = vld [vmem:[%s475 + $0x358] sm:$0xff]
      %v599 = vld [vmem:[%s475 + $0x360] sm:$0xff]
      %v600 = vld [vmem:[%s475 + $0x368] sm:$0xff]
      %v601 = vld [vmem:[%s475 + $0x370] sm:$0xff]
      %v602 = vld [vmem:[%s475 + $0x378] sm:$0xff]
      %v603 = vld [vmem:[%s475 + $0x380] sm:$0xff]
      %v604 = vld [vmem:[%s475 + $0x388] sm:$0xff]
      %v605 = vld [vmem:[%s475 + $0x390] sm:$0xff]
      %v606 = vld [vmem:[%s475 + $0x398] sm:$0xff]
      %v607 = vld [vmem:[%s475 + $0x3a0] sm:$0xff]
      %v608 = vld [vmem:[%s475 + $0x3a8] sm:$0xff]
      %v609 = vld [vmem:[%s475 + $0x3b0] sm:$0xff]
      %v610 = vld [vmem:[%s475 + $0x3b8] sm:$0xff]
      %v611 = vld [vmem:[%s475 + $0x3c0] sm:$0xff]
      %v612 = vld [vmem:[%s475 + $0x3c8] sm:$0xff]
      %v613 = vld [vmem:[%s475 + $0x3d0] sm:$0xff]
      %v614 = vld [vmem:[%s475 + $0x3d8] sm:$0xff]
      %v615 = vld [vmem:[%s475 + $0x3e0] sm:$0xff]
      %v616 = vld [vmem:[%s475 + $0x3e8] sm:$0xff]
      %v617 = vld [vmem:[%s475 + $0x3f0] sm:$0xff]
      %v618 = vld [vmem:[%s475 + $0x3f8] sm:$0xff]
      %v619 = vpack.c.bf16 %v495, %v491
      %v620 = vpack.c.bf16 %v496, %v492
      %v621 = vpack.c.bf16 %v497, %v493
      %v622 = vpack.c.bf16 %v498, %v494
      %v623 = vpack.c.bf16 %v503, %v499
      %v624 = vpack.c.bf16 %v504, %v500
      %v625 = vpack.c.bf16 %v505, %v501
      %v626 = vpack.c.bf16 %v506, %v502
      %v627 = vpack.c.bf16 %v511, %v507
      %v628 = vpack.c.bf16 %v512, %v508
      %v629 = vpack.c.bf16 %v513, %v509
      %v630 = vpack.c.bf16 %v514, %v510
      %v631 = vpack.c.bf16 %v519, %v515
      %v632 = vpack.c.bf16 %v520, %v516
      %v633 = vpack.c.bf16 %v521, %v517
      %v634 = vpack.c.bf16 %v522, %v518
      %v635 = vpack.c.bf16 %v527, %v523
      %v636 = vpack.c.bf16 %v528, %v524
      %v637 = vpack.c.bf16 %v529, %v525
      %v638 = vpack.c.bf16 %v530, %v526
      %v639 = vpack.c.bf16 %v535, %v531
      %v640 = vpack.c.bf16 %v536, %v532
      %v641 = vpack.c.bf16 %v537, %v533
      %v642 = vpack.c.bf16 %v538, %v534
      %v643 = vpack.c.bf16 %v543, %v539
      %v644 = vpack.c.bf16 %v544, %v540
      %v645 = vpack.c.bf16 %v545, %v541
      %v646 = vpack.c.bf16 %v546, %v542
      %v647 = vpack.c.bf16 %v551, %v547
      %v648 = vpack.c.bf16 %v552, %v548
      %v649 = vpack.c.bf16 %v553, %v549
      %v650 = vpack.c.bf16 %v554, %v550
      %v651 = vpack.c.bf16 %v559, %v555
      %v652 = vpack.c.bf16 %v560, %v556
      %v653 = vpack.c.bf16 %v561, %v557
      %v654 = vpack.c.bf16 %v562, %v558
      %v655 = vpack.c.bf16 %v567, %v563
      %v656 = vpack.c.bf16 %v568, %v564
      %v657 = vpack.c.bf16 %v569, %v565
      %v658 = vpack.c.bf16 %v570, %v566
      %v659 = vpack.c.bf16 %v575, %v571
      %v660 = vpack.c.bf16 %v576, %v572
      %v661 = vpack.c.bf16 %v577, %v573
      %v662 = vpack.c.bf16 %v578, %v574
      %v663 = vpack.c.bf16 %v583, %v579
      %v664 = vpack.c.bf16 %v584, %v580
      %v665 = vpack.c.bf16 %v585, %v581
      %v666 = vpack.c.bf16 %v586, %v582
      %v667 = vpack.c.bf16 %v591, %v587
      %v668 = vpack.c.bf16 %v592, %v588
      %v669 = vpack.c.bf16 %v593, %v589
      %v670 = vpack.c.bf16 %v594, %v590
      %v671 = vpack.c.bf16 %v599, %v595
      %v672 = vpack.c.bf16 %v600, %v596
      %v673 = vpack.c.bf16 %v601, %v597
      %v674 = vpack.c.bf16 %v602, %v598
      %v675 = vpack.c.bf16 %v607, %v603
      %v676 = vpack.c.bf16 %v608, %v604
      %v677 = vpack.c.bf16 %v609, %v605
      %v678 = vpack.c.bf16 %v610, %v606
      %v679 = vpack.c.bf16 %v615, %v611
      %v680 = vpack.c.bf16 %v616, %v612
      %v681 = vpack.c.bf16 %v617, %v613
      %v682 = vpack.c.bf16 %v618, %v614
      %v683 = vld [vmem:[%s1] sm:$0xff]
      %v684 = vld [vmem:[%s1 + $0x8] sm:$0xff]
      %v685 = vld [vmem:[%s1 + $0x10] sm:$0xff]
      %v686 = vld [vmem:[%s1 + $0x18] sm:$0xff]
      %v687 = vld [vmem:[%s1 + $0x20] sm:$0xff]
      %v688 = vld [vmem:[%s1 + $0x28] sm:$0xff]
      %v689 = vld [vmem:[%s1 + $0x30] sm:$0xff]
      %v690 = vld [vmem:[%s1 + $0x38] sm:$0xff]
      %v691 = vld [vmem:[%s1 + $0x40] sm:$0xff]
      %v692 = vld [vmem:[%s1 + $0x48] sm:$0xff]
      %v693 = vld [vmem:[%s1 + $0x50] sm:$0xff]
      %v694 = vld [vmem:[%s1 + $0x58] sm:$0xff]
      %v695 = vld [vmem:[%s1 + $0x60] sm:$0xff]
      %v696 = vld [vmem:[%s1 + $0x68] sm:$0xff]
      %v697 = vld [vmem:[%s1 + $0x70] sm:$0xff]
      %v698 = vld [vmem:[%s1 + $0x78] sm:$0xff]
      %v699 = vld [vmem:[%s1 + $0x80] sm:$0xff]
      %v700 = vld [vmem:[%s1 + $0x88] sm:$0xff]
      %v701 = vld [vmem:[%s1 + $0x90] sm:$0xff]
      %v702 = vld [vmem:[%s1 + $0x98] sm:$0xff]
      %v703 = vld [vmem:[%s1 + $0xa0] sm:$0xff]
      %v704 = vld [vmem:[%s1 + $0xa8] sm:$0xff]
      %v705 = vld [vmem:[%s1 + $0xb0] sm:$0xff]
      %v706 = vld [vmem:[%s1 + $0xb8] sm:$0xff]
      %v707 = vld [vmem:[%s1 + $0xc0] sm:$0xff]
      %v708 = vld [vmem:[%s1 + $0xc8] sm:$0xff]
      %v709 = vld [vmem:[%s1 + $0xd0] sm:$0xff]
      %v710 = vld [vmem:[%s1 + $0xd8] sm:$0xff]
      %v711 = vld [vmem:[%s1 + $0xe0] sm:$0xff]
      %v712 = vld [vmem:[%s1 + $0xe8] sm:$0xff]
      %v713 = vld [vmem:[%s1 + $0xf0] sm:$0xff]
      %v714 = vld [vmem:[%s1 + $0xf8] sm:$0xff]
      %v715 = vld [vmem:[%s1 + $0x100] sm:$0xff]
      %v716 = vld [vmem:[%s1 + $0x108] sm:$0xff]
      %v717 = vld [vmem:[%s1 + $0x110] sm:$0xff]
      %v718 = vld [vmem:[%s1 + $0x118] sm:$0xff]
      %v719 = vld [vmem:[%s1 + $0x120] sm:$0xff]
      %v720 = vld [vmem:[%s1 + $0x128] sm:$0xff]
      %v721 = vld [vmem:[%s1 + $0x130] sm:$0xff]
      %v722 = vld [vmem:[%s1 + $0x138] sm:$0xff]
      %v723 = vld [vmem:[%s1 + $0x140] sm:$0xff]
      %v724 = vld [vmem:[%s1 + $0x148] sm:$0xff]
      %v725 = vld [vmem:[%s1 + $0x150] sm:$0xff]
      %v726 = vld [vmem:[%s1 + $0x158] sm:$0xff]
      %v727 = vld [vmem:[%s1 + $0x160] sm:$0xff]
      %v728 = vld [vmem:[%s1 + $0x168] sm:$0xff]
      %v729 = vld [vmem:[%s1 + $0x170] sm:$0xff]
      %v730 = vld [vmem:[%s1 + $0x178] sm:$0xff]
      %v731 = vld [vmem:[%s1 + $0x180] sm:$0xff]
      %v732 = vld [vmem:[%s1 + $0x188] sm:$0xff]
      %v733 = vld [vmem:[%s1 + $0x190] sm:$0xff]
      %v734 = vld [vmem:[%s1 + $0x198] sm:$0xff]
      %v735 = vld [vmem:[%s1 + $0x1a0] sm:$0xff]
      %v736 = vld [vmem:[%s1 + $0x1a8] sm:$0xff]
      %v737 = vld [vmem:[%s1 + $0x1b0] sm:$0xff]
      %v738 = vld [vmem:[%s1 + $0x1b8] sm:$0xff]
      %v739 = vld [vmem:[%s1 + $0x1c0] sm:$0xff]
      %v740 = vld [vmem:[%s1 + $0x1c8] sm:$0xff]
      %v741 = vld [vmem:[%s1 + $0x1d0] sm:$0xff]
      %v742 = vld [vmem:[%s1 + $0x1d8] sm:$0xff]
      %v743 = vld [vmem:[%s1 + $0x1e0] sm:$0xff]
      %v744 = vld [vmem:[%s1 + $0x1e8] sm:$0xff]
      %v745 = vld [vmem:[%s1 + $0x1f0] sm:$0x33]
      %v746 = vld [vmem:[%s7] sm:$0x3]
      %v748 = vlaneseq
      %v749 = vshrl.u32 %v748, 7
      %v750 = vsub.s32 0, %v749
      %v751 = vrot.slane %v746, %v750
      %v752 = vlaneseq
      %v753 = vshrl.u32 %v752, 7
      %v754 = vsub.s32 1, %v753
      %v755 = vrot.slane %v746, %v754
      %v821 = vunpack.c.l.b16 %v683
      %v822 = vunpack.c.h.b16 %v683
      %v823 = vunpack.c.l.b16 %v684
      %v824 = vunpack.c.h.b16 %v684
      %v825 = vunpack.c.l.b16 %v685
      %v826 = vunpack.c.h.b16 %v685
      %v827 = vunpack.c.l.b16 %v686
      %v828 = vunpack.c.h.b16 %v686
      %v829 = vunpack.c.l.b16 %v687
      %v830 = vunpack.c.h.b16 %v687
      %v831 = vunpack.c.l.b16 %v688
      %v832 = vunpack.c.h.b16 %v688
      %v833 = vunpack.c.l.b16 %v689
      %v834 = vunpack.c.h.b16 %v689
      %v835 = vunpack.c.l.b16 %v690
      %v836 = vunpack.c.h.b16 %v690
      %v837 = vunpack.c.l.b16 %v691
      %v838 = vunpack.c.h.b16 %v691
      %v839 = vunpack.c.l.b16 %v692
      %v840 = vunpack.c.h.b16 %v692
      %v841 = vunpack.c.l.b16 %v693
      %v842 = vunpack.c.h.b16 %v693
      %v843 = vunpack.c.l.b16 %v694
      %v844 = vunpack.c.h.b16 %v694
      %v845 = vunpack.c.l.b16 %v695
      %v846 = vunpack.c.h.b16 %v695
      %v847 = vunpack.c.l.b16 %v696
      %v848 = vunpack.c.h.b16 %v696
      %v849 = vunpack.c.l.b16 %v697
      %v850 = vunpack.c.h.b16 %v697
      %v851 = vunpack.c.l.b16 %v698
      %v852 = vunpack.c.h.b16 %v698
      %v853 = vunpack.c.l.b16 %v699
      %v854 = vunpack.c.h.b16 %v699
      %v855 = vunpack.c.l.b16 %v700
      %v856 = vunpack.c.h.b16 %v700
      %v857 = vunpack.c.l.b16 %v701
      %v858 = vunpack.c.h.b16 %v701
      %v859 = vunpack.c.l.b16 %v702
      %v860 = vunpack.c.h.b16 %v702
      %v861 = vunpack.c.l.b16 %v703
      %v862 = vunpack.c.h.b16 %v703
      %v863 = vunpack.c.l.b16 %v704
      %v864 = vunpack.c.h.b16 %v704
      %v865 = vunpack.c.l.b16 %v705
      %v866 = vunpack.c.h.b16 %v705
      %v867 = vunpack.c.l.b16 %v706
      %v868 = vunpack.c.h.b16 %v706
      %v869 = vunpack.c.l.b16 %v707
      %v870 = vunpack.c.h.b16 %v707
      %v871 = vunpack.c.l.b16 %v708
      %v872 = vunpack.c.h.b16 %v708
      %v873 = vunpack.c.l.b16 %v709
      %v874 = vunpack.c.h.b16 %v709
      %v875 = vunpack.c.l.b16 %v710
      %v876 = vunpack.c.h.b16 %v710
      %v877 = vunpack.c.l.b16 %v711
      %v878 = vunpack.c.h.b16 %v711
      %v879 = vunpack.c.l.b16 %v712
      %v880 = vunpack.c.h.b16 %v712
      %v881 = vunpack.c.l.b16 %v713
      %v882 = vunpack.c.h.b16 %v713
      %v883 = vunpack.c.l.b16 %v714
      %v884 = vunpack.c.h.b16 %v714
      %v885 = vunpack.c.l.b16 %v715
      %v886 = vunpack.c.h.b16 %v715
      %v887 = vunpack.c.l.b16 %v716
      %v888 = vunpack.c.h.b16 %v716
      %v889 = vunpack.c.l.b16 %v717
      %v890 = vunpack.c.h.b16 %v717
      %v891 = vunpack.c.l.b16 %v718
      %v892 = vunpack.c.h.b16 %v718
      %v893 = vunpack.c.l.b16 %v719
      %v894 = vunpack.c.h.b16 %v719
      %v895 = vunpack.c.l.b16 %v720
      %v896 = vunpack.c.h.b16 %v720
      %v897 = vunpack.c.l.b16 %v721
      %v898 = vunpack.c.h.b16 %v721
      %v899 = vunpack.c.l.b16 %v722
      %v900 = vunpack.c.h.b16 %v722
      %v901 = vunpack.c.l.b16 %v723
      %v902 = vunpack.c.h.b16 %v723
      %v903 = vunpack.c.l.b16 %v724
      %v904 = vunpack.c.h.b16 %v724
      %v905 = vunpack.c.l.b16 %v725
      %v906 = vunpack.c.h.b16 %v725
      %v907 = vunpack.c.l.b16 %v726
      %v908 = vunpack.c.h.b16 %v726
      %v909 = vunpack.c.l.b16 %v727
      %v910 = vunpack.c.h.b16 %v727
      %v911 = vunpack.c.l.b16 %v728
      %v912 = vunpack.c.h.b16 %v728
      %v913 = vunpack.c.l.b16 %v729
      %v914 = vunpack.c.h.b16 %v729
      %v915 = vunpack.c.l.b16 %v730
      %v916 = vunpack.c.h.b16 %v730
      %v917 = vunpack.c.l.b16 %v731
      %v918 = vunpack.c.h.b16 %v731
      %v919 = vunpack.c.l.b16 %v732
      %v920 = vunpack.c.h.b16 %v732
      %v921 = vunpack.c.l.b16 %v733
      %v922 = vunpack.c.h.b16 %v733
      %v923 = vunpack.c.l.b16 %v734
      %v924 = vunpack.c.h.b16 %v734
      %v925 = vunpack.c.l.b16 %v735
      %v926 = vunpack.c.h.b16 %v735
      %v927 = vunpack.c.l.b16 %v736
      %v928 = vunpack.c.h.b16 %v736
      %v929 = vunpack.c.l.b16 %v737
      %v930 = vunpack.c.h.b16 %v737
      %v931 = vunpack.c.l.b16 %v738
      %v932 = vunpack.c.h.b16 %v738
      %v933 = vunpack.c.l.b16 %v739
      %v934 = vunpack.c.h.b16 %v739
      %v935 = vunpack.c.l.b16 %v740
      %v936 = vunpack.c.h.b16 %v740
      %v937 = vunpack.c.l.b16 %v741
      %v938 = vunpack.c.h.b16 %v741
      %v939 = vunpack.c.l.b16 %v742
      %v940 = vunpack.c.h.b16 %v742
      %v941 = vunpack.c.l.b16 %v743
      %v942 = vunpack.c.h.b16 %v743
      %v943 = vunpack.c.l.b16 %v744
      %v944 = vunpack.c.h.b16 %v744
      %v945 = vunpack.c.l.b16 %v745
      %v946 = vunpack.c.h.b16 %v745
      %v947 = vpack.c.b16 %v823, %v821
      %v948 = vpack.c.b16 %v824, %v822
      %v949 = vpack.c.b16 %v827, %v825
      %v950 = vpack.c.b16 %v828, %v826
      %v951 = vpack.c.b16 %v831, %v829
      %v952 = vpack.c.b16 %v832, %v830
      %v953 = vpack.c.b16 %v835, %v833
      %v954 = vpack.c.b16 %v836, %v834
      %v955 = vpack.c.b16 %v839, %v837
      %v956 = vpack.c.b16 %v840, %v838
      %v957 = vpack.c.b16 %v843, %v841
      %v958 = vpack.c.b16 %v844, %v842
      %v959 = vpack.c.b16 %v847, %v845
      %v960 = vpack.c.b16 %v848, %v846
      %v961 = vpack.c.b16 %v851, %v849
      %v962 = vpack.c.b16 %v852, %v850
      %v963 = vpack.c.b16 %v855, %v853
      %v964 = vpack.c.b16 %v856, %v854
      %v965 = vpack.c.b16 %v859, %v857
      %v966 = vpack.c.b16 %v860, %v858
      %v967 = vpack.c.b16 %v863, %v861
      %v968 = vpack.c.b16 %v864, %v862
      %v969 = vpack.c.b16 %v867, %v865
      %v970 = vpack.c.b16 %v868, %v866
      %v971 = vpack.c.b16 %v871, %v869
      %v972 = vpack.c.b16 %v872, %v870
      %v973 = vpack.c.b16 %v875, %v873
      %v974 = vpack.c.b16 %v876, %v874
      %v975 = vpack.c.b16 %v879, %v877
      %v976 = vpack.c.b16 %v880, %v878
      %v977 = vpack.c.b16 %v883, %v881
      %v978 = vpack.c.b16 %v884, %v882
      %v979 = vpack.c.b16 %v887, %v885
      %v980 = vpack.c.b16 %v888, %v886
      %v981 = vpack.c.b16 %v891, %v889
      %v982 = vpack.c.b16 %v892, %v890
      %v983 = vpack.c.b16 %v895, %v893
      %v984 = vpack.c.b16 %v896, %v894
      %v985 = vpack.c.b16 %v899, %v897
      %v986 = vpack.c.b16 %v900, %v898
      %v987 = vpack.c.b16 %v903, %v901
      %v988 = vpack.c.b16 %v904, %v902
      %v989 = vpack.c.b16 %v907, %v905
      %v990 = vpack.c.b16 %v908, %v906
      %v991 = vpack.c.b16 %v911, %v909
      %v992 = vpack.c.b16 %v912, %v910
      %v993 = vpack.c.b16 %v915, %v913
      %v994 = vpack.c.b16 %v916, %v914
      %v995 = vpack.c.b16 %v919, %v917
      %v996 = vpack.c.b16 %v920, %v918
      %v997 = vpack.c.b16 %v923, %v921
      %v998 = vpack.c.b16 %v924, %v922
      %v999 = vpack.c.b16 %v927, %v925
      %v1000 = vpack.c.b16 %v928, %v926
      %v1001 = vpack.c.b16 %v931, %v929
      %v1002 = vpack.c.b16 %v932, %v930
      %v1003 = vpack.c.b16 %v935, %v933
      %v1004 = vpack.c.b16 %v936, %v934
      %v1005 = vpack.c.b16 %v939, %v937
      %v1006 = vpack.c.b16 %v940, %v938
      %v1007 = vpack.c.b16 %v943, %v941
      %v1008 = vpack.c.b16 %v944, %v942
      %v1009 = vpack.c.b16 %v945, %v945
      %v1010 = vpack.c.b16 %v946, %v946
      %vm1073 = vcmask 949248
      %v1075 = vsel %vm1073, %v622, 0
      %v1078 = vsel %vm1073, %v626, 0
      %v1081 = vsel %vm1073, %v630, 0
      %v1084 = vsel %vm1073, %v634, 0
      %v1087 = vsel %vm1073, %v638, 0
      %v1090 = vsel %vm1073, %v642, 0
      %v1093 = vsel %vm1073, %v646, 0
      %v1096 = vsel %vm1073, %v650, 0
      %v1099 = vsel %vm1073, %v654, 0
      %v1102 = vsel %vm1073, %v658, 0
      %v1105 = vsel %vm1073, %v662, 0
      %v1108 = vsel %vm1073, %v666, 0
      %v1111 = vsel %vm1073, %v670, 0
      %v1114 = vsel %vm1073, %v674, 0
      %v1117 = vsel %vm1073, %v678, 0
      %v1120 = vsel %vm1073, %v682, 0
      %vm1122 = vcmask 1041408
      %v1124 = vsel %vm1122, %v1009, 0
      %v1127 = vsel %vm1122, %v1010, 0
      %1129 = vmatprep.subr.bf16.mxu0 %v962
      %1130 = vmatpush1.bf16.msra.mxu0 %v961
      %1131 = vmatprep.subr.bf16.mxu0 %v960
      %1132 = vmatpush1.bf16.msra.mxu0 %v959
      %1133 = vmatprep.subr.bf16.mxu0 %v958
      %1134 = vmatpush1.bf16.msra.mxu0 %v957
      %1135 = vmatprep.subr.bf16.mxu0 %v956
      %1136 = vmatpush1.bf16.msra.mxu0 %v955
      %1137 = vmatprep.subr.bf16.mxu0 %v954
      %1138 = vmatpush1.bf16.msra.mxu0 %v953
      %1139 = vmatprep.subr.bf16.mxu0 %v952
      %1140 = vmatpush1.bf16.msra.mxu0 %v951
      %1141 = vmatprep.subr.bf16.mxu0 %v950
      %1142 = vmatpush1.bf16.msra.mxu0 %v949
      %1143 = vmatprep.subr.bf16.mxu0 %v948
      %1144 = vmatpush1.bf16.msra.mxu0 %v947
      %1145 = vmatprep.subr.bf16.mxu0 %v978
      %1146 = vmatpush2.bf16.msra.mxu0 %v977
      %1147 = vmatprep.subr.bf16.mxu0 %v976
      %1148 = vmatpush2.bf16.msra.mxu0 %v975
      %1149 = vmatprep.subr.bf16.mxu0 %v974
      %1150 = vmatpush2.bf16.msra.mxu0 %v973
      %1151 = vmatprep.subr.bf16.mxu0 %v972
      %1152 = vmatpush2.bf16.msra.mxu0 %v971
      %1153 = vmatprep.subr.bf16.mxu0 %v970
      %1154 = vmatpush2.bf16.msra.mxu0 %v969
      %1155 = vmatprep.subr.bf16.mxu0 %v968
      %1156 = vmatpush2.bf16.msra.mxu0 %v967
      %1157 = vmatprep.subr.bf16.mxu0 %v966
      %1158 = vmatpush2.bf16.msra.mxu0 %v965
      %1159 = vmatprep.subr.bf16.mxu0 %v964
      %1160 = vmatpush2.bf16.msra.mxu0 %v963
      %1161 = vmatprep.mubr.bf16.mxu0 %v620
      %1162 = vmatmul.mubr.bf16.gmra.mxu0 %v619
      %v1163 = vpop.f32.mrf.mxu0
      %v1164 = vadd.f32 %v751, %v1163
      %v1165 = vpop.f32.mrf.mxu0
      %v1166 = vadd.f32 %v755, %v1165
      %v1167 = vpop.f32.mrf.mxu0
      %v1168 = vadd.f32 %v751, %v1167
      %v1169 = vpop.f32.mrf.mxu0
      %v1170 = vadd.f32 %v755, %v1169
      %1171 = vmatprep.mubr.bf16.mxu0 %v624
      %1172 = vmatmul.mubr.bf16.gmra.mxu0 %v623
      %v1173 = vpop.f32.mrf.mxu0
      %v1174 = vadd.f32 %v751, %v1173
      %v1175 = vpop.f32.mrf.mxu0
      %v1176 = vadd.f32 %v755, %v1175
      %v1177 = vpop.f32.mrf.mxu0
      %v1178 = vadd.f32 %v751, %v1177
      %v1179 = vpop.f32.mrf.mxu0
      %v1180 = vadd.f32 %v755, %v1179
      %1181 = vmatprep.mubr.bf16.mxu0 %v628
      %1182 = vmatmul.mubr.bf16.gmra.mxu0 %v627
      %v1183 = vpop.f32.mrf.mxu0
      %v1184 = vadd.f32 %v751, %v1183
      %v1185 = vpop.f32.mrf.mxu0
      %v1186 = vadd.f32 %v755, %v1185
      %v1187 = vpop.f32.mrf.mxu0
      %v1188 = vadd.f32 %v751, %v1187
      %v1189 = vpop.f32.mrf.mxu0
      %v1190 = vadd.f32 %v755, %v1189
      %1191 = vmatprep.mubr.bf16.mxu0 %v632
      %1192 = vmatmul.mubr.bf16.gmra.mxu0 %v631
      %v1193 = vpop.f32.mrf.mxu0
      %v1194 = vadd.f32 %v751, %v1193
      %v1195 = vpop.f32.mrf.mxu0
      %v1196 = vadd.f32 %v755, %v1195
      %v1197 = vpop.f32.mrf.mxu0
      %v1198 = vadd.f32 %v751, %v1197
      %v1199 = vpop.f32.mrf.mxu0
      %v1200 = vadd.f32 %v755, %v1199
      %1201 = vmatprep.mubr.bf16.mxu0 %v636
      %1202 = vmatmul.mubr.bf16.gmra.mxu0 %v635
      %v1203 = vpop.f32.mrf.mxu0
      %v1204 = vadd.f32 %v751, %v1203
      %v1205 = vpop.f32.mrf.mxu0
      %v1206 = vadd.f32 %v755, %v1205
      %v1207 = vpop.f32.mrf.mxu0
      %v1208 = vadd.f32 %v751, %v1207
      %v1209 = vpop.f32.mrf.mxu0
      %v1210 = vadd.f32 %v755, %v1209
      %1211 = vmatprep.mubr.bf16.mxu0 %v640
      %1212 = vmatmul.mubr.bf16.gmra.mxu0 %v639
      %v1213 = vpop.f32.mrf.mxu0
      %v1214 = vadd.f32 %v751, %v1213
      %v1215 = vpop.f32.mrf.mxu0
      %v1216 = vadd.f32 %v755, %v1215
      %v1217 = vpop.f32.mrf.mxu0
      %v1218 = vadd.f32 %v751, %v1217
      %v1219 = vpop.f32.mrf.mxu0
      %v1220 = vadd.f32 %v755, %v1219
      %1221 = vmatprep.mubr.bf16.mxu0 %v644
      %1222 = vmatmul.mubr.bf16.gmra.mxu0 %v643
      %v1223 = vpop.f32.mrf.mxu0
      %v1224 = vadd.f32 %v751, %v1223
      %v1225 = vpop.f32.mrf.mxu0
      %v1226 = vadd.f32 %v755, %v1225
      %v1227 = vpop.f32.mrf.mxu0
      %v1228 = vadd.f32 %v751, %v1227
      %v1229 = vpop.f32.mrf.mxu0
      %v1230 = vadd.f32 %v755, %v1229
      %1231 = vmatprep.mubr.bf16.mxu0 %v648
      %1232 = vmatmul.mubr.bf16.gmra.mxu0 %v647
      %v1233 = vpop.f32.mrf.mxu0
      %v1234 = vadd.f32 %v751, %v1233
      %v1235 = vpop.f32.mrf.mxu0
      %v1236 = vadd.f32 %v755, %v1235
      %v1237 = vpop.f32.mrf.mxu0
      %v1238 = vadd.f32 %v751, %v1237
      %v1239 = vpop.f32.mrf.mxu0
      %v1240 = vadd.f32 %v755, %v1239
      %1241 = vmatprep.mubr.bf16.mxu0 %v652
      %1242 = vmatmul.mubr.bf16.gmra.mxu0 %v651
      %v1243 = vpop.f32.mrf.mxu0
      %v1244 = vadd.f32 %v751, %v1243
      %v1245 = vpop.f32.mrf.mxu0
      %v1246 = vadd.f32 %v755, %v1245
      %v1247 = vpop.f32.mrf.mxu0
      %v1248 = vadd.f32 %v751, %v1247
      %v1249 = vpop.f32.mrf.mxu0
      %v1250 = vadd.f32 %v755, %v1249
      %1251 = vmatprep.mubr.bf16.mxu0 %v656
      %1252 = vmatmul.mubr.bf16.gmra.mxu0 %v655
      %v1253 = vpop.f32.mrf.mxu0
      %v1254 = vadd.f32 %v751, %v1253
      %v1255 = vpop.f32.mrf.mxu0
      %v1256 = vadd.f32 %v755, %v1255
      %v1257 = vpop.f32.mrf.mxu0
      %v1258 = vadd.f32 %v751, %v1257
      %v1259 = vpop.f32.mrf.mxu0
      %v1260 = vadd.f32 %v755, %v1259
      %1261 = vmatprep.mubr.bf16.mxu0 %v660
      %1262 = vmatmul.mubr.bf16.gmra.mxu0 %v659
      %v1263 = vpop.f32.mrf.mxu0
      %v1264 = vadd.f32 %v751, %v1263
      %v1265 = vpop.f32.mrf.mxu0
      %v1266 = vadd.f32 %v755, %v1265
      %v1267 = vpop.f32.mrf.mxu0
      %v1268 = vadd.f32 %v751, %v1267
      %v1269 = vpop.f32.mrf.mxu0
      %v1270 = vadd.f32 %v755, %v1269
      %1271 = vmatprep.mubr.bf16.mxu0 %v664
      %1272 = vmatmul.mubr.bf16.gmra.mxu0 %v663
      %v1273 = vpop.f32.mrf.mxu0
      %v1274 = vadd.f32 %v751, %v1273
      %v1275 = vpop.f32.mrf.mxu0
      %v1276 = vadd.f32 %v755, %v1275
      %v1277 = vpop.f32.mrf.mxu0
      %v1278 = vadd.f32 %v751, %v1277
      %v1279 = vpop.f32.mrf.mxu0
      %v1280 = vadd.f32 %v755, %v1279
      %1281 = vmatprep.mubr.bf16.mxu0 %v668
      %1282 = vmatmul.mubr.bf16.gmra.mxu0 %v667
      %v1283 = vpop.f32.mrf.mxu0
      %v1284 = vadd.f32 %v751, %v1283
      %v1285 = vpop.f32.mrf.mxu0
      %v1286 = vadd.f32 %v755, %v1285
      %v1287 = vpop.f32.mrf.mxu0
      %v1288 = vadd.f32 %v751, %v1287
      %v1289 = vpop.f32.mrf.mxu0
      %v1290 = vadd.f32 %v755, %v1289
      %1291 = vmatprep.mubr.bf16.mxu0 %v672
      %1292 = vmatmul.mubr.bf16.gmra.mxu0 %v671
      %v1293 = vpop.f32.mrf.mxu0
      %v1294 = vadd.f32 %v751, %v1293
      %v1295 = vpop.f32.mrf.mxu0
      %v1296 = vadd.f32 %v755, %v1295
      %v1297 = vpop.f32.mrf.mxu0
      %v1298 = vadd.f32 %v751, %v1297
      %v1299 = vpop.f32.mrf.mxu0
      %v1300 = vadd.f32 %v755, %v1299
      %1301 = vmatprep.mubr.bf16.mxu0 %v676
      %1302 = vmatmul.mubr.bf16.gmra.mxu0 %v675
      %v1303 = vpop.f32.mrf.mxu0
      %v1304 = vadd.f32 %v751, %v1303
      %v1305 = vpop.f32.mrf.mxu0
      %v1306 = vadd.f32 %v755, %v1305
      %v1307 = vpop.f32.mrf.mxu0
      %v1308 = vadd.f32 %v751, %v1307
      %v1309 = vpop.f32.mrf.mxu0
      %v1310 = vadd.f32 %v755, %v1309
      %1311 = vmatprep.mubr.bf16.mxu0 %v680
      %1312 = vmatmul.mubr.bf16.gmra.mxu0 %v679
      %v1313 = vpop.f32.mrf.mxu0
      %v1314 = vadd.f32 %v751, %v1313
      %v1315 = vpop.f32.mrf.mxu0
      %v1316 = vadd.f32 %v755, %v1315
      %v1317 = vpop.f32.mrf.mxu0
      %v1318 = vadd.f32 %v751, %v1317
      %v1319 = vpop.f32.mrf.mxu0
      %v1320 = vadd.f32 %v755, %v1319
      %1321 = vdwg.mxu0
      %1322 = vmatprep.subr.bf16.mxu0 %v994
      %1323 = vmatpush1.bf16.msra.mxu0 %v993
      %1324 = vmatprep.subr.bf16.mxu0 %v992
      %1325 = vmatpush1.bf16.msra.mxu0 %v991
      %1326 = vmatprep.subr.bf16.mxu0 %v990
      %1327 = vmatpush1.bf16.msra.mxu0 %v989
      %1328 = vmatprep.subr.bf16.mxu0 %v988
      %1329 = vmatpush1.bf16.msra.mxu0 %v987
      %1330 = vmatprep.subr.bf16.mxu0 %v986
      %1331 = vmatpush1.bf16.msra.mxu0 %v985
      %1332 = vmatprep.subr.bf16.mxu0 %v984
      %1333 = vmatpush1.bf16.msra.mxu0 %v983
      %1334 = vmatprep.subr.bf16.mxu0 %v982
      %1335 = vmatpush1.bf16.msra.mxu0 %v981
      %1336 = vmatprep.subr.bf16.mxu0 %v980
      %1337 = vmatpush1.bf16.msra.mxu0 %v979
      %1338 = vmatprep.subr.bf16.mxu0 %v1127
      %1339 = vmatpush2.bf16.msra.mxu0 %v1124
      %1340 = vmatprep.subr.bf16.mxu0 %v1008
      %1341 = vmatpush2.bf16.msra.mxu0 %v1007
      %1342 = vmatprep.subr.bf16.mxu0 %v1006
      %1343 = vmatpush2.bf16.msra.mxu0 %v1005
      %1344 = vmatprep.subr.bf16.mxu0 %v1004
      %1345 = vmatpush2.bf16.msra.mxu0 %v1003
      %1346 = vmatprep.subr.bf16.mxu0 %v1002
      %1347 = vmatpush2.bf16.msra.mxu0 %v1001
      %1348 = vmatprep.subr.bf16.mxu0 %v1000
      %1349 = vmatpush2.bf16.msra.mxu0 %v999
      %1350 = vmatprep.subr.bf16.mxu0 %v998
      %1351 = vmatpush2.bf16.msra.mxu0 %v997
      %1352 = vmatprep.subr.bf16.mxu0 %v996
      %1353 = vmatpush2.bf16.msra.mxu0 %v995
      %1354 = vmatprep.mubr.bf16.mxu0 %v1075
      %1355 = vmatmul.mubr.bf16.gmra.mxu0 %v621
      %v1356 = vpop.f32.mrf.mxu0
      %v1357 = vadd.f32 %v1164, %v1356
      %v1358 = vpop.f32.mrf.mxu0
      %v1359 = vadd.f32 %v1166, %v1358
      %v1360 = vpop.f32.mrf.mxu0
      %v1361 = vadd.f32 %v1168, %v1360
      %v1362 = vpop.f32.mrf.mxu0
      %v1363 = vadd.f32 %v1170, %v1362
      %1364 = vmatprep.mubr.bf16.mxu0 %v1078
      %1365 = vmatmul.mubr.bf16.gmra.mxu0 %v625
      %v1366 = vpop.f32.mrf.mxu0
      %v1367 = vadd.f32 %v1174, %v1366
      %v1368 = vpop.f32.mrf.mxu0
      %v1369 = vadd.f32 %v1176, %v1368
      %v1370 = vpop.f32.mrf.mxu0
      %v1371 = vadd.f32 %v1178, %v1370
      %v1372 = vpop.f32.mrf.mxu0
      %v1373 = vadd.f32 %v1180, %v1372
      %1374 = vmatprep.mubr.bf16.mxu0 %v1081
      %1375 = vmatmul.mubr.bf16.gmra.mxu0 %v629
      %v1376 = vpop.f32.mrf.mxu0
      %v1377 = vadd.f32 %v1184, %v1376
      %v1378 = vpop.f32.mrf.mxu0
      %v1379 = vadd.f32 %v1186, %v1378
      %v1380 = vpop.f32.mrf.mxu0
      %v1381 = vadd.f32 %v1188, %v1380
      %v1382 = vpop.f32.mrf.mxu0
      %v1383 = vadd.f32 %v1190, %v1382
      %1384 = vmatprep.mubr.bf16.mxu0 %v1084
      %1385 = vmatmul.mubr.bf16.gmra.mxu0 %v633
      %v1386 = vpop.f32.mrf.mxu0
      %v1387 = vadd.f32 %v1194, %v1386
      %v1388 = vpop.f32.mrf.mxu0
      %v1389 = vadd.f32 %v1196, %v1388
      %v1390 = vpop.f32.mrf.mxu0
      %v1391 = vadd.f32 %v1198, %v1390
      %v1392 = vpop.f32.mrf.mxu0
      %v1393 = vadd.f32 %v1200, %v1392
      %1394 = vmatprep.mubr.bf16.mxu0 %v1087
      %1395 = vmatmul.mubr.bf16.gmra.mxu0 %v637
      %v1396 = vpop.f32.mrf.mxu0
      %v1397 = vadd.f32 %v1204, %v1396
      %v1398 = vpop.f32.mrf.mxu0
      %v1399 = vadd.f32 %v1206, %v1398
      %v1400 = vpop.f32.mrf.mxu0
      %v1401 = vadd.f32 %v1208, %v1400
      %v1402 = vpop.f32.mrf.mxu0
      %v1403 = vadd.f32 %v1210, %v1402
      %1404 = vmatprep.mubr.bf16.mxu0 %v1090
      %1405 = vmatmul.mubr.bf16.gmra.mxu0 %v641
      %v1406 = vpop.f32.mrf.mxu0
      %v1407 = vadd.f32 %v1214, %v1406
      %v1408 = vpop.f32.mrf.mxu0
      %v1409 = vadd.f32 %v1216, %v1408
      %v1410 = vpop.f32.mrf.mxu0
      %v1411 = vadd.f32 %v1218, %v1410
      %v1412 = vpop.f32.mrf.mxu0
      %v1413 = vadd.f32 %v1220, %v1412
      %1414 = vmatprep.mubr.bf16.mxu0 %v1093
      %1415 = vmatmul.mubr.bf16.gmra.mxu0 %v645
      %v1416 = vpop.f32.mrf.mxu0
      %v1417 = vadd.f32 %v1224, %v1416
      %v1418 = vpop.f32.mrf.mxu0
      %v1419 = vadd.f32 %v1226, %v1418
      %v1420 = vpop.f32.mrf.mxu0
      %v1421 = vadd.f32 %v1228, %v1420
      %v1422 = vpop.f32.mrf.mxu0
      %v1423 = vadd.f32 %v1230, %v1422
      %1424 = vmatprep.mubr.bf16.mxu0 %v1096
      %1425 = vmatmul.mubr.bf16.gmra.mxu0 %v649
      %v1426 = vpop.f32.mrf.mxu0
      %v1427 = vadd.f32 %v1234, %v1426
      %v1428 = vpop.f32.mrf.mxu0
      %v1429 = vadd.f32 %v1236, %v1428
      %v1430 = vpop.f32.mrf.mxu0
      %v1431 = vadd.f32 %v1238, %v1430
      %v1432 = vpop.f32.mrf.mxu0
      %v1433 = vadd.f32 %v1240, %v1432
      %1434 = vmatprep.mubr.bf16.mxu0 %v1099
      %1435 = vmatmul.mubr.bf16.gmra.mxu0 %v653
      %v1436 = vpop.f32.mrf.mxu0
      %v1437 = vadd.f32 %v1244, %v1436
      %v1438 = vpop.f32.mrf.mxu0
      %v1439 = vadd.f32 %v1246, %v1438
      %v1440 = vpop.f32.mrf.mxu0
      %v1441 = vadd.f32 %v1248, %v1440
      %v1442 = vpop.f32.mrf.mxu0
      %v1443 = vadd.f32 %v1250, %v1442
      %1444 = vmatprep.mubr.bf16.mxu0 %v1102
      %1445 = vmatmul.mubr.bf16.gmra.mxu0 %v657
      %v1446 = vpop.f32.mrf.mxu0
      %v1447 = vadd.f32 %v1254, %v1446
      %v1448 = vpop.f32.mrf.mxu0
      %v1449 = vadd.f32 %v1256, %v1448
      %v1450 = vpop.f32.mrf.mxu0
      %v1451 = vadd.f32 %v1258, %v1450
      %v1452 = vpop.f32.mrf.mxu0
      %v1453 = vadd.f32 %v1260, %v1452
      %1454 = vmatprep.mubr.bf16.mxu0 %v1105
      %1455 = vmatmul.mubr.bf16.gmra.mxu0 %v661
      %v1456 = vpop.f32.mrf.mxu0
      %v1457 = vadd.f32 %v1264, %v1456
      %v1458 = vpop.f32.mrf.mxu0
      %v1459 = vadd.f32 %v1266, %v1458
      %v1460 = vpop.f32.mrf.mxu0
      %v1461 = vadd.f32 %v1268, %v1460
      %v1462 = vpop.f32.mrf.mxu0
      %v1463 = vadd.f32 %v1270, %v1462
      %1464 = vmatprep.mubr.bf16.mxu0 %v1108
      %1465 = vmatmul.mubr.bf16.gmra.mxu0 %v665
      %v1466 = vpop.f32.mrf.mxu0
      %v1467 = vadd.f32 %v1274, %v1466
      %v1468 = vpop.f32.mrf.mxu0
      %v1469 = vadd.f32 %v1276, %v1468
      %v1470 = vpop.f32.mrf.mxu0
      %v1471 = vadd.f32 %v1278, %v1470
      %v1472 = vpop.f32.mrf.mxu0
      %v1473 = vadd.f32 %v1280, %v1472
      %1474 = vmatprep.mubr.bf16.mxu0 %v1111
      %1475 = vmatmul.mubr.bf16.gmra.mxu0 %v669
      %v1476 = vpop.f32.mrf.mxu0
      %v1477 = vadd.f32 %v1284, %v1476
      %v1478 = vpop.f32.mrf.mxu0
      %v1479 = vadd.f32 %v1286, %v1478
      %v1480 = vpop.f32.mrf.mxu0
      %v1481 = vadd.f32 %v1288, %v1480
      %v1482 = vpop.f32.mrf.mxu0
      %v1483 = vadd.f32 %v1290, %v1482
      %1484 = vmatprep.mubr.bf16.mxu0 %v1114
      %1485 = vmatmul.mubr.bf16.gmra.mxu0 %v673
      %v1486 = vpop.f32.mrf.mxu0
      %v1487 = vadd.f32 %v1294, %v1486
      %v1488 = vpop.f32.mrf.mxu0
      %v1489 = vadd.f32 %v1296, %v1488
      %v1490 = vpop.f32.mrf.mxu0
      %v1491 = vadd.f32 %v1298, %v1490
      %v1492 = vpop.f32.mrf.mxu0
      %v1493 = vadd.f32 %v1300, %v1492
      %1494 = vmatprep.mubr.bf16.mxu0 %v1117
      %1495 = vmatmul.mubr.bf16.gmra.mxu0 %v677
      %v1496 = vpop.f32.mrf.mxu0
      %v1497 = vadd.f32 %v1304, %v1496
      %v1498 = vpop.f32.mrf.mxu0
      %v1499 = vadd.f32 %v1306, %v1498
      %v1500 = vpop.f32.mrf.mxu0
      %v1501 = vadd.f32 %v1308, %v1500
      %v1502 = vpop.f32.mrf.mxu0
      %v1503 = vadd.f32 %v1310, %v1502
      %1504 = vmatprep.mubr.bf16.mxu0 %v1120
      %1505 = vmatmul.mubr.bf16.gmra.mxu0 %v681
      %v1506 = vpop.f32.mrf.mxu0
      %v1507 = vadd.f32 %v1314, %v1506
      %v1508 = vpop.f32.mrf.mxu0
      %v1509 = vadd.f32 %v1316, %v1508
      %v1510 = vpop.f32.mrf.mxu0
      %v1511 = vadd.f32 %v1318, %v1510
      %v1512 = vpop.f32.mrf.mxu0
      %v1513 = vadd.f32 %v1320, %v1512
      %1514 = vdwg.mxu0
      %v1515 = vmul.f32 %v1357, 0.5
      %v1516 = vmul.f32 %v1359, 0.5
      %v1517 = vmul.f32 %v1361, 0.5
      %v1518 = vmul.f32 %v1363, 0.5
      %v1519 = vmul.f32 %v1367, 0.5
      %v1520 = vmul.f32 %v1369, 0.5
      %v1521 = vmul.f32 %v1371, 0.5
      %v1522 = vmul.f32 %v1373, 0.5
      %v1523 = vmul.f32 %v1377, 0.5
      %v1524 = vmul.f32 %v1379, 0.5
      %v1525 = vmul.f32 %v1381, 0.5
      %v1526 = vmul.f32 %v1383, 0.5
      %v1527 = vmul.f32 %v1387, 0.5
      %v1528 = vmul.f32 %v1389, 0.5
      %v1529 = vmul.f32 %v1391, 0.5
      %v1530 = vmul.f32 %v1393, 0.5
      %v1531 = vmul.f32 %v1397, 0.5
      %v1532 = vmul.f32 %v1399, 0.5
      %v1533 = vmul.f32 %v1401, 0.5
      %v1534 = vmul.f32 %v1403, 0.5
      %v1535 = vmul.f32 %v1407, 0.5
      %v1536 = vmul.f32 %v1409, 0.5
      %v1537 = vmul.f32 %v1411, 0.5
      %v1538 = vmul.f32 %v1413, 0.5
      %v1539 = vmul.f32 %v1417, 0.5
      %v1540 = vmul.f32 %v1419, 0.5
      %v1541 = vmul.f32 %v1421, 0.5
      %v1542 = vmul.f32 %v1423, 0.5
      %v1543 = vmul.f32 %v1427, 0.5
      %v1544 = vmul.f32 %v1429, 0.5
      %v1545 = vmul.f32 %v1431, 0.5
      %v1546 = vmul.f32 %v1433, 0.5
      %v1547 = vmul.f32 %v1437, 0.5
      %v1548 = vmul.f32 %v1439, 0.5
      %v1549 = vmul.f32 %v1441, 0.5
      %v1550 = vmul.f32 %v1443, 0.5
      %v1551 = vmul.f32 %v1447, 0.5
      %v1552 = vmul.f32 %v1449, 0.5
      %v1553 = vmul.f32 %v1451, 0.5
      %v1554 = vmul.f32 %v1453, 0.5
      %v1555 = vmul.f32 %v1457, 0.5
      %v1556 = vmul.f32 %v1459, 0.5
      %v1557 = vmul.f32 %v1461, 0.5
      %v1558 = vmul.f32 %v1463, 0.5
      %v1559 = vmul.f32 %v1467, 0.5
      %v1560 = vmul.f32 %v1469, 0.5
      %v1561 = vmul.f32 %v1471, 0.5
      %v1562 = vmul.f32 %v1473, 0.5
      %v1563 = vmul.f32 %v1477, 0.5
      %v1564 = vmul.f32 %v1479, 0.5
      %v1565 = vmul.f32 %v1481, 0.5
      %v1566 = vmul.f32 %v1483, 0.5
      %v1567 = vmul.f32 %v1487, 0.5
      %v1568 = vmul.f32 %v1489, 0.5
      %v1569 = vmul.f32 %v1491, 0.5
      %v1570 = vmul.f32 %v1493, 0.5
      %v1571 = vmul.f32 %v1497, 0.5
      %v1572 = vmul.f32 %v1499, 0.5
      %v1573 = vmul.f32 %v1501, 0.5
      %v1574 = vmul.f32 %v1503, 0.5
      %v1575 = vmul.f32 %v1507, 0.5
      %v1576 = vmul.f32 %v1509, 0.5
      %v1577 = vmul.f32 %v1511, 0.5
      %v1578 = vmul.f32 %v1513, 0.5
      %v1579 = vtanh.pop %v1515
      %v1580 = vtanh.pop %v1516
      %v1581 = vtanh.pop %v1517
      %v1582 = vtanh.pop %v1518
      %v1583 = vtanh.pop %v1519
      %v1584 = vtanh.pop %v1520
      %v1585 = vtanh.pop %v1521
      %v1586 = vtanh.pop %v1522
      %v1587 = vtanh.pop %v1523
      %v1588 = vtanh.pop %v1524
      %v1589 = vtanh.pop %v1525
      %v1590 = vtanh.pop %v1526
      %v1591 = vtanh.pop %v1527
      %v1592 = vtanh.pop %v1528
      %v1593 = vtanh.pop %v1529
      %v1594 = vtanh.pop %v1530
      %v1595 = vtanh.pop %v1531
      %v1596 = vtanh.pop %v1532
      %v1597 = vtanh.pop %v1533
      %v1598 = vtanh.pop %v1534
      %v1599 = vtanh.pop %v1535
      %v1600 = vtanh.pop %v1536
      %v1601 = vtanh.pop %v1537
      %v1602 = vtanh.pop %v1538
      %v1603 = vtanh.pop %v1539
      %v1604 = vtanh.pop %v1540
      %v1605 = vtanh.pop %v1541
      %v1606 = vtanh.pop %v1542
      %v1607 = vtanh.pop %v1543
      %v1608 = vtanh.pop %v1544
      %v1609 = vtanh.pop %v1545
      %v1610 = vtanh.pop %v1546
      %v1611 = vtanh.pop %v1547
      %v1612 = vtanh.pop %v1548
      %v1613 = vtanh.pop %v1549
      %v1614 = vtanh.pop %v1550
      %v1615 = vtanh.pop %v1551
      %v1616 = vtanh.pop %v1552
      %v1617 = vtanh.pop %v1553
      %v1618 = vtanh.pop %v1554
      %v1619 = vtanh.pop %v1555
      %v1620 = vtanh.pop %v1556
      %v1621 = vtanh.pop %v1557
      %v1622 = vtanh.pop %v1558
      %v1623 = vtanh.pop %v1559
      %v1624 = vtanh.pop %v1560
      %v1625 = vtanh.pop %v1561
      %v1626 = vtanh.pop %v1562
      %v1627 = vtanh.pop %v1563
      %v1628 = vtanh.pop %v1564
      %v1629 = vtanh.pop %v1565
      %v1630 = vtanh.pop %v1566
      %v1631 = vtanh.pop %v1567
      %v1632 = vtanh.pop %v1568
      %v1633 = vtanh.pop %v1569
      %v1634 = vtanh.pop %v1570
      %v1635 = vtanh.pop %v1571
      %v1636 = vtanh.pop %v1572
      %v1637 = vtanh.pop %v1573
      %v1638 = vtanh.pop %v1574
      %v1639 = vtanh.pop %v1575
      %v1640 = vtanh.pop %v1576
      %v1641 = vtanh.pop %v1577
      %v1642 = vtanh.pop %v1578
      %v1643 = vmul.f32 %v1579, 0.5
      %v1644 = vmul.f32 %v1580, 0.5
      %v1645 = vmul.f32 %v1581, 0.5
      %v1646 = vmul.f32 %v1582, 0.5
      %v1647 = vmul.f32 %v1583, 0.5
      %v1648 = vmul.f32 %v1584, 0.5
      %v1649 = vmul.f32 %v1585, 0.5
      %v1650 = vmul.f32 %v1586, 0.5
      %v1651 = vmul.f32 %v1587, 0.5
      %v1652 = vmul.f32 %v1588, 0.5
      %v1653 = vmul.f32 %v1589, 0.5
      %v1654 = vmul.f32 %v1590, 0.5
      %v1655 = vmul.f32 %v1591, 0.5
      %v1656 = vmul.f32 %v1592, 0.5
      %v1657 = vmul.f32 %v1593, 0.5
      %v1658 = vmul.f32 %v1594, 0.5
      %v1659 = vmul.f32 %v1595, 0.5
      %v1660 = vmul.f32 %v1596, 0.5
      %v1661 = vmul.f32 %v1597, 0.5
      %v1662 = vmul.f32 %v1598, 0.5
      %v1663 = vmul.f32 %v1599, 0.5
      %v1664 = vmul.f32 %v1600, 0.5
      %v1665 = vmul.f32 %v1601, 0.5
      %v1666 = vmul.f32 %v1602, 0.5
      %v1667 = vmul.f32 %v1603, 0.5
      %v1668 = vmul.f32 %v1604, 0.5
      %v1669 = vmul.f32 %v1605, 0.5
      %v1670 = vmul.f32 %v1606, 0.5
      %v1671 = vmul.f32 %v1607, 0.5
      %v1672 = vmul.f32 %v1608, 0.5
      %v1673 = vmul.f32 %v1609, 0.5
      %v1674 = vmul.f32 %v1610, 0.5
      %v1675 = vmul.f32 %v1611, 0.5
      %v1676 = vmul.f32 %v1612, 0.5
      %v1677 = vmul.f32 %v1613, 0.5
      %v1678 = vmul.f32 %v1614, 0.5
      %v1679 = vmul.f32 %v1615, 0.5
      %v1680 = vmul.f32 %v1616, 0.5
      %v1681 = vmul.f32 %v1617, 0.5
      %v1682 = vmul.f32 %v1618, 0.5
      %v1683 = vmul.f32 %v1619, 0.5
      %v1684 = vmul.f32 %v1620, 0.5
      %v1685 = vmul.f32 %v1621, 0.5
      %v1686 = vmul.f32 %v1622, 0.5
      %v1687 = vmul.f32 %v1623, 0.5
      %v1688 = vmul.f32 %v1624, 0.5
      %v1689 = vmul.f32 %v1625, 0.5
      %v1690 = vmul.f32 %v1626, 0.5
      %v1691 = vmul.f32 %v1627, 0.5
      %v1692 = vmul.f32 %v1628, 0.5
      %v1693 = vmul.f32 %v1629, 0.5
      %v1694 = vmul.f32 %v1630, 0.5
      %v1695 = vmul.f32 %v1631, 0.5
      %v1696 = vmul.f32 %v1632, 0.5
      %v1697 = vmul.f32 %v1633, 0.5
      %v1698 = vmul.f32 %v1634, 0.5
      %v1699 = vmul.f32 %v1635, 0.5
      %v1700 = vmul.f32 %v1636, 0.5
      %v1701 = vmul.f32 %v1637, 0.5
      %v1702 = vmul.f32 %v1638, 0.5
      %v1703 = vmul.f32 %v1639, 0.5
      %v1704 = vmul.f32 %v1640, 0.5
      %v1705 = vmul.f32 %v1641, 0.5
      %v1706 = vmul.f32 %v1642, 0.5
      %v1707 = vadd.f32 %v1643, 0.5
      %v1708 = vadd.f32 %v1644, 0.5
      %v1709 = vadd.f32 %v1645, 0.5
      %v1710 = vadd.f32 %v1646, 0.5
      %v1711 = vadd.f32 %v1647, 0.5
      %v1712 = vadd.f32 %v1648, 0.5
      %v1713 = vadd.f32 %v1649, 0.5
      %v1714 = vadd.f32 %v1650, 0.5
      %v1715 = vadd.f32 %v1651, 0.5
      %v1716 = vadd.f32 %v1652, 0.5
      %v1717 = vadd.f32 %v1653, 0.5
      %v1718 = vadd.f32 %v1654, 0.5
      %v1719 = vadd.f32 %v1655, 0.5
      %v1720 = vadd.f32 %v1656, 0.5
      %v1721 = vadd.f32 %v1657, 0.5
      %v1722 = vadd.f32 %v1658, 0.5
      %v1723 = vadd.f32 %v1659, 0.5
      %v1724 = vadd.f32 %v1660, 0.5
      %v1725 = vadd.f32 %v1661, 0.5
      %v1726 = vadd.f32 %v1662, 0.5
      %v1727 = vadd.f32 %v1663, 0.5
      %v1728 = vadd.f32 %v1664, 0.5
      %v1729 = vadd.f32 %v1665, 0.5
      %v1730 = vadd.f32 %v1666, 0.5
      %v1731 = vadd.f32 %v1667, 0.5
      %v1732 = vadd.f32 %v1668, 0.5
      %v1733 = vadd.f32 %v1669, 0.5
      %v1734 = vadd.f32 %v1670, 0.5
      %v1735 = vadd.f32 %v1671, 0.5
      %v1736 = vadd.f32 %v1672, 0.5
      %v1737 = vadd.f32 %v1673, 0.5
      %v1738 = vadd.f32 %v1674, 0.5
      %v1739 = vadd.f32 %v1675, 0.5
      %v1740 = vadd.f32 %v1676, 0.5
      %v1741 = vadd.f32 %v1677, 0.5
      %v1742 = vadd.f32 %v1678, 0.5
      %v1743 = vadd.f32 %v1679, 0.5
      %v1744 = vadd.f32 %v1680, 0.5
      %v1745 = vadd.f32 %v1681, 0.5
      %v1746 = vadd.f32 %v1682, 0.5
      %v1747 = vadd.f32 %v1683, 0.5
      %v1748 = vadd.f32 %v1684, 0.5
      %v1749 = vadd.f32 %v1685, 0.5
      %v1750 = vadd.f32 %v1686, 0.5
      %v1751 = vadd.f32 %v1687, 0.5
      %v1752 = vadd.f32 %v1688, 0.5
      %v1753 = vadd.f32 %v1689, 0.5
      %v1754 = vadd.f32 %v1690, 0.5
      %v1755 = vadd.f32 %v1691, 0.5
      %v1756 = vadd.f32 %v1692, 0.5
      %v1757 = vadd.f32 %v1693, 0.5
      %v1758 = vadd.f32 %v1694, 0.5
      %v1759 = vadd.f32 %v1695, 0.5
      %v1760 = vadd.f32 %v1696, 0.5
      %v1761 = vadd.f32 %v1697, 0.5
      %v1762 = vadd.f32 %v1698, 0.5
      %v1763 = vadd.f32 %v1699, 0.5
      %v1764 = vadd.f32 %v1700, 0.5
      %v1765 = vadd.f32 %v1701, 0.5
      %v1766 = vadd.f32 %v1702, 0.5
      %v1767 = vadd.f32 %v1703, 0.5
      %v1768 = vadd.f32 %v1704, 0.5
      %v1769 = vadd.f32 %v1705, 0.5
      %v1770 = vadd.f32 %v1706, 0.5
      %v1771 = vpack.c.bf16 %v1709, %v1707
      %v1772 = vpack.c.bf16 %v1710, %v1708
      %v1773 = vpack.c.bf16 %v1713, %v1711
      %v1774 = vpack.c.bf16 %v1714, %v1712
      %v1775 = vpack.c.bf16 %v1717, %v1715
      %v1776 = vpack.c.bf16 %v1718, %v1716
      %v1777 = vpack.c.bf16 %v1721, %v1719
      %v1778 = vpack.c.bf16 %v1722, %v1720
      %v1779 = vpack.c.bf16 %v1725, %v1723
      %v1780 = vpack.c.bf16 %v1726, %v1724
      %v1781 = vpack.c.bf16 %v1729, %v1727
      %v1782 = vpack.c.bf16 %v1730, %v1728
      %v1783 = vpack.c.bf16 %v1733, %v1731
      %v1784 = vpack.c.bf16 %v1734, %v1732
      %v1785 = vpack.c.bf16 %v1737, %v1735
      %v1786 = vpack.c.bf16 %v1738, %v1736
      %v1787 = vpack.c.bf16 %v1741, %v1739
      %v1788 = vpack.c.bf16 %v1742, %v1740
      %v1789 = vpack.c.bf16 %v1745, %v1743
      %v1790 = vpack.c.bf16 %v1746, %v1744
      %v1791 = vpack.c.bf16 %v1749, %v1747
      %v1792 = vpack.c.bf16 %v1750, %v1748
      %v1793 = vpack.c.bf16 %v1753, %v1751
      %v1794 = vpack.c.bf16 %v1754, %v1752
      %v1795 = vpack.c.bf16 %v1757, %v1755
      %v1796 = vpack.c.bf16 %v1758, %v1756
      %v1797 = vpack.c.bf16 %v1761, %v1759
      %v1798 = vpack.c.bf16 %v1762, %v1760
      %v1799 = vpack.c.bf16 %v1765, %v1763
      %v1800 = vpack.c.bf16 %v1766, %v1764
      %v1801 = vpack.c.bf16 %v1769, %v1767
      %v1802 = vpack.c.bf16 %v1770, %v1768
      %v1803 = vld [vmem:[%s2] sm:$0xf]
      %v1804 = vld [vmem:[%s2 + $0x4] sm:$0xf]
      %v1805 = vld [vmem:[%s2 + $0x8] sm:$0xf]
      %v1806 = vld [vmem:[%s2 + $0xc] sm:$0xf]
      %v1807 = vld [vmem:[%s2 + $0x10] sm:$0xf]
      %v1808 = vld [vmem:[%s2 + $0x14] sm:$0xf]
      %v1809 = vld [vmem:[%s2 + $0x18] sm:$0xf]
      %v1810 = vld [vmem:[%s2 + $0x1c] sm:$0xf]
      %v1811 = vld [vmem:[%s2 + $0x20] sm:$0xf]
      %v1812 = vld [vmem:[%s2 + $0x24] sm:$0xf]
      %v1813 = vld [vmem:[%s2 + $0x28] sm:$0xf]
      %v1814 = vld [vmem:[%s2 + $0x2c] sm:$0xf]
      %v1815 = vld [vmem:[%s2 + $0x30] sm:$0xf]
      %v1816 = vld [vmem:[%s2 + $0x34] sm:$0xf]
      %v1817 = vld [vmem:[%s2 + $0x38] sm:$0xf]
      %v1818 = vld [vmem:[%s2 + $0x3c] sm:$0xf]
      %v1819 = vld [vmem:[%s2 + $0x40] sm:$0xf]
      %v1820 = vld [vmem:[%s2 + $0x44] sm:$0xf]
      %v1821 = vld [vmem:[%s2 + $0x48] sm:$0xf]
      %v1822 = vld [vmem:[%s2 + $0x4c] sm:$0xf]
      %v1823 = vld [vmem:[%s2 + $0x50] sm:$0xf]
      %v1824 = vld [vmem:[%s2 + $0x54] sm:$0xf]
      %v1825 = vld [vmem:[%s2 + $0x58] sm:$0xf]
      %v1826 = vld [vmem:[%s2 + $0x5c] sm:$0xf]
      %v1827 = vld [vmem:[%s2 + $0x60] sm:$0xf]
      %v1828 = vld [vmem:[%s2 + $0x64] sm:$0xf]
      %v1829 = vld [vmem:[%s2 + $0x68] sm:$0xf]
      %v1830 = vld [vmem:[%s2 + $0x6c] sm:$0xf]
      %v1831 = vld [vmem:[%s2 + $0x70] sm:$0xf]
      %v1832 = vld [vmem:[%s2 + $0x74] sm:$0xf]
      %v1833 = vld [vmem:[%s2 + $0x78] sm:$0xf]
      %v1834 = vld [vmem:[%s2 + $0x7c] sm:$0xf]
      %v1835 = vld [vmem:[%s8] sm:$0x1]
      %v1837 = vlaneseq
      %v1838 = vshrl.u32 %v1837, 7
      %v1839 = vsub.s32 0, %v1838
      %v1840 = vrot.slane %v1835, %v1839
      %v1874 = vunpack.c.l.b16 %v1803
      %v1875 = vunpack.c.l.b16 %v1804
      %v1876 = vunpack.c.l.b16 %v1805
      %v1877 = vunpack.c.l.b16 %v1806
      %v1878 = vunpack.c.l.b16 %v1807
      %v1879 = vunpack.c.l.b16 %v1808
      %v1880 = vunpack.c.l.b16 %v1809
      %v1881 = vunpack.c.l.b16 %v1810
      %v1882 = vunpack.c.l.b16 %v1811
      %v1883 = vunpack.c.l.b16 %v1812
      %v1884 = vunpack.c.l.b16 %v1813
      %v1885 = vunpack.c.l.b16 %v1814
      %v1886 = vunpack.c.l.b16 %v1815
      %v1887 = vunpack.c.l.b16 %v1816
      %v1888 = vunpack.c.l.b16 %v1817
      %v1889 = vunpack.c.l.b16 %v1818
      %v1890 = vunpack.c.l.b16 %v1819
      %v1891 = vunpack.c.l.b16 %v1820
      %v1892 = vunpack.c.l.b16 %v1821
      %v1893 = vunpack.c.l.b16 %v1822
      %v1894 = vunpack.c.l.b16 %v1823
      %v1895 = vunpack.c.l.b16 %v1824
      %v1896 = vunpack.c.l.b16 %v1825
      %v1897 = vunpack.c.l.b16 %v1826
      %v1898 = vunpack.c.l.b16 %v1827
      %v1899 = vunpack.c.l.b16 %v1828
      %v1900 = vunpack.c.l.b16 %v1829
      %v1901 = vunpack.c.l.b16 %v1830
      %v1902 = vunpack.c.l.b16 %v1831
      %v1903 = vunpack.c.l.b16 %v1832
      %v1904 = vunpack.c.l.b16 %v1833
      %v1905 = vunpack.c.l.b16 %v1834
      %v1906 = vpack.c.b16 %v1875, %v1874
      %v1907 = vpack.c.b16 %v1877, %v1876
      %v1908 = vpack.c.b16 %v1879, %v1878
      %v1909 = vpack.c.b16 %v1881, %v1880
      %v1910 = vpack.c.b16 %v1883, %v1882
      %v1911 = vpack.c.b16 %v1885, %v1884
      %v1912 = vpack.c.b16 %v1887, %v1886
      %v1913 = vpack.c.b16 %v1889, %v1888
      %v1914 = vpack.c.b16 %v1891, %v1890
      %v1915 = vpack.c.b16 %v1893, %v1892
      %v1916 = vpack.c.b16 %v1895, %v1894
      %v1917 = vpack.c.b16 %v1897, %v1896
      %v1918 = vpack.c.b16 %v1899, %v1898
      %v1919 = vpack.c.b16 %v1901, %v1900
      %v1920 = vpack.c.b16 %v1903, %v1902
      %v1921 = vpack.c.b16 %v1905, %v1904
      %1938 = vmatprep.subr.bf16.mxu0 0
      %1939 = vmatpush1.bf16.msra.mxu0 %v1913
      %1940 = vmatprep.subr.bf16.mxu0 0
      %1941 = vmatpush1.bf16.msra.mxu0 %v1912
      %1942 = vmatprep.subr.bf16.mxu0 0
      %1943 = vmatpush1.bf16.msra.mxu0 %v1911
      %1944 = vmatprep.subr.bf16.mxu0 0
      %1945 = vmatpush1.bf16.msra.mxu0 %v1910
      %1946 = vmatprep.subr.bf16.mxu0 0
      %1947 = vmatpush1.bf16.msra.mxu0 %v1909
      %1948 = vmatprep.subr.bf16.mxu0 0
      %1949 = vmatpush1.bf16.msra.mxu0 %v1908
      %1950 = vmatprep.subr.bf16.mxu0 0
      %1951 = vmatpush1.bf16.msra.mxu0 %v1907
      %1952 = vmatprep.subr.bf16.mxu0 0
      %1953 = vmatpush1.bf16.msra.mxu0 %v1906
      %1954 = vmatprep.subr.bf16.mxu0 0
      %1955 = vmatpush2.bf16.msra.mxu0 %v1921
      %1956 = vmatprep.subr.bf16.mxu0 0
      %1957 = vmatpush2.bf16.msra.mxu0 %v1920
      %1958 = vmatprep.subr.bf16.mxu0 0
      %1959 = vmatpush2.bf16.msra.mxu0 %v1919
      %1960 = vmatprep.subr.bf16.mxu0 0
      %1961 = vmatpush2.bf16.msra.mxu0 %v1918
      %1962 = vmatprep.subr.bf16.mxu0 0
      %1963 = vmatpush2.bf16.msra.mxu0 %v1917
      %1964 = vmatprep.subr.bf16.mxu0 0
      %1965 = vmatpush2.bf16.msra.mxu0 %v1916
      %1966 = vmatprep.subr.bf16.mxu0 0
      %1967 = vmatpush2.bf16.msra.mxu0 %v1915
      %1968 = vmatprep.subr.bf16.mxu0 0
      %1969 = vmatpush2.bf16.msra.mxu0 %v1914
      %1970 = vmatprep.mubr.bf16.mxu0 %v1772
      %1971 = vmatmul.mubr.bf16.gmra.mxu0 %v1771
      %v1972 = vpop.f32.mrf.mxu0
      %v1973 = vadd.f32 %v1840, %v1972
      %v1974 = vpop.f32.mrf.mxu0
      %v1975 = vpop.f32.mrf.mxu0
      %v1976 = vadd.f32 %v1840, %v1975
      %v1977 = vpop.f32.mrf.mxu0
      %1978 = vmatprep.mubr.bf16.mxu0 %v1774
      %1979 = vmatmul.mubr.bf16.gmra.mxu0 %v1773
      %v1980 = vpop.f32.mrf.mxu0
      %v1981 = vadd.f32 %v1840, %v1980
      %v1982 = vpop.f32.mrf.mxu0
      %v1983 = vpop.f32.mrf.mxu0
      %v1984 = vadd.f32 %v1840, %v1983
      %v1985 = vpop.f32.mrf.mxu0
      %1986 = vmatprep.mubr.bf16.mxu0 %v1776
      %1987 = vmatmul.mubr.bf16.gmra.mxu0 %v1775
      %v1988 = vpop.f32.mrf.mxu0
      %v1989 = vadd.f32 %v1840, %v1988
      %v1990 = vpop.f32.mrf.mxu0
      %v1991 = vpop.f32.mrf.mxu0
      %v1992 = vadd.f32 %v1840, %v1991
      %v1993 = vpop.f32.mrf.mxu0
      %1994 = vmatprep.mubr.bf16.mxu0 %v1778
      %1995 = vmatmul.mubr.bf16.gmra.mxu0 %v1777
      %v1996 = vpop.f32.mrf.mxu0
      %v1997 = vadd.f32 %v1840, %v1996
      %v1998 = vpop.f32.mrf.mxu0
      %v1999 = vpop.f32.mrf.mxu0
      %v2000 = vadd.f32 %v1840, %v1999
      %v2001 = vpop.f32.mrf.mxu0
      %2002 = vmatprep.mubr.bf16.mxu0 %v1780
      %2003 = vmatmul.mubr.bf16.gmra.mxu0 %v1779
      %v2004 = vpop.f32.mrf.mxu0
      %v2005 = vadd.f32 %v1840, %v2004
      %v2006 = vpop.f32.mrf.mxu0
      %v2007 = vpop.f32.mrf.mxu0
      %v2008 = vadd.f32 %v1840, %v2007
      %v2009 = vpop.f32.mrf.mxu0
      %2010 = vmatprep.mubr.bf16.mxu0 %v1782
      %2011 = vmatmul.mubr.bf16.gmra.mxu0 %v1781
      %v2012 = vpop.f32.mrf.mxu0
      %v2013 = vadd.f32 %v1840, %v2012
      %v2014 = vpop.f32.mrf.mxu0
      %v2015 = vpop.f32.mrf.mxu0
      %v2016 = vadd.f32 %v1840, %v2015
      %v2017 = vpop.f32.mrf.mxu0
      %2018 = vmatprep.mubr.bf16.mxu0 %v1784
      %2019 = vmatmul.mubr.bf16.gmra.mxu0 %v1783
      %v2020 = vpop.f32.mrf.mxu0
      %v2021 = vadd.f32 %v1840, %v2020
      %v2022 = vpop.f32.mrf.mxu0
      %v2023 = vpop.f32.mrf.mxu0
      %v2024 = vadd.f32 %v1840, %v2023
      %v2025 = vpop.f32.mrf.mxu0
      %2026 = vmatprep.mubr.bf16.mxu0 %v1786
      %2027 = vmatmul.mubr.bf16.gmra.mxu0 %v1785
      %v2028 = vpop.f32.mrf.mxu0
      %v2029 = vadd.f32 %v1840, %v2028
      %v2030 = vpop.f32.mrf.mxu0
      %v2031 = vpop.f32.mrf.mxu0
      %v2032 = vadd.f32 %v1840, %v2031
      %v2033 = vpop.f32.mrf.mxu0
      %2034 = vmatprep.mubr.bf16.mxu0 %v1788
      %2035 = vmatmul.mubr.bf16.gmra.mxu0 %v1787
      %v2036 = vpop.f32.mrf.mxu0
      %v2037 = vadd.f32 %v1840, %v2036
      %v2038 = vpop.f32.mrf.mxu0
      %v2039 = vpop.f32.mrf.mxu0
      %v2040 = vadd.f32 %v1840, %v2039
      %v2041 = vpop.f32.mrf.mxu0
      %2042 = vmatprep.mubr.bf16.mxu0 %v1790
      %2043 = vmatmul.mubr.bf16.gmra.mxu0 %v1789
      %v2044 = vpop.f32.mrf.mxu0
      %v2045 = vadd.f32 %v1840, %v2044
      %v2046 = vpop.f32.mrf.mxu0
      %v2047 = vpop.f32.mrf.mxu0
      %v2048 = vadd.f32 %v1840, %v2047
      %v2049 = vpop.f32.mrf.mxu0
      %2050 = vmatprep.mubr.bf16.mxu0 %v1792
      %2051 = vmatmul.mubr.bf16.gmra.mxu0 %v1791
      %v2052 = vpop.f32.mrf.mxu0
      %v2053 = vadd.f32 %v1840, %v2052
      %v2054 = vpop.f32.mrf.mxu0
      %v2055 = vpop.f32.mrf.mxu0
      %v2056 = vadd.f32 %v1840, %v2055
      %v2057 = vpop.f32.mrf.mxu0
      %2058 = vmatprep.mubr.bf16.mxu0 %v1794
      %2059 = vmatmul.mubr.bf16.gmra.mxu0 %v1793
      %v2060 = vpop.f32.mrf.mxu0
      %v2061 = vadd.f32 %v1840, %v2060
      %v2062 = vpop.f32.mrf.mxu0
      %v2063 = vpop.f32.mrf.mxu0
      %v2064 = vadd.f32 %v1840, %v2063
      %v2065 = vpop.f32.mrf.mxu0
      %2066 = vmatprep.mubr.bf16.mxu0 %v1796
      %2067 = vmatmul.mubr.bf16.gmra.mxu0 %v1795
      %v2068 = vpop.f32.mrf.mxu0
      %v2069 = vadd.f32 %v1840, %v2068
      %v2070 = vpop.f32.mrf.mxu0
      %v2071 = vpop.f32.mrf.mxu0
      %v2072 = vadd.f32 %v1840, %v2071
      %v2073 = vpop.f32.mrf.mxu0
      %2074 = vmatprep.mubr.bf16.mxu0 %v1798
      %2075 = vmatmul.mubr.bf16.gmra.mxu0 %v1797
      %v2076 = vpop.f32.mrf.mxu0
      %v2077 = vadd.f32 %v1840, %v2076
      %v2078 = vpop.f32.mrf.mxu0
      %v2079 = vpop.f32.mrf.mxu0
      %v2080 = vadd.f32 %v1840, %v2079
      %v2081 = vpop.f32.mrf.mxu0
      %2082 = vmatprep.mubr.bf16.mxu0 %v1800
      %2083 = vmatmul.mubr.bf16.gmra.mxu0 %v1799
      %v2084 = vpop.f32.mrf.mxu0
      %v2085 = vadd.f32 %v1840, %v2084
      %v2086 = vpop.f32.mrf.mxu0
      %v2087 = vpop.f32.mrf.mxu0
      %v2088 = vadd.f32 %v1840, %v2087
      %v2089 = vpop.f32.mrf.mxu0
      %2090 = vmatprep.mubr.bf16.mxu0 %v1802
      %2091 = vmatmul.mubr.bf16.gmra.mxu0 %v1801
      %v2092 = vpop.f32.mrf.mxu0
      %v2093 = vadd.f32 %v1840, %v2092
      %v2094 = vpop.f32.mrf.mxu0
      %v2095 = vpop.f32.mrf.mxu0
      %v2096 = vadd.f32 %v1840, %v2095
      %v2097 = vpop.f32.mrf.mxu0
      %2098 = vdwg.mxu0
      %v2099 = vmul.f32 %v1973, 0.5
      %v2100 = vmul.f32 %v1976, 0.5
      %v2101 = vmul.f32 %v1981, 0.5
      %v2102 = vmul.f32 %v1984, 0.5
      %v2103 = vmul.f32 %v1989, 0.5
      %v2104 = vmul.f32 %v1992, 0.5
      %v2105 = vmul.f32 %v1997, 0.5
      %v2106 = vmul.f32 %v2000, 0.5
      %v2107 = vmul.f32 %v2005, 0.5
      %v2108 = vmul.f32 %v2008, 0.5
      %v2109 = vmul.f32 %v2013, 0.5
      %v2110 = vmul.f32 %v2016, 0.5
      %v2111 = vmul.f32 %v2021, 0.5
      %v2112 = vmul.f32 %v2024, 0.5
      %v2113 = vmul.f32 %v2029, 0.5
      %v2114 = vmul.f32 %v2032, 0.5
      %v2115 = vmul.f32 %v2037, 0.5
      %v2116 = vmul.f32 %v2040, 0.5
      %v2117 = vmul.f32 %v2045, 0.5
      %v2118 = vmul.f32 %v2048, 0.5
      %v2119 = vmul.f32 %v2053, 0.5
      %v2120 = vmul.f32 %v2056, 0.5
      %v2121 = vmul.f32 %v2061, 0.5
      %v2122 = vmul.f32 %v2064, 0.5
      %v2123 = vmul.f32 %v2069, 0.5
      %v2124 = vmul.f32 %v2072, 0.5
      %v2125 = vmul.f32 %v2077, 0.5
      %v2126 = vmul.f32 %v2080, 0.5
      %v2127 = vmul.f32 %v2085, 0.5
      %v2128 = vmul.f32 %v2088, 0.5
      %v2129 = vmul.f32 %v2093, 0.5
      %v2130 = vmul.f32 %v2096, 0.5
      %v2131 = vtanh.pop %v2099
      %v2132 = vtanh.pop %v2100
      %v2133 = vtanh.pop %v2101
      %v2134 = vtanh.pop %v2102
      %v2135 = vtanh.pop %v2103
      %v2136 = vtanh.pop %v2104
      %v2137 = vtanh.pop %v2105
      %v2138 = vtanh.pop %v2106
      %v2139 = vtanh.pop %v2107
      %v2140 = vtanh.pop %v2108
      %v2141 = vtanh.pop %v2109
      %v2142 = vtanh.pop %v2110
      %v2143 = vtanh.pop %v2111
      %v2144 = vtanh.pop %v2112
      %v2145 = vtanh.pop %v2113
      %v2146 = vtanh.pop %v2114
      %v2147 = vtanh.pop %v2115
      %v2148 = vtanh.pop %v2116
      %v2149 = vtanh.pop %v2117
      %v2150 = vtanh.pop %v2118
      %v2151 = vtanh.pop %v2119
      %v2152 = vtanh.pop %v2120
      %v2153 = vtanh.pop %v2121
      %v2154 = vtanh.pop %v2122
      %v2155 = vtanh.pop %v2123
      %v2156 = vtanh.pop %v2124
      %v2157 = vtanh.pop %v2125
      %v2158 = vtanh.pop %v2126
      %v2159 = vtanh.pop %v2127
      %v2160 = vtanh.pop %v2128
      %v2161 = vtanh.pop %v2129
      %v2162 = vtanh.pop %v2130
      %v2163 = vmul.f32 %v2131, 0.5
      %v2164 = vmul.f32 %v2132, 0.5
      %v2165 = vmul.f32 %v2133, 0.5
      %v2166 = vmul.f32 %v2134, 0.5
      %v2167 = vmul.f32 %v2135, 0.5
      %v2168 = vmul.f32 %v2136, 0.5
      %v2169 = vmul.f32 %v2137, 0.5
      %v2170 = vmul.f32 %v2138, 0.5
      %v2171 = vmul.f32 %v2139, 0.5
      %v2172 = vmul.f32 %v2140, 0.5
      %v2173 = vmul.f32 %v2141, 0.5
      %v2174 = vmul.f32 %v2142, 0.5
      %v2175 = vmul.f32 %v2143, 0.5
      %v2176 = vmul.f32 %v2144, 0.5
      %v2177 = vmul.f32 %v2145, 0.5
      %v2178 = vmul.f32 %v2146, 0.5
      %v2179 = vmul.f32 %v2147, 0.5
      %v2180 = vmul.f32 %v2148, 0.5
      %v2181 = vmul.f32 %v2149, 0.5
      %v2182 = vmul.f32 %v2150, 0.5
      %v2183 = vmul.f32 %v2151, 0.5
      %v2184 = vmul.f32 %v2152, 0.5
      %v2185 = vmul.f32 %v2153, 0.5
      %v2186 = vmul.f32 %v2154, 0.5
      %v2187 = vmul.f32 %v2155, 0.5
      %v2188 = vmul.f32 %v2156, 0.5
      %v2189 = vmul.f32 %v2157, 0.5
      %v2190 = vmul.f32 %v2158, 0.5
      %v2191 = vmul.f32 %v2159, 0.5
      %v2192 = vmul.f32 %v2160, 0.5
      %v2193 = vmul.f32 %v2161, 0.5
      %v2194 = vmul.f32 %v2162, 0.5
      %v2195 = vadd.f32 %v2163, 0.5
      %v2196 = vadd.f32 %v2164, 0.5
      %v2197 = vadd.f32 %v2165, 0.5
      %v2198 = vadd.f32 %v2166, 0.5
      %v2199 = vadd.f32 %v2167, 0.5
      %v2200 = vadd.f32 %v2168, 0.5
      %v2201 = vadd.f32 %v2169, 0.5
      %v2202 = vadd.f32 %v2170, 0.5
      %v2203 = vadd.f32 %v2171, 0.5
      %v2204 = vadd.f32 %v2172, 0.5
      %v2205 = vadd.f32 %v2173, 0.5
      %v2206 = vadd.f32 %v2174, 0.5
      %v2207 = vadd.f32 %v2175, 0.5
      %v2208 = vadd.f32 %v2176, 0.5
      %v2209 = vadd.f32 %v2177, 0.5
      %v2210 = vadd.f32 %v2178, 0.5
      %v2211 = vadd.f32 %v2179, 0.5
      %v2212 = vadd.f32 %v2180, 0.5
      %v2213 = vadd.f32 %v2181, 0.5
      %v2214 = vadd.f32 %v2182, 0.5
      %v2215 = vadd.f32 %v2183, 0.5
      %v2216 = vadd.f32 %v2184, 0.5
      %v2217 = vadd.f32 %v2185, 0.5
      %v2218 = vadd.f32 %v2186, 0.5
      %v2219 = vadd.f32 %v2187, 0.5
      %v2220 = vadd.f32 %v2188, 0.5
      %v2221 = vadd.f32 %v2189, 0.5
      %v2222 = vadd.f32 %v2190, 0.5
      %v2223 = vadd.f32 %v2191, 0.5
      %v2224 = vadd.f32 %v2192, 0.5
      %v2225 = vadd.f32 %v2193, 0.5
      %v2226 = vadd.f32 %v2194, 0.5
      %v2227 = vpack.c.bf16 %v2196, %v2195
      %v2228 = vpack.c.bf16 %v2198, %v2197
      %v2229 = vpack.c.bf16 %v2200, %v2199
      %v2230 = vpack.c.bf16 %v2202, %v2201
      %v2231 = vpack.c.bf16 %v2204, %v2203
      %v2232 = vpack.c.bf16 %v2206, %v2205
      %v2233 = vpack.c.bf16 %v2208, %v2207
      %v2234 = vpack.c.bf16 %v2210, %v2209
      %v2235 = vpack.c.bf16 %v2212, %v2211
      %v2236 = vpack.c.bf16 %v2214, %v2213
      %v2237 = vpack.c.bf16 %v2216, %v2215
      %v2238 = vpack.c.bf16 %v2218, %v2217
      %v2239 = vpack.c.bf16 %v2220, %v2219
      %v2240 = vpack.c.bf16 %v2222, %v2221
      %v2241 = vpack.c.bf16 %v2224, %v2223
      %v2242 = vpack.c.bf16 %v2226, %v2225
      %v2243 = vld [vmem:[%s3] sm:$0xf]
      %v2244 = vld [vmem:[%s3 + $0x4] sm:$0xf]
      %v2245 = vld [vmem:[%s3 + $0x8] sm:$0xf]
      %v2246 = vld [vmem:[%s3 + $0xc] sm:$0xf]
      %v2247 = vld [vmem:[%s3 + $0x10] sm:$0xf]
      %v2248 = vld [vmem:[%s3 + $0x14] sm:$0xf]
      %v2249 = vld [vmem:[%s3 + $0x18] sm:$0xf]
      %v2250 = vld [vmem:[%s3 + $0x1c] sm:$0xf]
      %v2251 = vld [vmem:[%s3 + $0x20] sm:$0xf]
      %v2252 = vld [vmem:[%s3 + $0x24] sm:$0xf]
      %v2253 = vld [vmem:[%s3 + $0x28] sm:$0xf]
      %v2254 = vld [vmem:[%s3 + $0x2c] sm:$0xf]
      %v2255 = vld [vmem:[%s3 + $0x30] sm:$0xf]
      %v2256 = vld [vmem:[%s3 + $0x34] sm:$0xf]
      %v2257 = vld [vmem:[%s3 + $0x38] sm:$0xf]
      %v2258 = vld [vmem:[%s3 + $0x3c] sm:$0xf]
      %v2259 = vld [vmem:[%s9] sm:$0x1]
      %v2261 = vlaneseq
      %v2262 = vshrl.u32 %v2261, 7
      %v2263 = vsub.s32 0, %v2262
      %v2264 = vrot.slane %v2259, %v2263
      %v2282 = vunpack.c.l.b16 %v2243
      %v2283 = vunpack.c.l.b16 %v2244
      %v2284 = vunpack.c.l.b16 %v2245
      %v2285 = vunpack.c.l.b16 %v2246
      %v2286 = vunpack.c.l.b16 %v2247
      %v2287 = vunpack.c.l.b16 %v2248
      %v2288 = vunpack.c.l.b16 %v2249
      %v2289 = vunpack.c.l.b16 %v2250
      %v2290 = vunpack.c.l.b16 %v2251
      %v2291 = vunpack.c.l.b16 %v2252
      %v2292 = vunpack.c.l.b16 %v2253
      %v2293 = vunpack.c.l.b16 %v2254
      %v2294 = vunpack.c.l.b16 %v2255
      %v2295 = vunpack.c.l.b16 %v2256
      %v2296 = vunpack.c.l.b16 %v2257
      %v2297 = vunpack.c.l.b16 %v2258
      %v2298 = vpack.c.b16 %v2283, %v2282
      %v2299 = vpack.c.b16 %v2285, %v2284
      %v2300 = vpack.c.b16 %v2287, %v2286
      %v2301 = vpack.c.b16 %v2289, %v2288
      %v2302 = vpack.c.b16 %v2291, %v2290
      %v2303 = vpack.c.b16 %v2293, %v2292
      %v2304 = vpack.c.b16 %v2295, %v2294
      %v2305 = vpack.c.b16 %v2297, %v2296
      %2314 = vmatprep.subr.bf16.mxu0 0
      %2315 = vmatpush1.bf16.msra.mxu0 %v2305
      %2316 = vmatprep.subr.bf16.mxu0 0
      %2317 = vmatpush1.bf16.msra.mxu0 %v2304
      %2318 = vmatprep.subr.bf16.mxu0 0
      %2319 = vmatpush1.bf16.msra.mxu0 %v2303
      %2320 = vmatprep.subr.bf16.mxu0 0
      %2321 = vmatpush1.bf16.msra.mxu0 %v2302
      %2322 = vmatprep.subr.bf16.mxu0 0
      %2323 = vmatpush1.bf16.msra.mxu0 %v2301
      %2324 = vmatprep.subr.bf16.mxu0 0
      %2325 = vmatpush1.bf16.msra.mxu0 %v2300
      %2326 = vmatprep.subr.bf16.mxu0 0
      %2327 = vmatpush1.bf16.msra.mxu0 %v2299
      %2328 = vmatprep.subr.bf16.mxu0 0
      %2329 = vmatpush1.bf16.msra.mxu0 %v2298
      %2330 = vmatprep.subr.bf16.mxu0 0
      %2331 = vmatpush2.bf16.msra.mxu0 0
      %2332 = vmatprep.subr.bf16.mxu0 0
      %2333 = vmatpush2.bf16.msra.mxu0 0
      %2334 = vmatprep.subr.bf16.mxu0 0
      %2335 = vmatpush2.bf16.msra.mxu0 0
      %2336 = vmatprep.subr.bf16.mxu0 0
      %2337 = vmatpush2.bf16.msra.mxu0 0
      %2338 = vmatprep.subr.bf16.mxu0 0
      %2339 = vmatpush2.bf16.msra.mxu0 0
      %2340 = vmatprep.subr.bf16.mxu0 0
      %2341 = vmatpush2.bf16.msra.mxu0 0
      %2342 = vmatprep.subr.bf16.mxu0 0
      %2343 = vmatpush2.bf16.msra.mxu0 0
      %2344 = vmatprep.subr.bf16.mxu0 0
      %2345 = vmatpush2.bf16.msra.mxu0 0
      %2346 = vmatprep.mubr.bf16.mxu0 0
      %2347 = vmatmul.mubr.bf16.gmra.mxu0 %v2227
      %v2348 = vpop.f32.mrf.mxu0
      %v2349 = vadd.f32 %v2264, %v2348
      %v2350 = vpop.f32.mrf.mxu0
      %v2351 = vpop.f32.mrf.mxu0
      %v2352 = vadd.f32 %v2264, %v2351
      %v2353 = vpop.f32.mrf.mxu0
      %2354 = vmatprep.mubr.bf16.mxu0 0
      %2355 = vmatmul.mubr.bf16.gmra.mxu0 %v2228
      %v2356 = vpop.f32.mrf.mxu0
      %v2357 = vadd.f32 %v2264, %v2356
      %v2358 = vpop.f32.mrf.mxu0
      %v2359 = vpop.f32.mrf.mxu0
      %v2360 = vadd.f32 %v2264, %v2359
      %v2361 = vpop.f32.mrf.mxu0
      %2362 = vmatprep.mubr.bf16.mxu0 0
      %2363 = vmatmul.mubr.bf16.gmra.mxu0 %v2229
      %v2364 = vpop.f32.mrf.mxu0
      %v2365 = vadd.f32 %v2264, %v2364
      %v2366 = vpop.f32.mrf.mxu0
      %v2367 = vpop.f32.mrf.mxu0
      %v2368 = vadd.f32 %v2264, %v2367
      %v2369 = vpop.f32.mrf.mxu0
      %2370 = vmatprep.mubr.bf16.mxu0 0
      %2371 = vmatmul.mubr.bf16.gmra.mxu0 %v2230
      %v2372 = vpop.f32.mrf.mxu0
      %v2373 = vadd.f32 %v2264, %v2372
      %v2374 = vpop.f32.mrf.mxu0
      %v2375 = vpop.f32.mrf.mxu0
      %v2376 = vadd.f32 %v2264, %v2375
      %v2377 = vpop.f32.mrf.mxu0
      %2378 = vmatprep.mubr.bf16.mxu0 0
      %2379 = vmatmul.mubr.bf16.gmra.mxu0 %v2231
      %v2380 = vpop.f32.mrf.mxu0
      %v2381 = vadd.f32 %v2264, %v2380
      %v2382 = vpop.f32.mrf.mxu0
      %v2383 = vpop.f32.mrf.mxu0
      %v2384 = vadd.f32 %v2264, %v2383
      %v2385 = vpop.f32.mrf.mxu0
      %2386 = vmatprep.mubr.bf16.mxu0 0
      %2387 = vmatmul.mubr.bf16.gmra.mxu0 %v2232
      %v2388 = vpop.f32.mrf.mxu0
      %v2389 = vadd.f32 %v2264, %v2388
      %v2390 = vpop.f32.mrf.mxu0
      %v2391 = vpop.f32.mrf.mxu0
      %v2392 = vadd.f32 %v2264, %v2391
      %v2393 = vpop.f32.mrf.mxu0
      %2394 = vmatprep.mubr.bf16.mxu0 0
      %2395 = vmatmul.mubr.bf16.gmra.mxu0 %v2233
      %v2396 = vpop.f32.mrf.mxu0
      %v2397 = vadd.f32 %v2264, %v2396
      %v2398 = vpop.f32.mrf.mxu0
      %v2399 = vpop.f32.mrf.mxu0
      %v2400 = vadd.f32 %v2264, %v2399
      %v2401 = vpop.f32.mrf.mxu0
      %2402 = vmatprep.mubr.bf16.mxu0 0
      %2403 = vmatmul.mubr.bf16.gmra.mxu0 %v2234
      %v2404 = vpop.f32.mrf.mxu0
      %v2405 = vadd.f32 %v2264, %v2404
      %v2406 = vpop.f32.mrf.mxu0
      %v2407 = vpop.f32.mrf.mxu0
      %v2408 = vadd.f32 %v2264, %v2407
      %v2409 = vpop.f32.mrf.mxu0
      %2410 = vmatprep.mubr.bf16.mxu0 0
      %2411 = vmatmul.mubr.bf16.gmra.mxu0 %v2235
      %v2412 = vpop.f32.mrf.mxu0
      %v2413 = vadd.f32 %v2264, %v2412
      %v2414 = vpop.f32.mrf.mxu0
      %v2415 = vpop.f32.mrf.mxu0
      %v2416 = vadd.f32 %v2264, %v2415
      %v2417 = vpop.f32.mrf.mxu0
      %2418 = vmatprep.mubr.bf16.mxu0 0
      %2419 = vmatmul.mubr.bf16.gmra.mxu0 %v2236
      %v2420 = vpop.f32.mrf.mxu0
      %v2421 = vadd.f32 %v2264, %v2420
      %v2422 = vpop.f32.mrf.mxu0
      %v2423 = vpop.f32.mrf.mxu0
      %v2424 = vadd.f32 %v2264, %v2423
      %v2425 = vpop.f32.mrf.mxu0
      %2426 = vmatprep.mubr.bf16.mxu0 0
      %2427 = vmatmul.mubr.bf16.gmra.mxu0 %v2237
      %v2428 = vpop.f32.mrf.mxu0
      %v2429 = vadd.f32 %v2264, %v2428
      %v2430 = vpop.f32.mrf.mxu0
      %v2431 = vpop.f32.mrf.mxu0
      %v2432 = vadd.f32 %v2264, %v2431
      %v2433 = vpop.f32.mrf.mxu0
      %2434 = vmatprep.mubr.bf16.mxu0 0
      %2435 = vmatmul.mubr.bf16.gmra.mxu0 %v2238
      %v2436 = vpop.f32.mrf.mxu0
      %v2437 = vadd.f32 %v2264, %v2436
      %v2438 = vpop.f32.mrf.mxu0
      %v2439 = vpop.f32.mrf.mxu0
      %v2440 = vadd.f32 %v2264, %v2439
      %v2441 = vpop.f32.mrf.mxu0
      %2442 = vmatprep.mubr.bf16.mxu0 0
      %2443 = vmatmul.mubr.bf16.gmra.mxu0 %v2239
      %v2444 = vpop.f32.mrf.mxu0
      %v2445 = vadd.f32 %v2264, %v2444
      %v2446 = vpop.f32.mrf.mxu0
      %v2447 = vpop.f32.mrf.mxu0
      %v2448 = vadd.f32 %v2264, %v2447
      %v2449 = vpop.f32.mrf.mxu0
      %2450 = vmatprep.mubr.bf16.mxu0 0
      %2451 = vmatmul.mubr.bf16.gmra.mxu0 %v2240
      %v2452 = vpop.f32.mrf.mxu0
      %v2453 = vadd.f32 %v2264, %v2452
      %v2454 = vpop.f32.mrf.mxu0
      %v2455 = vpop.f32.mrf.mxu0
      %v2456 = vadd.f32 %v2264, %v2455
      %v2457 = vpop.f32.mrf.mxu0
      %2458 = vmatprep.mubr.bf16.mxu0 0
      %2459 = vmatmul.mubr.bf16.gmra.mxu0 %v2241
      %v2460 = vpop.f32.mrf.mxu0
      %v2461 = vadd.f32 %v2264, %v2460
      %v2462 = vpop.f32.mrf.mxu0
      %v2463 = vpop.f32.mrf.mxu0
      %v2464 = vadd.f32 %v2264, %v2463
      %v2465 = vpop.f32.mrf.mxu0
      %2466 = vmatprep.mubr.bf16.mxu0 0
      %2467 = vmatmul.mubr.bf16.gmra.mxu0 %v2242
      %v2468 = vpop.f32.mrf.mxu0
      %v2469 = vadd.f32 %v2264, %v2468
      %v2470 = vpop.f32.mrf.mxu0
      %v2471 = vpop.f32.mrf.mxu0
      %v2472 = vadd.f32 %v2264, %v2471
      %v2473 = vpop.f32.mrf.mxu0
      %2474 = vdwg.mxu0
      %v2475 = vmul.f32 %v2349, 0.5
      %v2476 = vmul.f32 %v2352, 0.5
      %v2477 = vmul.f32 %v2357, 0.5
      %v2478 = vmul.f32 %v2360, 0.5
      %v2479 = vmul.f32 %v2365, 0.5
      %v2480 = vmul.f32 %v2368, 0.5
      %v2481 = vmul.f32 %v2373, 0.5
      %v2482 = vmul.f32 %v2376, 0.5
      %v2483 = vmul.f32 %v2381, 0.5
      %v2484 = vmul.f32 %v2384, 0.5
      %v2485 = vmul.f32 %v2389, 0.5
      %v2486 = vmul.f32 %v2392, 0.5
      %v2487 = vmul.f32 %v2397, 0.5
      %v2488 = vmul.f32 %v2400, 0.5
      %v2489 = vmul.f32 %v2405, 0.5
      %v2490 = vmul.f32 %v2408, 0.5
      %v2491 = vmul.f32 %v2413, 0.5
      %v2492 = vmul.f32 %v2416, 0.5
      %v2493 = vmul.f32 %v2421, 0.5
      %v2494 = vmul.f32 %v2424, 0.5
      %v2495 = vmul.f32 %v2429, 0.5
      %v2496 = vmul.f32 %v2432, 0.5
      %v2497 = vmul.f32 %v2437, 0.5
      %v2498 = vmul.f32 %v2440, 0.5
      %v2499 = vmul.f32 %v2445, 0.5
      %v2500 = vmul.f32 %v2448, 0.5
      %v2501 = vmul.f32 %v2453, 0.5
      %v2502 = vmul.f32 %v2456, 0.5
      %v2503 = vmul.f32 %v2461, 0.5
      %v2504 = vmul.f32 %v2464, 0.5
      %v2505 = vmul.f32 %v2469, 0.5
      %v2506 = vmul.f32 %v2472, 0.5
      %v2507 = vtanh.pop %v2475
      %v2508 = vtanh.pop %v2476
      %v2509 = vtanh.pop %v2477
      %v2510 = vtanh.pop %v2478
      %v2511 = vtanh.pop %v2479
      %v2512 = vtanh.pop %v2480
      %v2513 = vtanh.pop %v2481
      %v2514 = vtanh.pop %v2482
      %v2515 = vtanh.pop %v2483
      %v2516 = vtanh.pop %v2484
      %v2517 = vtanh.pop %v2485
      %v2518 = vtanh.pop %v2486
      %v2519 = vtanh.pop %v2487
      %v2520 = vtanh.pop %v2488
      %v2521 = vtanh.pop %v2489
      %v2522 = vtanh.pop %v2490
      %v2523 = vtanh.pop %v2491
      %v2524 = vtanh.pop %v2492
      %v2525 = vtanh.pop %v2493
      %v2526 = vtanh.pop %v2494
      %v2527 = vtanh.pop %v2495
      %v2528 = vtanh.pop %v2496
      %v2529 = vtanh.pop %v2497
      %v2530 = vtanh.pop %v2498
      %v2531 = vtanh.pop %v2499
      %v2532 = vtanh.pop %v2500
      %v2533 = vtanh.pop %v2501
      %v2534 = vtanh.pop %v2502
      %v2535 = vtanh.pop %v2503
      %v2536 = vtanh.pop %v2504
      %v2537 = vtanh.pop %v2505
      %v2538 = vtanh.pop %v2506
      %v2539 = vmul.f32 %v2507, 0.5
      %v2540 = vmul.f32 %v2508, 0.5
      %v2541 = vmul.f32 %v2509, 0.5
      %v2542 = vmul.f32 %v2510, 0.5
      %v2543 = vmul.f32 %v2511, 0.5
      %v2544 = vmul.f32 %v2512, 0.5
      %v2545 = vmul.f32 %v2513, 0.5
      %v2546 = vmul.f32 %v2514, 0.5
      %v2547 = vmul.f32 %v2515, 0.5
      %v2548 = vmul.f32 %v2516, 0.5
      %v2549 = vmul.f32 %v2517, 0.5
      %v2550 = vmul.f32 %v2518, 0.5
      %v2551 = vmul.f32 %v2519, 0.5
      %v2552 = vmul.f32 %v2520, 0.5
      %v2553 = vmul.f32 %v2521, 0.5
      %v2554 = vmul.f32 %v2522, 0.5
      %v2555 = vmul.f32 %v2523, 0.5
      %v2556 = vmul.f32 %v2524, 0.5
      %v2557 = vmul.f32 %v2525, 0.5
      %v2558 = vmul.f32 %v2526, 0.5
      %v2559 = vmul.f32 %v2527, 0.5
      %v2560 = vmul.f32 %v2528, 0.5
      %v2561 = vmul.f32 %v2529, 0.5
      %v2562 = vmul.f32 %v2530, 0.5
      %v2563 = vmul.f32 %v2531, 0.5
      %v2564 = vmul.f32 %v2532, 0.5
      %v2565 = vmul.f32 %v2533, 0.5
      %v2566 = vmul.f32 %v2534, 0.5
      %v2567 = vmul.f32 %v2535, 0.5
      %v2568 = vmul.f32 %v2536, 0.5
      %v2569 = vmul.f32 %v2537, 0.5
      %v2570 = vmul.f32 %v2538, 0.5
      %v2571 = vadd.f32 %v2539, 0.5
      %v2572 = vadd.f32 %v2540, 0.5
      %v2573 = vadd.f32 %v2541, 0.5
      %v2574 = vadd.f32 %v2542, 0.5
      %v2575 = vadd.f32 %v2543, 0.5
      %v2576 = vadd.f32 %v2544, 0.5
      %v2577 = vadd.f32 %v2545, 0.5
      %v2578 = vadd.f32 %v2546, 0.5
      %v2579 = vadd.f32 %v2547, 0.5
      %v2580 = vadd.f32 %v2548, 0.5
      %v2581 = vadd.f32 %v2549, 0.5
      %v2582 = vadd.f32 %v2550, 0.5
      %v2583 = vadd.f32 %v2551, 0.5
      %v2584 = vadd.f32 %v2552, 0.5
      %v2585 = vadd.f32 %v2553, 0.5
      %v2586 = vadd.f32 %v2554, 0.5
      %v2587 = vadd.f32 %v2555, 0.5
      %v2588 = vadd.f32 %v2556, 0.5
      %v2589 = vadd.f32 %v2557, 0.5
      %v2590 = vadd.f32 %v2558, 0.5
      %v2591 = vadd.f32 %v2559, 0.5
      %v2592 = vadd.f32 %v2560, 0.5
      %v2593 = vadd.f32 %v2561, 0.5
      %v2594 = vadd.f32 %v2562, 0.5
      %v2595 = vadd.f32 %v2563, 0.5
      %v2596 = vadd.f32 %v2564, 0.5
      %v2597 = vadd.f32 %v2565, 0.5
      %v2598 = vadd.f32 %v2566, 0.5
      %v2599 = vadd.f32 %v2567, 0.5
      %v2600 = vadd.f32 %v2568, 0.5
      %v2601 = vadd.f32 %v2569, 0.5
      %v2602 = vadd.f32 %v2570, 0.5
      %vm2603 = vcmask 523264
      %2604 = vst.msk [vmem:[%s488] sm:$0xff] %vm2603, %v2571
      %2605 = vst.msk [vmem:[%s488 + $0x8] sm:$0xff] %vm2603, %v2572
      %2606 = vst.msk [vmem:[%s488 + $0x10] sm:$0xff] %vm2603, %v2573
      %2607 = vst.msk [vmem:[%s488 + $0x18] sm:$0xff] %vm2603, %v2574
      %2608 = vst.msk [vmem:[%s488 + $0x20] sm:$0xff] %vm2603, %v2575
      %2609 = vst.msk [vmem:[%s488 + $0x28] sm:$0xff] %vm2603, %v2576
      %2610 = vst.msk [vmem:[%s488 + $0x30] sm:$0xff] %vm2603, %v2577
      %2611 = vst.msk [vmem:[%s488 + $0x38] sm:$0xff] %vm2603, %v2578
      %2612 = vst.msk [vmem:[%s488 + $0x40] sm:$0xff] %vm2603, %v2579
      %2613 = vst.msk [vmem:[%s488 + $0x48] sm:$0xff] %vm2603, %v2580
      %2614 = vst.msk [vmem:[%s488 + $0x50] sm:$0xff] %vm2603, %v2581
      %2615 = vst.msk [vmem:[%s488 + $0x58] sm:$0xff] %vm2603, %v2582
      %2616 = vst.msk [vmem:[%s488 + $0x60] sm:$0xff] %vm2603, %v2583
      %2617 = vst.msk [vmem:[%s488 + $0x68] sm:$0xff] %vm2603, %v2584
      %2618 = vst.msk [vmem:[%s488 + $0x70] sm:$0xff] %vm2603, %v2585
      %2619 = vst.msk [vmem:[%s488 + $0x78] sm:$0xff] %vm2603, %v2586
      %2620 = vst.msk [vmem:[%s488 + $0x80] sm:$0xff] %vm2603, %v2587
      %2621 = vst.msk [vmem:[%s488 + $0x88] sm:$0xff] %vm2603, %v2588
      %2622 = vst.msk [vmem:[%s488 + $0x90] sm:$0xff] %vm2603, %v2589
      %2623 = vst.msk [vmem:[%s488 + $0x98] sm:$0xff] %vm2603, %v2590
      %2624 = vst.msk [vmem:[%s488 + $0xa0] sm:$0xff] %vm2603, %v2591
      %2625 = vst.msk [vmem:[%s488 + $0xa8] sm:$0xff] %vm2603, %v2592
      %2626 = vst.msk [vmem:[%s488 + $0xb0] sm:$0xff] %vm2603, %v2593
      %2627 = vst.msk [vmem:[%s488 + $0xb8] sm:$0xff] %vm2603, %v2594
      %2628 = vst.msk [vmem:[%s488 + $0xc0] sm:$0xff] %vm2603, %v2595
      %2629 = vst.msk [vmem:[%s488 + $0xc8] sm:$0xff] %vm2603, %v2596
      %2630 = vst.msk [vmem:[%s488 + $0xd0] sm:$0xff] %vm2603, %v2597
      %2631 = vst.msk [vmem:[%s488 + $0xd8] sm:$0xff] %vm2603, %v2598
      %2632 = vst.msk [vmem:[%s488 + $0xe0] sm:$0xff] %vm2603, %v2599
      %2633 = vst.msk [vmem:[%s488 + $0xe8] sm:$0xff] %vm2603, %v2600
      %2634 = vst.msk [vmem:[%s488 + $0xf0] sm:$0xff] %vm2603, %v2601
      %2635 = vst.msk [vmem:[%s488 + $0xf8] sm:$0xff] %vm2603, %v2602
      %v2636 = vpack.c.bf16 %v2572, %v2571
      %v2637 = vpack.c.bf16 %v2574, %v2573
      %v2638 = vpack.c.bf16 %v2576, %v2575
      %v2639 = vpack.c.bf16 %v2578, %v2577
      %v2640 = vpack.c.bf16 %v2580, %v2579
      %v2641 = vpack.c.bf16 %v2582, %v2581
      %v2642 = vpack.c.bf16 %v2584, %v2583
      %v2643 = vpack.c.bf16 %v2586, %v2585
      %v2644 = vpack.c.bf16 %v2588, %v2587
      %v2645 = vpack.c.bf16 %v2590, %v2589
      %v2646 = vpack.c.bf16 %v2592, %v2591
      %v2647 = vpack.c.bf16 %v2594, %v2593
      %v2648 = vpack.c.bf16 %v2596, %v2595
      %v2649 = vpack.c.bf16 %v2598, %v2597
      %v2650 = vpack.c.bf16 %v2600, %v2599
      %v2651 = vpack.c.bf16 %v2602, %v2601
      %v2652 = vld [vmem:[%s4] sm:$0xf]
      %v2653 = vld [vmem:[%s4 + $0x4] sm:$0xf]
      %v2654 = vld [vmem:[%s4 + $0x8] sm:$0xf]
      %v2655 = vld [vmem:[%s4 + $0xc] sm:$0xf]
      %v2656 = vld [vmem:[%s4 + $0x10] sm:$0xf]
      %v2657 = vld [vmem:[%s4 + $0x14] sm:$0xf]
      %v2658 = vld [vmem:[%s4 + $0x18] sm:$0xf]
      %v2659 = vld [vmem:[%s4 + $0x1c] sm:$0xf]
      %v2660 = vld [vmem:[%s10] sm:$0x1]
      %v2662 = vlaneseq
      %v2663 = vshrl.u32 %v2662, 7
      %v2664 = vsub.s32 0, %v2663
      %v2665 = vrot.slane %v2660, %v2664
      %v2675 = vunpack.c.l.b16 %v2652
      %v2676 = vunpack.c.l.b16 %v2653
      %v2677 = vunpack.c.l.b16 %v2654
      %v2678 = vunpack.c.l.b16 %v2655
      %v2679 = vunpack.c.l.b16 %v2656
      %v2680 = vunpack.c.l.b16 %v2657
      %v2681 = vunpack.c.l.b16 %v2658
      %v2682 = vunpack.c.l.b16 %v2659
      %v2683 = vpack.c.b16 %v2676, %v2675
      %v2684 = vpack.c.b16 %v2678, %v2677
      %v2685 = vpack.c.b16 %v2680, %v2679
      %v2686 = vpack.c.b16 %v2682, %v2681
      %v2692 = vsel %vm2603, %v2636, 0
      %v2695 = vsel %vm2603, %v2637, 0
      %v2698 = vsel %vm2603, %v2638, 0
      %v2701 = vsel %vm2603, %v2639, 0
      %v2704 = vsel %vm2603, %v2640, 0
      %v2707 = vsel %vm2603, %v2641, 0
      %v2710 = vsel %vm2603, %v2642, 0
      %v2713 = vsel %vm2603, %v2643, 0
      %v2716 = vsel %vm2603, %v2644, 0
      %v2719 = vsel %vm2603, %v2645, 0
      %v2722 = vsel %vm2603, %v2646, 0
      %v2725 = vsel %vm2603, %v2647, 0
      %v2728 = vsel %vm2603, %v2648, 0
      %v2731 = vsel %vm2603, %v2649, 0
      %v2734 = vsel %vm2603, %v2650, 0
      %v2737 = vsel %vm2603, %v2651, 0
      %2739 = vmatprep.subr.bf16.mxu0 0
      %2740 = vmatpush1.bf16.msra.mxu0 0
      %2741 = vmatprep.subr.bf16.mxu0 0
      %2742 = vmatpush1.bf16.msra.mxu0 0
      %2743 = vmatprep.subr.bf16.mxu0 0
      %2744 = vmatpush1.bf16.msra.mxu0 0
      %2745 = vmatprep.subr.bf16.mxu0 0
      %2746 = vmatpush1.bf16.msra.mxu0 0
      %2747 = vmatprep.subr.bf16.mxu0 0
      %2748 = vmatpush1.bf16.msra.mxu0 %v2686
      %2749 = vmatprep.subr.bf16.mxu0 0
      %2750 = vmatpush1.bf16.msra.mxu0 %v2685
      %2751 = vmatprep.subr.bf16.mxu0 0
      %2752 = vmatpush1.bf16.msra.mxu0 %v2684
      %2753 = vmatprep.subr.bf16.mxu0 0
      %2754 = vmatpush1.bf16.msra.mxu0 %v2683
      %2755 = vmatprep.subr.bf16.mxu0 0
      %2756 = vmatpush2.bf16.msra.mxu0 0
      %2757 = vmatprep.subr.bf16.mxu0 0
      %2758 = vmatpush2.bf16.msra.mxu0 0
      %2759 = vmatprep.subr.bf16.mxu0 0
      %2760 = vmatpush2.bf16.msra.mxu0 0
      %2761 = vmatprep.subr.bf16.mxu0 0
      %2762 = vmatpush2.bf16.msra.mxu0 0
      %2763 = vmatprep.subr.bf16.mxu0 0
      %2764 = vmatpush2.bf16.msra.mxu0 0
      %2765 = vmatprep.subr.bf16.mxu0 0
      %2766 = vmatpush2.bf16.msra.mxu0 0
      %2767 = vmatprep.subr.bf16.mxu0 0
      %2768 = vmatpush2.bf16.msra.mxu0 0
      %2769 = vmatprep.subr.bf16.mxu0 0
      %2770 = vmatpush2.bf16.msra.mxu0 0
      %2771 = vmatprep.mubr.bf16.mxu0 0
      %2772 = vmatmul.mubr.bf16.gmra.mxu0 %v2692
      %v2773 = vpop.f32.mrf.mxu0
      %v2774 = vadd.f32 %v2665, %v2773
      %v2775 = vpop.f32.mrf.mxu0
      %v2776 = vpop.f32.mrf.mxu0
      %v2777 = vadd.f32 %v2665, %v2776
      %v2778 = vpop.f32.mrf.mxu0
      %2779 = vmatprep.mubr.bf16.mxu0 0
      %2780 = vmatmul.mubr.bf16.gmra.mxu0 %v2695
      %v2781 = vpop.f32.mrf.mxu0
      %v2782 = vadd.f32 %v2665, %v2781
      %v2783 = vpop.f32.mrf.mxu0
      %v2784 = vpop.f32.mrf.mxu0
      %v2785 = vadd.f32 %v2665, %v2784
      %v2786 = vpop.f32.mrf.mxu0
      %2787 = vmatprep.mubr.bf16.mxu0 0
      %2788 = vmatmul.mubr.bf16.gmra.mxu0 %v2698
      %v2789 = vpop.f32.mrf.mxu0
      %v2790 = vadd.f32 %v2665, %v2789
      %v2791 = vpop.f32.mrf.mxu0
      %v2792 = vpop.f32.mrf.mxu0
      %v2793 = vadd.f32 %v2665, %v2792
      %v2794 = vpop.f32.mrf.mxu0
      %2795 = vmatprep.mubr.bf16.mxu0 0
      %2796 = vmatmul.mubr.bf16.gmra.mxu0 %v2701
      %v2797 = vpop.f32.mrf.mxu0
      %v2798 = vadd.f32 %v2665, %v2797
      %v2799 = vpop.f32.mrf.mxu0
      %v2800 = vpop.f32.mrf.mxu0
      %v2801 = vadd.f32 %v2665, %v2800
      %v2802 = vpop.f32.mrf.mxu0
      %2803 = vmatprep.mubr.bf16.mxu0 0
      %2804 = vmatmul.mubr.bf16.gmra.mxu0 %v2704
      %v2805 = vpop.f32.mrf.mxu0
      %v2806 = vadd.f32 %v2665, %v2805
      %v2807 = vpop.f32.mrf.mxu0
      %v2808 = vpop.f32.mrf.mxu0
      %v2809 = vadd.f32 %v2665, %v2808
      %v2810 = vpop.f32.mrf.mxu0
      %2811 = vmatprep.mubr.bf16.mxu0 0
      %2812 = vmatmul.mubr.bf16.gmra.mxu0 %v2707
      %v2813 = vpop.f32.mrf.mxu0
      %v2814 = vadd.f32 %v2665, %v2813
      %v2815 = vpop.f32.mrf.mxu0
      %v2816 = vpop.f32.mrf.mxu0
      %v2817 = vadd.f32 %v2665, %v2816
      %v2818 = vpop.f32.mrf.mxu0
      %2819 = vmatprep.mubr.bf16.mxu0 0
      %2820 = vmatmul.mubr.bf16.gmra.mxu0 %v2710
      %v2821 = vpop.f32.mrf.mxu0
      %v2822 = vadd.f32 %v2665, %v2821
      %v2823 = vpop.f32.mrf.mxu0
      %v2824 = vpop.f32.mrf.mxu0
      %v2825 = vadd.f32 %v2665, %v2824
      %v2826 = vpop.f32.mrf.mxu0
      %2827 = vmatprep.mubr.bf16.mxu0 0
      %2828 = vmatmul.mubr.bf16.gmra.mxu0 %v2713
      %v2829 = vpop.f32.mrf.mxu0
      %v2830 = vadd.f32 %v2665, %v2829
      %v2831 = vpop.f32.mrf.mxu0
      %v2832 = vpop.f32.mrf.mxu0
      %v2833 = vadd.f32 %v2665, %v2832
      %v2834 = vpop.f32.mrf.mxu0
      %2835 = vmatprep.mubr.bf16.mxu0 0
      %2836 = vmatmul.mubr.bf16.gmra.mxu0 %v2716
      %v2837 = vpop.f32.mrf.mxu0
      %v2838 = vadd.f32 %v2665, %v2837
      %v2839 = vpop.f32.mrf.mxu0
      %v2840 = vpop.f32.mrf.mxu0
      %v2841 = vadd.f32 %v2665, %v2840
      %v2842 = vpop.f32.mrf.mxu0
      %2843 = vmatprep.mubr.bf16.mxu0 0
      %2844 = vmatmul.mubr.bf16.gmra.mxu0 %v2719
      %v2845 = vpop.f32.mrf.mxu0
      %v2846 = vadd.f32 %v2665, %v2845
      %v2847 = vpop.f32.mrf.mxu0
      %v2848 = vpop.f32.mrf.mxu0
      %v2849 = vadd.f32 %v2665, %v2848
      %v2850 = vpop.f32.mrf.mxu0
      %2851 = vmatprep.mubr.bf16.mxu0 0
      %2852 = vmatmul.mubr.bf16.gmra.mxu0 %v2722
      %v2853 = vpop.f32.mrf.mxu0
      %v2854 = vadd.f32 %v2665, %v2853
      %v2855 = vpop.f32.mrf.mxu0
      %v2856 = vpop.f32.mrf.mxu0
      %v2857 = vadd.f32 %v2665, %v2856
      %v2858 = vpop.f32.mrf.mxu0
      %2859 = vmatprep.mubr.bf16.mxu0 0
      %2860 = vmatmul.mubr.bf16.gmra.mxu0 %v2725
      %v2861 = vpop.f32.mrf.mxu0
      %v2862 = vadd.f32 %v2665, %v2861
      %v2863 = vpop.f32.mrf.mxu0
      %v2864 = vpop.f32.mrf.mxu0
      %v2865 = vadd.f32 %v2665, %v2864
      %v2866 = vpop.f32.mrf.mxu0
      %2867 = vmatprep.mubr.bf16.mxu0 0
      %2868 = vmatmul.mubr.bf16.gmra.mxu0 %v2728
      %v2869 = vpop.f32.mrf.mxu0
      %v2870 = vadd.f32 %v2665, %v2869
      %v2871 = vpop.f32.mrf.mxu0
      %v2872 = vpop.f32.mrf.mxu0
      %v2873 = vadd.f32 %v2665, %v2872
      %v2874 = vpop.f32.mrf.mxu0
      %2875 = vmatprep.mubr.bf16.mxu0 0
      %2876 = vmatmul.mubr.bf16.gmra.mxu0 %v2731
      %v2877 = vpop.f32.mrf.mxu0
      %v2878 = vadd.f32 %v2665, %v2877
      %v2879 = vpop.f32.mrf.mxu0
      %v2880 = vpop.f32.mrf.mxu0
      %v2881 = vadd.f32 %v2665, %v2880
      %v2882 = vpop.f32.mrf.mxu0
      %2883 = vmatprep.mubr.bf16.mxu0 0
      %2884 = vmatmul.mubr.bf16.gmra.mxu0 %v2734
      %v2885 = vpop.f32.mrf.mxu0
      %v2886 = vadd.f32 %v2665, %v2885
      %v2887 = vpop.f32.mrf.mxu0
      %v2888 = vpop.f32.mrf.mxu0
      %v2889 = vadd.f32 %v2665, %v2888
      %v2890 = vpop.f32.mrf.mxu0
      %2891 = vmatprep.mubr.bf16.mxu0 0
      %2892 = vmatmul.mubr.bf16.gmra.mxu0 %v2737
      %v2893 = vpop.f32.mrf.mxu0
      %v2894 = vadd.f32 %v2665, %v2893
      %v2895 = vpop.f32.mrf.mxu0
      %v2896 = vpop.f32.mrf.mxu0
      %v2897 = vadd.f32 %v2665, %v2896
      %v2898 = vpop.f32.mrf.mxu0
      %2899 = vdwg.mxu0
      %v2900 = vmul.f32 %v2774, 0.5
      %v2901 = vmul.f32 %v2777, 0.5
      %v2902 = vmul.f32 %v2782, 0.5
      %v2903 = vmul.f32 %v2785, 0.5
      %v2904 = vmul.f32 %v2790, 0.5
      %v2905 = vmul.f32 %v2793, 0.5
      %v2906 = vmul.f32 %v2798, 0.5
      %v2907 = vmul.f32 %v2801, 0.5
      %v2908 = vmul.f32 %v2806, 0.5
      %v2909 = vmul.f32 %v2809, 0.5
      %v2910 = vmul.f32 %v2814, 0.5
      %v2911 = vmul.f32 %v2817, 0.5
      %v2912 = vmul.f32 %v2822, 0.5
      %v2913 = vmul.f32 %v2825, 0.5
      %v2914 = vmul.f32 %v2830, 0.5
      %v2915 = vmul.f32 %v2833, 0.5
      %v2916 = vmul.f32 %v2838, 0.5
      %v2917 = vmul.f32 %v2841, 0.5
      %v2918 = vmul.f32 %v2846, 0.5
      %v2919 = vmul.f32 %v2849, 0.5
      %v2920 = vmul.f32 %v2854, 0.5
      %v2921 = vmul.f32 %v2857, 0.5
      %v2922 = vmul.f32 %v2862, 0.5
      %v2923 = vmul.f32 %v2865, 0.5
      %v2924 = vmul.f32 %v2870, 0.5
      %v2925 = vmul.f32 %v2873, 0.5
      %v2926 = vmul.f32 %v2878, 0.5
      %v2927 = vmul.f32 %v2881, 0.5
      %v2928 = vmul.f32 %v2886, 0.5
      %v2929 = vmul.f32 %v2889, 0.5
      %v2930 = vmul.f32 %v2894, 0.5
      %v2931 = vmul.f32 %v2897, 0.5
      %v2932 = vtanh.pop %v2900
      %v2933 = vtanh.pop %v2901
      %v2934 = vtanh.pop %v2902
      %v2935 = vtanh.pop %v2903
      %v2936 = vtanh.pop %v2904
      %v2937 = vtanh.pop %v2905
      %v2938 = vtanh.pop %v2906
      %v2939 = vtanh.pop %v2907
      %v2940 = vtanh.pop %v2908
      %v2941 = vtanh.pop %v2909
      %v2942 = vtanh.pop %v2910
      %v2943 = vtanh.pop %v2911
      %v2944 = vtanh.pop %v2912
      %v2945 = vtanh.pop %v2913
      %v2946 = vtanh.pop %v2914
      %v2947 = vtanh.pop %v2915
      %v2948 = vtanh.pop %v2916
      %v2949 = vtanh.pop %v2917
      %v2950 = vtanh.pop %v2918
      %v2951 = vtanh.pop %v2919
      %v2952 = vtanh.pop %v2920
      %v2953 = vtanh.pop %v2921
      %v2954 = vtanh.pop %v2922
      %v2955 = vtanh.pop %v2923
      %v2956 = vtanh.pop %v2924
      %v2957 = vtanh.pop %v2925
      %v2958 = vtanh.pop %v2926
      %v2959 = vtanh.pop %v2927
      %v2960 = vtanh.pop %v2928
      %v2961 = vtanh.pop %v2929
      %v2962 = vtanh.pop %v2930
      %v2963 = vtanh.pop %v2931
      %v2964 = vmul.f32 %v2932, 0.5
      %v2965 = vmul.f32 %v2933, 0.5
      %v2966 = vmul.f32 %v2934, 0.5
      %v2967 = vmul.f32 %v2935, 0.5
      %v2968 = vmul.f32 %v2936, 0.5
      %v2969 = vmul.f32 %v2937, 0.5
      %v2970 = vmul.f32 %v2938, 0.5
      %v2971 = vmul.f32 %v2939, 0.5
      %v2972 = vmul.f32 %v2940, 0.5
      %v2973 = vmul.f32 %v2941, 0.5
      %v2974 = vmul.f32 %v2942, 0.5
      %v2975 = vmul.f32 %v2943, 0.5
      %v2976 = vmul.f32 %v2944, 0.5
      %v2977 = vmul.f32 %v2945, 0.5
      %v2978 = vmul.f32 %v2946, 0.5
      %v2979 = vmul.f32 %v2947, 0.5
      %v2980 = vmul.f32 %v2948, 0.5
      %v2981 = vmul.f32 %v2949, 0.5
      %v2982 = vmul.f32 %v2950, 0.5
      %v2983 = vmul.f32 %v2951, 0.5
      %v2984 = vmul.f32 %v2952, 0.5
      %v2985 = vmul.f32 %v2953, 0.5
      %v2986 = vmul.f32 %v2954, 0.5
      %v2987 = vmul.f32 %v2955, 0.5
      %v2988 = vmul.f32 %v2956, 0.5
      %v2989 = vmul.f32 %v2957, 0.5
      %v2990 = vmul.f32 %v2958, 0.5
      %v2991 = vmul.f32 %v2959, 0.5
      %v2992 = vmul.f32 %v2960, 0.5
      %v2993 = vmul.f32 %v2961, 0.5
      %v2994 = vmul.f32 %v2962, 0.5
      %v2995 = vmul.f32 %v2963, 0.5
      %v2996 = vadd.f32 %v2964, 0.5
      %v2997 = vadd.f32 %v2965, 0.5
      %v2998 = vadd.f32 %v2966, 0.5
      %v2999 = vadd.f32 %v2967, 0.5
      %v3000 = vadd.f32 %v2968, 0.5
      %v3001 = vadd.f32 %v2969, 0.5
      %v3002 = vadd.f32 %v2970, 0.5
      %v3003 = vadd.f32 %v2971, 0.5
      %v3004 = vadd.f32 %v2972, 0.5
      %v3005 = vadd.f32 %v2973, 0.5
      %v3006 = vadd.f32 %v2974, 0.5
      %v3007 = vadd.f32 %v2975, 0.5
      %v3008 = vadd.f32 %v2976, 0.5
      %v3009 = vadd.f32 %v2977, 0.5
      %v3010 = vadd.f32 %v2978, 0.5
      %v3011 = vadd.f32 %v2979, 0.5
      %v3012 = vadd.f32 %v2980, 0.5
      %v3013 = vadd.f32 %v2981, 0.5
      %v3014 = vadd.f32 %v2982, 0.5
      %v3015 = vadd.f32 %v2983, 0.5
      %v3016 = vadd.f32 %v2984, 0.5
      %v3017 = vadd.f32 %v2985, 0.5
      %v3018 = vadd.f32 %v2986, 0.5
      %v3019 = vadd.f32 %v2987, 0.5
      %v3020 = vadd.f32 %v2988, 0.5
      %v3021 = vadd.f32 %v2989, 0.5
      %v3022 = vadd.f32 %v2990, 0.5
      %v3023 = vadd.f32 %v2991, 0.5
      %v3024 = vadd.f32 %v2992, 0.5
      %v3025 = vadd.f32 %v2993, 0.5
      %v3026 = vadd.f32 %v2994, 0.5
      %v3027 = vadd.f32 %v2995, 0.5
      %v3028 = vpack.c.bf16 %v2997, %v2996
      %v3029 = vpack.c.bf16 %v2999, %v2998
      %v3030 = vpack.c.bf16 %v3001, %v3000
      %v3031 = vpack.c.bf16 %v3003, %v3002
      %v3032 = vpack.c.bf16 %v3005, %v3004
      %v3033 = vpack.c.bf16 %v3007, %v3006
      %v3034 = vpack.c.bf16 %v3009, %v3008
      %v3035 = vpack.c.bf16 %v3011, %v3010
      %v3036 = vpack.c.bf16 %v3013, %v3012
      %v3037 = vpack.c.bf16 %v3015, %v3014
      %v3038 = vpack.c.bf16 %v3017, %v3016
      %v3039 = vpack.c.bf16 %v3019, %v3018
      %v3040 = vpack.c.bf16 %v3021, %v3020
      %v3041 = vpack.c.bf16 %v3023, %v3022
      %v3042 = vpack.c.bf16 %v3025, %v3024
      %v3043 = vpack.c.bf16 %v3027, %v3026
      %v3044 = vld [vmem:[%s5] sm:$0xff]
      %v3045 = vld [vmem:[%s5 + $0x8] sm:$0xff]
      %v3046 = vld [vmem:[%s5 + $0x10] sm:$0xff]
      %v3047 = vld [vmem:[%s5 + $0x18] sm:$0xff]
      %v3048 = vld [vmem:[%s5 + $0x20] sm:$0xff]
      %v3049 = vld [vmem:[%s5 + $0x28] sm:$0xff]
      %v3050 = vld [vmem:[%s5 + $0x30] sm:$0xff]
      %v3051 = vld [vmem:[%s5 + $0x38] sm:$0xff]
      %v3052 = vld [vmem:[%s5 + $0x40] sm:$0xff]
      %v3053 = vld [vmem:[%s5 + $0x48] sm:$0xff]
      %v3054 = vld [vmem:[%s5 + $0x50] sm:$0xff]
      %v3055 = vld [vmem:[%s5 + $0x58] sm:$0xff]
      %v3056 = vld [vmem:[%s5 + $0x60] sm:$0xff]
      %v3057 = vld [vmem:[%s5 + $0x68] sm:$0xff]
      %v3058 = vld [vmem:[%s5 + $0x70] sm:$0xff]
      %v3059 = vld [vmem:[%s5 + $0x78] sm:$0xff]
      %v3060 = vld [vmem:[%s11] sm:$0x3]
      %v3062 = vlaneseq
      %v3063 = vshrl.u32 %v3062, 7
      %v3064 = vsub.s32 0, %v3063
      %v3065 = vrot.slane %v3060, %v3064
      %v3066 = vlaneseq
      %v3067 = vshrl.u32 %v3066, 7
      %v3068 = vsub.s32 1, %v3067
      %v3069 = vrot.slane %v3060, %v3068
      %v3088 = vunpack.c.l.b16 %v3044
      %v3089 = vunpack.c.h.b16 %v3044
      %v3090 = vunpack.c.l.b16 %v3045
      %v3091 = vunpack.c.h.b16 %v3045
      %v3092 = vunpack.c.l.b16 %v3046
      %v3093 = vunpack.c.h.b16 %v3046
      %v3094 = vunpack.c.l.b16 %v3047
      %v3095 = vunpack.c.h.b16 %v3047
      %v3096 = vunpack.c.l.b16 %v3048
      %v3097 = vunpack.c.h.b16 %v3048
      %v3098 = vunpack.c.l.b16 %v3049
      %v3099 = vunpack.c.h.b16 %v3049
      %v3100 = vunpack.c.l.b16 %v3050
      %v3101 = vunpack.c.h.b16 %v3050
      %v3102 = vunpack.c.l.b16 %v3051
      %v3103 = vunpack.c.h.b16 %v3051
      %v3104 = vunpack.c.l.b16 %v3052
      %v3105 = vunpack.c.h.b16 %v3052
      %v3106 = vunpack.c.l.b16 %v3053
      %v3107 = vunpack.c.h.b16 %v3053
      %v3108 = vunpack.c.l.b16 %v3054
      %v3109 = vunpack.c.h.b16 %v3054
      %v3110 = vunpack.c.l.b16 %v3055
      %v3111 = vunpack.c.h.b16 %v3055
      %v3112 = vunpack.c.l.b16 %v3056
      %v3113 = vunpack.c.h.b16 %v3056
      %v3114 = vunpack.c.l.b16 %v3057
      %v3115 = vunpack.c.h.b16 %v3057
      %v3116 = vunpack.c.l.b16 %v3058
      %v3117 = vunpack.c.h.b16 %v3058
      %v3118 = vunpack.c.l.b16 %v3059
      %v3119 = vunpack.c.h.b16 %v3059
      %v3120 = vpack.c.b16 %v3090, %v3088
      %v3121 = vpack.c.b16 %v3091, %v3089
      %v3122 = vpack.c.b16 %v3094, %v3092
      %v3123 = vpack.c.b16 %v3095, %v3093
      %v3124 = vpack.c.b16 %v3098, %v3096
      %v3125 = vpack.c.b16 %v3099, %v3097
      %v3126 = vpack.c.b16 %v3102, %v3100
      %v3127 = vpack.c.b16 %v3103, %v3101
      %v3128 = vpack.c.b16 %v3106, %v3104
      %v3129 = vpack.c.b16 %v3107, %v3105
      %v3130 = vpack.c.b16 %v3110, %v3108
      %v3131 = vpack.c.b16 %v3111, %v3109
      %v3132 = vpack.c.b16 %v3114, %v3112
      %v3133 = vpack.c.b16 %v3115, %v3113
      %v3134 = vpack.c.b16 %v3118, %v3116
      %v3135 = vpack.c.b16 %v3119, %v3117
      %3152 = vmatprep.subr.bf16.mxu0 %v3135
      %3153 = vmatpush1.bf16.msra.mxu0 %v3134
      %3154 = vmatprep.subr.bf16.mxu0 %v3133
      %3155 = vmatpush1.bf16.msra.mxu0 %v3132
      %3156 = vmatprep.subr.bf16.mxu0 %v3131
      %3157 = vmatpush1.bf16.msra.mxu0 %v3130
      %3158 = vmatprep.subr.bf16.mxu0 %v3129
      %3159 = vmatpush1.bf16.msra.mxu0 %v3128
      %3160 = vmatprep.subr.bf16.mxu0 %v3127
      %3161 = vmatpush1.bf16.msra.mxu0 %v3126
      %3162 = vmatprep.subr.bf16.mxu0 %v3125
      %3163 = vmatpush1.bf16.msra.mxu0 %v3124
      %3164 = vmatprep.subr.bf16.mxu0 %v3123
      %3165 = vmatpush1.bf16.msra.mxu0 %v3122
      %3166 = vmatprep.subr.bf16.mxu0 %v3121
      %3167 = vmatpush1.bf16.msra.mxu0 %v3120
      %3168 = vmatprep.subr.bf16.mxu0 0
      %3169 = vmatpush2.bf16.msra.mxu0 0
      %3170 = vmatprep.subr.bf16.mxu0 0
      %3171 = vmatpush2.bf16.msra.mxu0 0
      %3172 = vmatprep.subr.bf16.mxu0 0
      %3173 = vmatpush2.bf16.msra.mxu0 0
      %3174 = vmatprep.subr.bf16.mxu0 0
      %3175 = vmatpush2.bf16.msra.mxu0 0
      %3176 = vmatprep.subr.bf16.mxu0 0
      %3177 = vmatpush2.bf16.msra.mxu0 0
      %3178 = vmatprep.subr.bf16.mxu0 0
      %3179 = vmatpush2.bf16.msra.mxu0 0
      %3180 = vmatprep.subr.bf16.mxu0 0
      %3181 = vmatpush2.bf16.msra.mxu0 0
      %3182 = vmatprep.subr.bf16.mxu0 0
      %3183 = vmatpush2.bf16.msra.mxu0 0
      %3184 = vmatprep.mubr.bf16.mxu0 0
      %3185 = vmatmul.mubr.bf16.gmra.mxu0 %v3028
      %v3186 = vpop.f32.mrf.mxu0
      %v3187 = vadd.f32 %v3065, %v3186
      %v3188 = vpop.f32.mrf.mxu0
      %v3189 = vadd.f32 %v3069, %v3188
      %v3190 = vpop.f32.mrf.mxu0
      %v3191 = vadd.f32 %v3065, %v3190
      %v3192 = vpop.f32.mrf.mxu0
      %v3193 = vadd.f32 %v3069, %v3192
      %3194 = vmatprep.mubr.bf16.mxu0 0
      %3195 = vmatmul.mubr.bf16.gmra.mxu0 %v3029
      %v3196 = vpop.f32.mrf.mxu0
      %v3197 = vadd.f32 %v3065, %v3196
      %v3198 = vpop.f32.mrf.mxu0
      %v3199 = vadd.f32 %v3069, %v3198
      %v3200 = vpop.f32.mrf.mxu0
      %v3201 = vadd.f32 %v3065, %v3200
      %v3202 = vpop.f32.mrf.mxu0
      %v3203 = vadd.f32 %v3069, %v3202
      %3204 = vmatprep.mubr.bf16.mxu0 0
      %3205 = vmatmul.mubr.bf16.gmra.mxu0 %v3030
      %v3206 = vpop.f32.mrf.mxu0
      %v3207 = vadd.f32 %v3065, %v3206
      %v3208 = vpop.f32.mrf.mxu0
      %v3209 = vadd.f32 %v3069, %v3208
      %v3210 = vpop.f32.mrf.mxu0
      %v3211 = vadd.f32 %v3065, %v3210
      %v3212 = vpop.f32.mrf.mxu0
      %v3213 = vadd.f32 %v3069, %v3212
      %3214 = vmatprep.mubr.bf16.mxu0 0
      %3215 = vmatmul.mubr.bf16.gmra.mxu0 %v3031
      %v3216 = vpop.f32.mrf.mxu0
      %v3217 = vadd.f32 %v3065, %v3216
      %v3218 = vpop.f32.mrf.mxu0
      %v3219 = vadd.f32 %v3069, %v3218
      %v3220 = vpop.f32.mrf.mxu0
      %v3221 = vadd.f32 %v3065, %v3220
      %v3222 = vpop.f32.mrf.mxu0
      %v3223 = vadd.f32 %v3069, %v3222
      %3224 = vmatprep.mubr.bf16.mxu0 0
      %3225 = vmatmul.mubr.bf16.gmra.mxu0 %v3032
      %v3226 = vpop.f32.mrf.mxu0
      %v3227 = vadd.f32 %v3065, %v3226
      %v3228 = vpop.f32.mrf.mxu0
      %v3229 = vadd.f32 %v3069, %v3228
      %v3230 = vpop.f32.mrf.mxu0
      %v3231 = vadd.f32 %v3065, %v3230
      %v3232 = vpop.f32.mrf.mxu0
      %v3233 = vadd.f32 %v3069, %v3232
      %3234 = vmatprep.mubr.bf16.mxu0 0
      %3235 = vmatmul.mubr.bf16.gmra.mxu0 %v3033
      %v3236 = vpop.f32.mrf.mxu0
      %v3237 = vadd.f32 %v3065, %v3236
      %v3238 = vpop.f32.mrf.mxu0
      %v3239 = vadd.f32 %v3069, %v3238
      %v3240 = vpop.f32.mrf.mxu0
      %v3241 = vadd.f32 %v3065, %v3240
      %v3242 = vpop.f32.mrf.mxu0
      %v3243 = vadd.f32 %v3069, %v3242
      %3244 = vmatprep.mubr.bf16.mxu0 0
      %3245 = vmatmul.mubr.bf16.gmra.mxu0 %v3034
      %v3246 = vpop.f32.mrf.mxu0
      %v3247 = vadd.f32 %v3065, %v3246
      %v3248 = vpop.f32.mrf.mxu0
      %v3249 = vadd.f32 %v3069, %v3248
      %v3250 = vpop.f32.mrf.mxu0
      %v3251 = vadd.f32 %v3065, %v3250
      %v3252 = vpop.f32.mrf.mxu0
      %v3253 = vadd.f32 %v3069, %v3252
      %3254 = vmatprep.mubr.bf16.mxu0 0
      %3255 = vmatmul.mubr.bf16.gmra.mxu0 %v3035
      %v3256 = vpop.f32.mrf.mxu0
      %v3257 = vadd.f32 %v3065, %v3256
      %v3258 = vpop.f32.mrf.mxu0
      %v3259 = vadd.f32 %v3069, %v3258
      %v3260 = vpop.f32.mrf.mxu0
      %v3261 = vadd.f32 %v3065, %v3260
      %v3262 = vpop.f32.mrf.mxu0
      %v3263 = vadd.f32 %v3069, %v3262
      %3264 = vmatprep.mubr.bf16.mxu0 0
      %3265 = vmatmul.mubr.bf16.gmra.mxu0 %v3036
      %v3266 = vpop.f32.mrf.mxu0
      %v3267 = vadd.f32 %v3065, %v3266
      %v3268 = vpop.f32.mrf.mxu0
      %v3269 = vadd.f32 %v3069, %v3268
      %v3270 = vpop.f32.mrf.mxu0
      %v3271 = vadd.f32 %v3065, %v3270
      %v3272 = vpop.f32.mrf.mxu0
      %v3273 = vadd.f32 %v3069, %v3272
      %3274 = vmatprep.mubr.bf16.mxu0 0
      %3275 = vmatmul.mubr.bf16.gmra.mxu0 %v3037
      %v3276 = vpop.f32.mrf.mxu0
      %v3277 = vadd.f32 %v3065, %v3276
      %v3278 = vpop.f32.mrf.mxu0
      %v3279 = vadd.f32 %v3069, %v3278
      %v3280 = vpop.f32.mrf.mxu0
      %v3281 = vadd.f32 %v3065, %v3280
      %v3282 = vpop.f32.mrf.mxu0
      %v3283 = vadd.f32 %v3069, %v3282
      %3284 = vmatprep.mubr.bf16.mxu0 0
      %3285 = vmatmul.mubr.bf16.gmra.mxu0 %v3038
      %v3286 = vpop.f32.mrf.mxu0
      %v3287 = vadd.f32 %v3065, %v3286
      %v3288 = vpop.f32.mrf.mxu0
      %v3289 = vadd.f32 %v3069, %v3288
      %v3290 = vpop.f32.mrf.mxu0
      %v3291 = vadd.f32 %v3065, %v3290
      %v3292 = vpop.f32.mrf.mxu0
      %v3293 = vadd.f32 %v3069, %v3292
      %3294 = vmatprep.mubr.bf16.mxu0 0
      %3295 = vmatmul.mubr.bf16.gmra.mxu0 %v3039
      %v3296 = vpop.f32.mrf.mxu0
      %v3297 = vadd.f32 %v3065, %v3296
      %v3298 = vpop.f32.mrf.mxu0
      %v3299 = vadd.f32 %v3069, %v3298
      %v3300 = vpop.f32.mrf.mxu0
      %v3301 = vadd.f32 %v3065, %v3300
      %v3302 = vpop.f32.mrf.mxu0
      %v3303 = vadd.f32 %v3069, %v3302
      %3304 = vmatprep.mubr.bf16.mxu0 0
      %3305 = vmatmul.mubr.bf16.gmra.mxu0 %v3040
      %v3306 = vpop.f32.mrf.mxu0
      %v3307 = vadd.f32 %v3065, %v3306
      %v3308 = vpop.f32.mrf.mxu0
      %v3309 = vadd.f32 %v3069, %v3308
      %v3310 = vpop.f32.mrf.mxu0
      %v3311 = vadd.f32 %v3065, %v3310
      %v3312 = vpop.f32.mrf.mxu0
      %v3313 = vadd.f32 %v3069, %v3312
      %3314 = vmatprep.mubr.bf16.mxu0 0
      %3315 = vmatmul.mubr.bf16.gmra.mxu0 %v3041
      %v3316 = vpop.f32.mrf.mxu0
      %v3317 = vadd.f32 %v3065, %v3316
      %v3318 = vpop.f32.mrf.mxu0
      %v3319 = vadd.f32 %v3069, %v3318
      %v3320 = vpop.f32.mrf.mxu0
      %v3321 = vadd.f32 %v3065, %v3320
      %v3322 = vpop.f32.mrf.mxu0
      %v3323 = vadd.f32 %v3069, %v3322
      %3324 = vmatprep.mubr.bf16.mxu0 0
      %3325 = vmatmul.mubr.bf16.gmra.mxu0 %v3042
      %v3326 = vpop.f32.mrf.mxu0
      %v3327 = vadd.f32 %v3065, %v3326
      %v3328 = vpop.f32.mrf.mxu0
      %v3329 = vadd.f32 %v3069, %v3328
      %v3330 = vpop.f32.mrf.mxu0
      %v3331 = vadd.f32 %v3065, %v3330
      %v3332 = vpop.f32.mrf.mxu0
      %v3333 = vadd.f32 %v3069, %v3332
      %3334 = vmatprep.mubr.bf16.mxu0 0
      %3335 = vmatmul.mubr.bf16.gmra.mxu0 %v3043
      %v3336 = vpop.f32.mrf.mxu0
      %v3337 = vadd.f32 %v3065, %v3336
      %v3338 = vpop.f32.mrf.mxu0
      %v3339 = vadd.f32 %v3069, %v3338
      %v3340 = vpop.f32.mrf.mxu0
      %v3341 = vadd.f32 %v3065, %v3340
      %v3342 = vpop.f32.mrf.mxu0
      %v3343 = vadd.f32 %v3069, %v3342
      %3344 = vdwg.mxu0
      %v3345 = vmul.f32 %v3187, 0.5
      %v3346 = vmul.f32 %v3189, 0.5
      %v3347 = vmul.f32 %v3191, 0.5
      %v3348 = vmul.f32 %v3193, 0.5
      %v3349 = vmul.f32 %v3197, 0.5
      %v3350 = vmul.f32 %v3199, 0.5
      %v3351 = vmul.f32 %v3201, 0.5
      %v3352 = vmul.f32 %v3203, 0.5
      %v3353 = vmul.f32 %v3207, 0.5
      %v3354 = vmul.f32 %v3209, 0.5
      %v3355 = vmul.f32 %v3211, 0.5
      %v3356 = vmul.f32 %v3213, 0.5
      %v3357 = vmul.f32 %v3217, 0.5
      %v3358 = vmul.f32 %v3219, 0.5
      %v3359 = vmul.f32 %v3221, 0.5
      %v3360 = vmul.f32 %v3223, 0.5
      %v3361 = vmul.f32 %v3227, 0.5
      %v3362 = vmul.f32 %v3229, 0.5
      %v3363 = vmul.f32 %v3231, 0.5
      %v3364 = vmul.f32 %v3233, 0.5
      %v3365 = vmul.f32 %v3237, 0.5
      %v3366 = vmul.f32 %v3239, 0.5
      %v3367 = vmul.f32 %v3241, 0.5
      %v3368 = vmul.f32 %v3243, 0.5
      %v3369 = vmul.f32 %v3247, 0.5
      %v3370 = vmul.f32 %v3249, 0.5
      %v3371 = vmul.f32 %v3251, 0.5
      %v3372 = vmul.f32 %v3253, 0.5
      %v3373 = vmul.f32 %v3257, 0.5
      %v3374 = vmul.f32 %v3259, 0.5
      %v3375 = vmul.f32 %v3261, 0.5
      %v3376 = vmul.f32 %v3263, 0.5
      %v3377 = vmul.f32 %v3267, 0.5
      %v3378 = vmul.f32 %v3269, 0.5
      %v3379 = vmul.f32 %v3271, 0.5
      %v3380 = vmul.f32 %v3273, 0.5
      %v3381 = vmul.f32 %v3277, 0.5
      %v3382 = vmul.f32 %v3279, 0.5
      %v3383 = vmul.f32 %v3281, 0.5
      %v3384 = vmul.f32 %v3283, 0.5
      %v3385 = vmul.f32 %v3287, 0.5
      %v3386 = vmul.f32 %v3289, 0.5
      %v3387 = vmul.f32 %v3291, 0.5
      %v3388 = vmul.f32 %v3293, 0.5
      %v3389 = vmul.f32 %v3297, 0.5
      %v3390 = vmul.f32 %v3299, 0.5
      %v3391 = vmul.f32 %v3301, 0.5
      %v3392 = vmul.f32 %v3303, 0.5
      %v3393 = vmul.f32 %v3307, 0.5
      %v3394 = vmul.f32 %v3309, 0.5
      %v3395 = vmul.f32 %v3311, 0.5
      %v3396 = vmul.f32 %v3313, 0.5
      %v3397 = vmul.f32 %v3317, 0.5
      %v3398 = vmul.f32 %v3319, 0.5
      %v3399 = vmul.f32 %v3321, 0.5
      %v3400 = vmul.f32 %v3323, 0.5
      %v3401 = vmul.f32 %v3327, 0.5
      %v3402 = vmul.f32 %v3329, 0.5
      %v3403 = vmul.f32 %v3331, 0.5
      %v3404 = vmul.f32 %v3333, 0.5
      %v3405 = vmul.f32 %v3337, 0.5
      %v3406 = vmul.f32 %v3339, 0.5
      %v3407 = vmul.f32 %v3341, 0.5
      %v3408 = vmul.f32 %v3343, 0.5
      %v3409 = vtanh.pop %v3345
      %v3410 = vtanh.pop %v3346
      %v3411 = vtanh.pop %v3347
      %v3412 = vtanh.pop %v3348
      %v3413 = vtanh.pop %v3349
      %v3414 = vtanh.pop %v3350
      %v3415 = vtanh.pop %v3351
      %v3416 = vtanh.pop %v3352
      %v3417 = vtanh.pop %v3353
      %v3418 = vtanh.pop %v3354
      %v3419 = vtanh.pop %v3355
      %v3420 = vtanh.pop %v3356
      %v3421 = vtanh.pop %v3357
      %v3422 = vtanh.pop %v3358
      %v3423 = vtanh.pop %v3359
      %v3424 = vtanh.pop %v3360
      %v3425 = vtanh.pop %v3361
      %v3426 = vtanh.pop %v3362
      %v3427 = vtanh.pop %v3363
      %v3428 = vtanh.pop %v3364
      %v3429 = vtanh.pop %v3365
      %v3430 = vtanh.pop %v3366
      %v3431 = vtanh.pop %v3367
      %v3432 = vtanh.pop %v3368
      %v3433 = vtanh.pop %v3369
      %v3434 = vtanh.pop %v3370
      %v3435 = vtanh.pop %v3371
      %v3436 = vtanh.pop %v3372
      %v3437 = vtanh.pop %v3373
      %v3438 = vtanh.pop %v3374
      %v3439 = vtanh.pop %v3375
      %v3440 = vtanh.pop %v3376
      %v3441 = vtanh.pop %v3377
      %v3442 = vtanh.pop %v3378
      %v3443 = vtanh.pop %v3379
      %v3444 = vtanh.pop %v3380
      %v3445 = vtanh.pop %v3381
      %v3446 = vtanh.pop %v3382
      %v3447 = vtanh.pop %v3383
      %v3448 = vtanh.pop %v3384
      %v3449 = vtanh.pop %v3385
      %v3450 = vtanh.pop %v3386
      %v3451 = vtanh.pop %v3387
      %v3452 = vtanh.pop %v3388
      %v3453 = vtanh.pop %v3389
      %v3454 = vtanh.pop %v3390
      %v3455 = vtanh.pop %v3391
      %v3456 = vtanh.pop %v3392
      %v3457 = vtanh.pop %v3393
      %v3458 = vtanh.pop %v3394
      %v3459 = vtanh.pop %v3395
      %v3460 = vtanh.pop %v3396
      %v3461 = vtanh.pop %v3397
      %v3462 = vtanh.pop %v3398
      %v3463 = vtanh.pop %v3399
      %v3464 = vtanh.pop %v3400
      %v3465 = vtanh.pop %v3401
      %v3466 = vtanh.pop %v3402
      %v3467 = vtanh.pop %v3403
      %v3468 = vtanh.pop %v3404
      %v3469 = vtanh.pop %v3405
      %v3470 = vtanh.pop %v3406
      %v3471 = vtanh.pop %v3407
      %v3472 = vtanh.pop %v3408
      %v3473 = vmul.f32 %v3409, 0.5
      %v3474 = vmul.f32 %v3410, 0.5
      %v3475 = vmul.f32 %v3411, 0.5
      %v3476 = vmul.f32 %v3412, 0.5
      %v3477 = vmul.f32 %v3413, 0.5
      %v3478 = vmul.f32 %v3414, 0.5
      %v3479 = vmul.f32 %v3415, 0.5
      %v3480 = vmul.f32 %v3416, 0.5
      %v3481 = vmul.f32 %v3417, 0.5
      %v3482 = vmul.f32 %v3418, 0.5
      %v3483 = vmul.f32 %v3419, 0.5
      %v3484 = vmul.f32 %v3420, 0.5
      %v3485 = vmul.f32 %v3421, 0.5
      %v3486 = vmul.f32 %v3422, 0.5
      %v3487 = vmul.f32 %v3423, 0.5
      %v3488 = vmul.f32 %v3424, 0.5
      %v3489 = vmul.f32 %v3425, 0.5
      %v3490 = vmul.f32 %v3426, 0.5
      %v3491 = vmul.f32 %v3427, 0.5
      %v3492 = vmul.f32 %v3428, 0.5
      %v3493 = vmul.f32 %v3429, 0.5
      %v3494 = vmul.f32 %v3430, 0.5
      %v3495 = vmul.f32 %v3431, 0.5
      %v3496 = vmul.f32 %v3432, 0.5
      %v3497 = vmul.f32 %v3433, 0.5
      %v3498 = vmul.f32 %v3434, 0.5
      %v3499 = vmul.f32 %v3435, 0.5
      %v3500 = vmul.f32 %v3436, 0.5
      %v3501 = vmul.f32 %v3437, 0.5
      %v3502 = vmul.f32 %v3438, 0.5
      %v3503 = vmul.f32 %v3439, 0.5
      %v3504 = vmul.f32 %v3440, 0.5
      %v3505 = vmul.f32 %v3441, 0.5
      %v3506 = vmul.f32 %v3442, 0.5
      %v3507 = vmul.f32 %v3443, 0.5
      %v3508 = vmul.f32 %v3444, 0.5
      %v3509 = vmul.f32 %v3445, 0.5
      %v3510 = vmul.f32 %v3446, 0.5
      %v3511 = vmul.f32 %v3447, 0.5
      %v3512 = vmul.f32 %v3448, 0.5
      %v3513 = vmul.f32 %v3449, 0.5
      %v3514 = vmul.f32 %v3450, 0.5
      %v3515 = vmul.f32 %v3451, 0.5
      %v3516 = vmul.f32 %v3452, 0.5
      %v3517 = vmul.f32 %v3453, 0.5
      %v3518 = vmul.f32 %v3454, 0.5
      %v3519 = vmul.f32 %v3455, 0.5
      %v3520 = vmul.f32 %v3456, 0.5
      %v3521 = vmul.f32 %v3457, 0.5
      %v3522 = vmul.f32 %v3458, 0.5
      %v3523 = vmul.f32 %v3459, 0.5
      %v3524 = vmul.f32 %v3460, 0.5
      %v3525 = vmul.f32 %v3461, 0.5
      %v3526 = vmul.f32 %v3462, 0.5
      %v3527 = vmul.f32 %v3463, 0.5
      %v3528 = vmul.f32 %v3464, 0.5
      %v3529 = vmul.f32 %v3465, 0.5
      %v3530 = vmul.f32 %v3466, 0.5
      %v3531 = vmul.f32 %v3467, 0.5
      %v3532 = vmul.f32 %v3468, 0.5
      %v3533 = vmul.f32 %v3469, 0.5
      %v3534 = vmul.f32 %v3470, 0.5
      %v3535 = vmul.f32 %v3471, 0.5
      %v3536 = vmul.f32 %v3472, 0.5
      %v3537 = vadd.f32 %v3473, 0.5
      %v3538 = vadd.f32 %v3474, 0.5
      %v3539 = vadd.f32 %v3475, 0.5
      %v3540 = vadd.f32 %v3476, 0.5
      %v3541 = vadd.f32 %v3477, 0.5
      %v3542 = vadd.f32 %v3478, 0.5
      %v3543 = vadd.f32 %v3479, 0.5
      %v3544 = vadd.f32 %v3480, 0.5
      %v3545 = vadd.f32 %v3481, 0.5
      %v3546 = vadd.f32 %v3482, 0.5
      %v3547 = vadd.f32 %v3483, 0.5
      %v3548 = vadd.f32 %v3484, 0.5
      %v3549 = vadd.f32 %v3485, 0.5
      %v3550 = vadd.f32 %v3486, 0.5
      %v3551 = vadd.f32 %v3487, 0.5
      %v3552 = vadd.f32 %v3488, 0.5
      %v3553 = vadd.f32 %v3489, 0.5
      %v3554 = vadd.f32 %v3490, 0.5
      %v3555 = vadd.f32 %v3491, 0.5
      %v3556 = vadd.f32 %v3492, 0.5
      %v3557 = vadd.f32 %v3493, 0.5
      %v3558 = vadd.f32 %v3494, 0.5
      %v3559 = vadd.f32 %v3495, 0.5
      %v3560 = vadd.f32 %v3496, 0.5
      %v3561 = vadd.f32 %v3497, 0.5
      %v3562 = vadd.f32 %v3498, 0.5
      %v3563 = vadd.f32 %v3499, 0.5
      %v3564 = vadd.f32 %v3500, 0.5
      %v3565 = vadd.f32 %v3501, 0.5
      %v3566 = vadd.f32 %v3502, 0.5
      %v3567 = vadd.f32 %v3503, 0.5
      %v3568 = vadd.f32 %v3504, 0.5
      %v3569 = vadd.f32 %v3505, 0.5
      %v3570 = vadd.f32 %v3506, 0.5
      %v3571 = vadd.f32 %v3507, 0.5
      %v3572 = vadd.f32 %v3508, 0.5
      %v3573 = vadd.f32 %v3509, 0.5
      %v3574 = vadd.f32 %v3510, 0.5
      %v3575 = vadd.f32 %v3511, 0.5
      %v3576 = vadd.f32 %v3512, 0.5
      %v3577 = vadd.f32 %v3513, 0.5
      %v3578 = vadd.f32 %v3514, 0.5
      %v3579 = vadd.f32 %v3515, 0.5
      %v3580 = vadd.f32 %v3516, 0.5
      %v3581 = vadd.f32 %v3517, 0.5
      %v3582 = vadd.f32 %v3518, 0.5
      %v3583 = vadd.f32 %v3519, 0.5
      %v3584 = vadd.f32 %v3520, 0.5
      %v3585 = vadd.f32 %v3521, 0.5
      %v3586 = vadd.f32 %v3522, 0.5
      %v3587 = vadd.f32 %v3523, 0.5
      %v3588 = vadd.f32 %v3524, 0.5
      %v3589 = vadd.f32 %v3525, 0.5
      %v3590 = vadd.f32 %v3526, 0.5
      %v3591 = vadd.f32 %v3527, 0.5
      %v3592 = vadd.f32 %v3528, 0.5
      %v3593 = vadd.f32 %v3529, 0.5
      %v3594 = vadd.f32 %v3530, 0.5
      %v3595 = vadd.f32 %v3531, 0.5
      %v3596 = vadd.f32 %v3532, 0.5
      %v3597 = vadd.f32 %v3533, 0.5
      %v3598 = vadd.f32 %v3534, 0.5
      %v3599 = vadd.f32 %v3535, 0.5
      %v3600 = vadd.f32 %v3536, 0.5
      %v3601 = vpack.c.bf16 %v3539, %v3537
      %v3602 = vpack.c.bf16 %v3540, %v3538
      %v3603 = vpack.c.bf16 %v3543, %v3541
      %v3604 = vpack.c.bf16 %v3544, %v3542
      %v3605 = vpack.c.bf16 %v3547, %v3545
      %v3606 = vpack.c.bf16 %v3548, %v3546
      %v3607 = vpack.c.bf16 %v3551, %v3549
      %v3608 = vpack.c.bf16 %v3552, %v3550
      %v3609 = vpack.c.bf16 %v3555, %v3553
      %v3610 = vpack.c.bf16 %v3556, %v3554
      %v3611 = vpack.c.bf16 %v3559, %v3557
      %v3612 = vpack.c.bf16 %v3560, %v3558
      %v3613 = vpack.c.bf16 %v3563, %v3561
      %v3614 = vpack.c.bf16 %v3564, %v3562
      %v3615 = vpack.c.bf16 %v3567, %v3565
      %v3616 = vpack.c.bf16 %v3568, %v3566
      %v3617 = vpack.c.bf16 %v3571, %v3569
      %v3618 = vpack.c.bf16 %v3572, %v3570
      %v3619 = vpack.c.bf16 %v3575, %v3573
      %v3620 = vpack.c.bf16 %v3576, %v3574
      %v3621 = vpack.c.bf16 %v3579, %v3577
      %v3622 = vpack.c.bf16 %v3580, %v3578
      %v3623 = vpack.c.bf16 %v3583, %v3581
      %v3624 = vpack.c.bf16 %v3584, %v3582
      %v3625 = vpack.c.bf16 %v3587, %v3585
      %v3626 = vpack.c.bf16 %v3588, %v3586
      %v3627 = vpack.c.bf16 %v3591, %v3589
      %v3628 = vpack.c.bf16 %v3592, %v3590
      %v3629 = vpack.c.bf16 %v3595, %v3593
      %v3630 = vpack.c.bf16 %v3596, %v3594
      %v3631 = vpack.c.bf16 %v3599, %v3597
      %v3632 = vpack.c.bf16 %v3600, %v3598
      %v3633 = vld [vmem:[%s6] sm:$0xff]
      %v3634 = vld [vmem:[%s6 + $0x8] sm:$0xff]
      %v3635 = vld [vmem:[%s6 + $0x10] sm:$0xff]
      %v3636 = vld [vmem:[%s6 + $0x18] sm:$0xff]
      %v3637 = vld [vmem:[%s6 + $0x20] sm:$0xff]
      %v3638 = vld [vmem:[%s6 + $0x28] sm:$0xff]
      %v3639 = vld [vmem:[%s6 + $0x30] sm:$0xff]
      %v3640 = vld [vmem:[%s6 + $0x38] sm:$0xff]
      %v3641 = vld [vmem:[%s6 + $0x40] sm:$0xff]
      %v3642 = vld [vmem:[%s6 + $0x48] sm:$0xff]
      %v3643 = vld [vmem:[%s6 + $0x50] sm:$0xff]
      %v3644 = vld [vmem:[%s6 + $0x58] sm:$0xff]
      %v3645 = vld [vmem:[%s6 + $0x60] sm:$0xff]
      %v3646 = vld [vmem:[%s6 + $0x68] sm:$0xff]
      %v3647 = vld [vmem:[%s6 + $0x70] sm:$0xff]
      %v3648 = vld [vmem:[%s6 + $0x78] sm:$0xff]
      %v3649 = vld [vmem:[%s6 + $0x80] sm:$0xff]
      %v3650 = vld [vmem:[%s6 + $0x88] sm:$0xff]
      %v3651 = vld [vmem:[%s6 + $0x90] sm:$0xff]
      %v3652 = vld [vmem:[%s6 + $0x98] sm:$0xff]
      %v3653 = vld [vmem:[%s6 + $0xa0] sm:$0xff]
      %v3654 = vld [vmem:[%s6 + $0xa8] sm:$0xff]
      %v3655 = vld [vmem:[%s6 + $0xb0] sm:$0xff]
      %v3656 = vld [vmem:[%s6 + $0xb8] sm:$0xff]
      %v3657 = vld [vmem:[%s6 + $0xc0] sm:$0xff]
      %v3658 = vld [vmem:[%s6 + $0xc8] sm:$0xff]
      %v3659 = vld [vmem:[%s6 + $0xd0] sm:$0xff]
      %v3660 = vld [vmem:[%s6 + $0xd8] sm:$0xff]
      %v3661 = vld [vmem:[%s6 + $0xe0] sm:$0xff]
      %v3662 = vld [vmem:[%s6 + $0xe8] sm:$0xff]
      %v3663 = vld [vmem:[%s6 + $0xf0] sm:$0xff]
      %v3664 = vld [vmem:[%s6 + $0xf8] sm:$0xff]
      %v3665 = vld [vmem:[%s6 + $0x100] sm:$0xff]
      %v3666 = vld [vmem:[%s6 + $0x108] sm:$0xff]
      %v3667 = vld [vmem:[%s6 + $0x110] sm:$0xff]
      %v3668 = vld [vmem:[%s6 + $0x118] sm:$0xff]
      %v3669 = vld [vmem:[%s6 + $0x120] sm:$0xff]
      %v3670 = vld [vmem:[%s6 + $0x128] sm:$0xff]
      %v3671 = vld [vmem:[%s6 + $0x130] sm:$0xff]
      %v3672 = vld [vmem:[%s6 + $0x138] sm:$0xff]
      %v3673 = vld [vmem:[%s6 + $0x140] sm:$0xff]
      %v3674 = vld [vmem:[%s6 + $0x148] sm:$0xff]
      %v3675 = vld [vmem:[%s6 + $0x150] sm:$0xff]
      %v3676 = vld [vmem:[%s6 + $0x158] sm:$0xff]
      %v3677 = vld [vmem:[%s6 + $0x160] sm:$0xff]
      %v3678 = vld [vmem:[%s6 + $0x168] sm:$0xff]
      %v3679 = vld [vmem:[%s6 + $0x170] sm:$0xff]
      %v3680 = vld [vmem:[%s6 + $0x178] sm:$0xff]
      %v3681 = vld [vmem:[%s6 + $0x180] sm:$0xff]
      %v3682 = vld [vmem:[%s6 + $0x188] sm:$0xff]
      %v3683 = vld [vmem:[%s6 + $0x190] sm:$0xff]
      %v3684 = vld [vmem:[%s6 + $0x198] sm:$0xff]
      %v3685 = vld [vmem:[%s6 + $0x1a0] sm:$0xff]
      %v3686 = vld [vmem:[%s6 + $0x1a8] sm:$0xff]
      %v3687 = vld [vmem:[%s6 + $0x1b0] sm:$0xff]
      %v3688 = vld [vmem:[%s6 + $0x1b8] sm:$0xff]
      %v3689 = vld [vmem:[%s6 + $0x1c0] sm:$0xff]
      %v3690 = vld [vmem:[%s6 + $0x1c8] sm:$0xff]
      %v3691 = vld [vmem:[%s6 + $0x1d0] sm:$0xff]
      %v3692 = vld [vmem:[%s6 + $0x1d8] sm:$0xff]
      %v3693 = vld [vmem:[%s6 + $0x1e0] sm:$0xff]
      %v3694 = vld [vmem:[%s6 + $0x1e8] sm:$0xff]
      %v3695 = vld [vmem:[%s6 + $0x1f0] sm:$0xff]
      %v3696 = vld [vmem:[%s6 + $0x1f8] sm:$0xff]
      %v3697 = vld [vmem:[%s12] sm:$0xf]
      %v3699 = vlaneseq
      %v3700 = vshrl.u32 %v3699, 7
      %v3701 = vsub.s32 0, %v3700
      %v3702 = vrot.slane %v3697, %v3701
      %v3703 = vlaneseq
      %v3704 = vshrl.u32 %v3703, 7
      %v3705 = vsub.s32 1, %v3704
      %v3706 = vrot.slane %v3697, %v3705
      %v3707 = vlaneseq
      %v3708 = vshrl.u32 %v3707, 7
      %v3709 = vsub.s32 2, %v3708
      %v3710 = vrot.slane %v3697, %v3709
      %v3711 = vlaneseq
      %v3712 = vshrl.u32 %v3711, 7
      %v3713 = vsub.s32 3, %v3712
      %v3714 = vrot.slane %v3697, %v3713
      %v3783 = vunpack.c.l.b16 %v3633
      %v3784 = vunpack.c.h.b16 %v3633
      %v3785 = vunpack.c.l.b16 %v3634
      %v3786 = vunpack.c.h.b16 %v3634
      %v3787 = vunpack.c.l.b16 %v3635
      %v3788 = vunpack.c.h.b16 %v3635
      %v3789 = vunpack.c.l.b16 %v3636
      %v3790 = vunpack.c.h.b16 %v3636
      %v3791 = vunpack.c.l.b16 %v3637
      %v3792 = vunpack.c.h.b16 %v3637
      %v3793 = vunpack.c.l.b16 %v3638
      %v3794 = vunpack.c.h.b16 %v3638
      %v3795 = vunpack.c.l.b16 %v3639
      %v3796 = vunpack.c.h.b16 %v3639
      %v3797 = vunpack.c.l.b16 %v3640
      %v3798 = vunpack.c.h.b16 %v3640
      %v3799 = vunpack.c.l.b16 %v3641
      %v3800 = vunpack.c.h.b16 %v3641
      %v3801 = vunpack.c.l.b16 %v3642
      %v3802 = vunpack.c.h.b16 %v3642
      %v3803 = vunpack.c.l.b16 %v3643
      %v3804 = vunpack.c.h.b16 %v3643
      %v3805 = vunpack.c.l.b16 %v3644
      %v3806 = vunpack.c.h.b16 %v3644
      %v3807 = vunpack.c.l.b16 %v3645
      %v3808 = vunpack.c.h.b16 %v3645
      %v3809 = vunpack.c.l.b16 %v3646
      %v3810 = vunpack.c.h.b16 %v3646
      %v3811 = vunpack.c.l.b16 %v3647
      %v3812 = vunpack.c.h.b16 %v3647
      %v3813 = vunpack.c.l.b16 %v3648
      %v3814 = vunpack.c.h.b16 %v3648
      %v3815 = vunpack.c.l.b16 %v3649
      %v3816 = vunpack.c.h.b16 %v3649
      %v3817 = vunpack.c.l.b16 %v3650
      %v3818 = vunpack.c.h.b16 %v3650
      %v3819 = vunpack.c.l.b16 %v3651
      %v3820 = vunpack.c.h.b16 %v3651
      %v3821 = vunpack.c.l.b16 %v3652
      %v3822 = vunpack.c.h.b16 %v3652
      %v3823 = vunpack.c.l.b16 %v3653
      %v3824 = vunpack.c.h.b16 %v3653
      %v3825 = vunpack.c.l.b16 %v3654
      %v3826 = vunpack.c.h.b16 %v3654
      %v3827 = vunpack.c.l.b16 %v3655
      %v3828 = vunpack.c.h.b16 %v3655
      %v3829 = vunpack.c.l.b16 %v3656
      %v3830 = vunpack.c.h.b16 %v3656
      %v3831 = vunpack.c.l.b16 %v3657
      %v3832 = vunpack.c.h.b16 %v3657
      %v3833 = vunpack.c.l.b16 %v3658
      %v3834 = vunpack.c.h.b16 %v3658
      %v3835 = vunpack.c.l.b16 %v3659
      %v3836 = vunpack.c.h.b16 %v3659
      %v3837 = vunpack.c.l.b16 %v3660
      %v3838 = vunpack.c.h.b16 %v3660
      %v3839 = vunpack.c.l.b16 %v3661
      %v3840 = vunpack.c.h.b16 %v3661
      %v3841 = vunpack.c.l.b16 %v3662
      %v3842 = vunpack.c.h.b16 %v3662
      %v3843 = vunpack.c.l.b16 %v3663
      %v3844 = vunpack.c.h.b16 %v3663
      %v3845 = vunpack.c.l.b16 %v3664
      %v3846 = vunpack.c.h.b16 %v3664
      %v3847 = vunpack.c.l.b16 %v3665
      %v3848 = vunpack.c.h.b16 %v3665
      %v3849 = vunpack.c.l.b16 %v3666
      %v3850 = vunpack.c.h.b16 %v3666
      %v3851 = vunpack.c.l.b16 %v3667
      %v3852 = vunpack.c.h.b16 %v3667
      %v3853 = vunpack.c.l.b16 %v3668
      %v3854 = vunpack.c.h.b16 %v3668
      %v3855 = vunpack.c.l.b16 %v3669
      %v3856 = vunpack.c.h.b16 %v3669
      %v3857 = vunpack.c.l.b16 %v3670
      %v3858 = vunpack.c.h.b16 %v3670
      %v3859 = vunpack.c.l.b16 %v3671
      %v3860 = vunpack.c.h.b16 %v3671
      %v3861 = vunpack.c.l.b16 %v3672
      %v3862 = vunpack.c.h.b16 %v3672
      %v3863 = vunpack.c.l.b16 %v3673
      %v3864 = vunpack.c.h.b16 %v3673
      %v3865 = vunpack.c.l.b16 %v3674
      %v3866 = vunpack.c.h.b16 %v3674
      %v3867 = vunpack.c.l.b16 %v3675
      %v3868 = vunpack.c.h.b16 %v3675
      %v3869 = vunpack.c.l.b16 %v3676
      %v3870 = vunpack.c.h.b16 %v3676
      %v3871 = vunpack.c.l.b16 %v3677
      %v3872 = vunpack.c.h.b16 %v3677
      %v3873 = vunpack.c.l.b16 %v3678
      %v3874 = vunpack.c.h.b16 %v3678
      %v3875 = vunpack.c.l.b16 %v3679
      %v3876 = vunpack.c.h.b16 %v3679
      %v3877 = vunpack.c.l.b16 %v3680
      %v3878 = vunpack.c.h.b16 %v3680
      %v3879 = vunpack.c.l.b16 %v3681
      %v3880 = vunpack.c.h.b16 %v3681
      %v3881 = vunpack.c.l.b16 %v3682
      %v3882 = vunpack.c.h.b16 %v3682
      %v3883 = vunpack.c.l.b16 %v3683
      %v3884 = vunpack.c.h.b16 %v3683
      %v3885 = vunpack.c.l.b16 %v3684
      %v3886 = vunpack.c.h.b16 %v3684
      %v3887 = vunpack.c.l.b16 %v3685
      %v3888 = vunpack.c.h.b16 %v3685
      %v3889 = vunpack.c.l.b16 %v3686
      %v3890 = vunpack.c.h.b16 %v3686
      %v3891 = vunpack.c.l.b16 %v3687
      %v3892 = vunpack.c.h.b16 %v3687
      %v3893 = vunpack.c.l.b16 %v3688
      %v3894 = vunpack.c.h.b16 %v3688
      %v3895 = vunpack.c.l.b16 %v3689
      %v3896 = vunpack.c.h.b16 %v3689
      %v3897 = vunpack.c.l.b16 %v3690
      %v3898 = vunpack.c.h.b16 %v3690
      %v3899 = vunpack.c.l.b16 %v3691
      %v3900 = vunpack.c.h.b16 %v3691
      %v3901 = vunpack.c.l.b16 %v3692
      %v3902 = vunpack.c.h.b16 %v3692
      %v3903 = vunpack.c.l.b16 %v3693
      %v3904 = vunpack.c.h.b16 %v3693
      %v3905 = vunpack.c.l.b16 %v3694
      %v3906 = vunpack.c.h.b16 %v3694
      %v3907 = vunpack.c.l.b16 %v3695
      %v3908 = vunpack.c.h.b16 %v3695
      %v3909 = vunpack.c.l.b16 %v3696
      %v3910 = vunpack.c.h.b16 %v3696
      %v3911 = vpack.c.b16 %v3787, %v3783
      %v3912 = vpack.c.b16 %v3788, %v3784
      %v3913 = vpack.c.b16 %v3789, %v3785
      %v3914 = vpack.c.b16 %v3790, %v3786
      %v3915 = vpack.c.b16 %v3795, %v3791
      %v3916 = vpack.c.b16 %v3796, %v3792
      %v3917 = vpack.c.b16 %v3797, %v3793
      %v3918 = vpack.c.b16 %v3798, %v3794
      %v3919 = vpack.c.b16 %v3803, %v3799
      %v3920 = vpack.c.b16 %v3804, %v3800
      %v3921 = vpack.c.b16 %v3805, %v3801
      %v3922 = vpack.c.b16 %v3806, %v3802
      %v3923 = vpack.c.b16 %v3811, %v3807
      %v3924 = vpack.c.b16 %v3812, %v3808
      %v3925 = vpack.c.b16 %v3813, %v3809
      %v3926 = vpack.c.b16 %v3814, %v3810
      %v3927 = vpack.c.b16 %v3819, %v3815
      %v3928 = vpack.c.b16 %v3820, %v3816
      %v3929 = vpack.c.b16 %v3821, %v3817
      %v3930 = vpack.c.b16 %v3822, %v3818
      %v3931 = vpack.c.b16 %v3827, %v3823
      %v3932 = vpack.c.b16 %v3828, %v3824
      %v3933 = vpack.c.b16 %v3829, %v3825
      %v3934 = vpack.c.b16 %v3830, %v3826
      %v3935 = vpack.c.b16 %v3835, %v3831
      %v3936 = vpack.c.b16 %v3836, %v3832
      %v3937 = vpack.c.b16 %v3837, %v3833
      %v3938 = vpack.c.b16 %v3838, %v3834
      %v3939 = vpack.c.b16 %v3843, %v3839
      %v3940 = vpack.c.b16 %v3844, %v3840
      %v3941 = vpack.c.b16 %v3845, %v3841
      %v3942 = vpack.c.b16 %v3846, %v3842
      %v3943 = vpack.c.b16 %v3851, %v3847
      %v3944 = vpack.c.b16 %v3852, %v3848
      %v3945 = vpack.c.b16 %v3853, %v3849
      %v3946 = vpack.c.b16 %v3854, %v3850
      %v3947 = vpack.c.b16 %v3859, %v3855
      %v3948 = vpack.c.b16 %v3860, %v3856
      %v3949 = vpack.c.b16 %v3861, %v3857
      %v3950 = vpack.c.b16 %v3862, %v3858
      %v3951 = vpack.c.b16 %v3867, %v3863
      %v3952 = vpack.c.b16 %v3868, %v3864
      %v3953 = vpack.c.b16 %v3869, %v3865
      %v3954 = vpack.c.b16 %v3870, %v3866
      %v3955 = vpack.c.b16 %v3875, %v3871
      %v3956 = vpack.c.b16 %v3876, %v3872
      %v3957 = vpack.c.b16 %v3877, %v3873
      %v3958 = vpack.c.b16 %v3878, %v3874
      %v3959 = vpack.c.b16 %v3883, %v3879
      %v3960 = vpack.c.b16 %v3884, %v3880
      %v3961 = vpack.c.b16 %v3885, %v3881
      %v3962 = vpack.c.b16 %v3886, %v3882
      %v3963 = vpack.c.b16 %v3891, %v3887
      %v3964 = vpack.c.b16 %v3892, %v3888
      %v3965 = vpack.c.b16 %v3893, %v3889
      %v3966 = vpack.c.b16 %v3894, %v3890
      %v3967 = vpack.c.b16 %v3899, %v3895
      %v3968 = vpack.c.b16 %v3900, %v3896
      %v3969 = vpack.c.b16 %v3901, %v3897
      %v3970 = vpack.c.b16 %v3902, %v3898
      %v3971 = vpack.c.b16 %v3907, %v3903
      %v3972 = vpack.c.b16 %v3908, %v3904
      %v3973 = vpack.c.b16 %v3909, %v3905
      %v3974 = vpack.c.b16 %v3910, %v3906
      %4039 = vmatprep.subr.bf16.mxu0 %v3940
      %4040 = vmatpush1.bf16.msra.mxu0 %v3939
      %4041 = vmatprep.subr.bf16.mxu0 %v3936
      %4042 = vmatpush1.bf16.msra.mxu0 %v3935
      %4043 = vmatprep.subr.bf16.mxu0 %v3932
      %4044 = vmatpush1.bf16.msra.mxu0 %v3931
      %4045 = vmatprep.subr.bf16.mxu0 %v3928
      %4046 = vmatpush1.bf16.msra.mxu0 %v3927
      %4047 = vmatprep.subr.bf16.mxu0 %v3924
      %4048 = vmatpush1.bf16.msra.mxu0 %v3923
      %4049 = vmatprep.subr.bf16.mxu0 %v3920
      %4050 = vmatpush1.bf16.msra.mxu0 %v3919
      %4051 = vmatprep.subr.bf16.mxu0 %v3916
      %4052 = vmatpush1.bf16.msra.mxu0 %v3915
      %4053 = vmatprep.subr.bf16.mxu0 %v3912
      %4054 = vmatpush1.bf16.msra.mxu0 %v3911
      %4055 = vmatprep.subr.bf16.mxu0 %v3972
      %4056 = vmatpush2.bf16.msra.mxu0 %v3971
      %4057 = vmatprep.subr.bf16.mxu0 %v3968
      %4058 = vmatpush2.bf16.msra.mxu0 %v3967
      %4059 = vmatprep.subr.bf16.mxu0 %v3964
      %4060 = vmatpush2.bf16.msra.mxu0 %v3963
      %4061 = vmatprep.subr.bf16.mxu0 %v3960
      %4062 = vmatpush2.bf16.msra.mxu0 %v3959
      %4063 = vmatprep.subr.bf16.mxu0 %v3956
      %4064 = vmatpush2.bf16.msra.mxu0 %v3955
      %4065 = vmatprep.subr.bf16.mxu0 %v3952
      %4066 = vmatpush2.bf16.msra.mxu0 %v3951
      %4067 = vmatprep.subr.bf16.mxu0 %v3948
      %4068 = vmatpush2.bf16.msra.mxu0 %v3947
      %4069 = vmatprep.subr.bf16.mxu0 %v3944
      %4070 = vmatpush2.bf16.msra.mxu0 %v3943
      %4071 = vmatprep.mubr.bf16.mxu0 %v3602
      %4072 = vmatmul.mubr.bf16.gmra.mxu0 %v3601
      %v4073 = vpop.f32.mrf.mxu0
      %v4074 = vadd.f32 %v3702, %v4073
      %v4075 = vpop.f32.mrf.mxu0
      %v4076 = vadd.f32 %v3706, %v4075
      %v4077 = vpop.f32.mrf.mxu0
      %v4078 = vadd.f32 %v3702, %v4077
      %v4079 = vpop.f32.mrf.mxu0
      %v4080 = vadd.f32 %v3706, %v4079
      %4081 = vmatprep.mubr.bf16.mxu0 %v3604
      %4082 = vmatmul.mubr.bf16.gmra.mxu0 %v3603
      %v4083 = vpop.f32.mrf.mxu0
      %v4084 = vadd.f32 %v3702, %v4083
      %v4085 = vpop.f32.mrf.mxu0
      %v4086 = vadd.f32 %v3706, %v4085
      %v4087 = vpop.f32.mrf.mxu0
      %v4088 = vadd.f32 %v3702, %v4087
      %v4089 = vpop.f32.mrf.mxu0
      %v4090 = vadd.f32 %v3706, %v4089
      %4091 = vmatprep.mubr.bf16.mxu0 %v3606
      %4092 = vmatmul.mubr.bf16.gmra.mxu0 %v3605
      %v4093 = vpop.f32.mrf.mxu0
      %v4094 = vadd.f32 %v3702, %v4093
      %v4095 = vpop.f32.mrf.mxu0
      %v4096 = vadd.f32 %v3706, %v4095
      %v4097 = vpop.f32.mrf.mxu0
      %v4098 = vadd.f32 %v3702, %v4097
      %v4099 = vpop.f32.mrf.mxu0
      %v4100 = vadd.f32 %v3706, %v4099
      %4101 = vmatprep.mubr.bf16.mxu0 %v3608
      %4102 = vmatmul.mubr.bf16.gmra.mxu0 %v3607
      %v4103 = vpop.f32.mrf.mxu0
      %v4104 = vadd.f32 %v3702, %v4103
      %v4105 = vpop.f32.mrf.mxu0
      %v4106 = vadd.f32 %v3706, %v4105
      %v4107 = vpop.f32.mrf.mxu0
      %v4108 = vadd.f32 %v3702, %v4107
      %v4109 = vpop.f32.mrf.mxu0
      %v4110 = vadd.f32 %v3706, %v4109
      %4111 = vmatprep.mubr.bf16.mxu0 %v3610
      %4112 = vmatmul.mubr.bf16.gmra.mxu0 %v3609
      %v4113 = vpop.f32.mrf.mxu0
      %v4114 = vadd.f32 %v3702, %v4113
      %v4115 = vpop.f32.mrf.mxu0
      %v4116 = vadd.f32 %v3706, %v4115
      %v4117 = vpop.f32.mrf.mxu0
      %v4118 = vadd.f32 %v3702, %v4117
      %v4119 = vpop.f32.mrf.mxu0
      %v4120 = vadd.f32 %v3706, %v4119
      %4121 = vmatprep.mubr.bf16.mxu0 %v3612
      %4122 = vmatmul.mubr.bf16.gmra.mxu0 %v3611
      %v4123 = vpop.f32.mrf.mxu0
      %v4124 = vadd.f32 %v3702, %v4123
      %v4125 = vpop.f32.mrf.mxu0
      %v4126 = vadd.f32 %v3706, %v4125
      %v4127 = vpop.f32.mrf.mxu0
      %v4128 = vadd.f32 %v3702, %v4127
      %v4129 = vpop.f32.mrf.mxu0
      %v4130 = vadd.f32 %v3706, %v4129
      %4131 = vmatprep.mubr.bf16.mxu0 %v3614
      %4132 = vmatmul.mubr.bf16.gmra.mxu0 %v3613
      %v4133 = vpop.f32.mrf.mxu0
      %v4134 = vadd.f32 %v3702, %v4133
      %v4135 = vpop.f32.mrf.mxu0
      %v4136 = vadd.f32 %v3706, %v4135
      %v4137 = vpop.f32.mrf.mxu0
      %v4138 = vadd.f32 %v3702, %v4137
      %v4139 = vpop.f32.mrf.mxu0
      %v4140 = vadd.f32 %v3706, %v4139
      %4141 = vmatprep.mubr.bf16.mxu0 %v3616
      %4142 = vmatmul.mubr.bf16.gmra.mxu0 %v3615
      %v4143 = vpop.f32.mrf.mxu0
      %v4144 = vadd.f32 %v3702, %v4143
      %v4145 = vpop.f32.mrf.mxu0
      %v4146 = vadd.f32 %v3706, %v4145
      %v4147 = vpop.f32.mrf.mxu0
      %v4148 = vadd.f32 %v3702, %v4147
      %v4149 = vpop.f32.mrf.mxu0
      %v4150 = vadd.f32 %v3706, %v4149
      %4151 = vmatprep.mubr.bf16.mxu0 %v3618
      %4152 = vmatmul.mubr.bf16.gmra.mxu0 %v3617
      %v4153 = vpop.f32.mrf.mxu0
      %v4154 = vadd.f32 %v3702, %v4153
      %v4155 = vpop.f32.mrf.mxu0
      %v4156 = vadd.f32 %v3706, %v4155
      %v4157 = vpop.f32.mrf.mxu0
      %v4158 = vadd.f32 %v3702, %v4157
      %v4159 = vpop.f32.mrf.mxu0
      %v4160 = vadd.f32 %v3706, %v4159
      %4161 = vmatprep.mubr.bf16.mxu0 %v3620
      %4162 = vmatmul.mubr.bf16.gmra.mxu0 %v3619
      %v4163 = vpop.f32.mrf.mxu0
      %v4164 = vadd.f32 %v3702, %v4163
      %v4165 = vpop.f32.mrf.mxu0
      %v4166 = vadd.f32 %v3706, %v4165
      %v4167 = vpop.f32.mrf.mxu0
      %v4168 = vadd.f32 %v3702, %v4167
      %v4169 = vpop.f32.mrf.mxu0
      %v4170 = vadd.f32 %v3706, %v4169
      %4171 = vmatprep.mubr.bf16.mxu0 %v3622
      %4172 = vmatmul.mubr.bf16.gmra.mxu0 %v3621
      %v4173 = vpop.f32.mrf.mxu0
      %v4174 = vadd.f32 %v3702, %v4173
      %v4175 = vpop.f32.mrf.mxu0
      %v4176 = vadd.f32 %v3706, %v4175
      %v4177 = vpop.f32.mrf.mxu0
      %v4178 = vadd.f32 %v3702, %v4177
      %v4179 = vpop.f32.mrf.mxu0
      %v4180 = vadd.f32 %v3706, %v4179
      %4181 = vmatprep.mubr.bf16.mxu0 %v3624
      %4182 = vmatmul.mubr.bf16.gmra.mxu0 %v3623
      %v4183 = vpop.f32.mrf.mxu0
      %v4184 = vadd.f32 %v3702, %v4183
      %v4185 = vpop.f32.mrf.mxu0
      %v4186 = vadd.f32 %v3706, %v4185
      %v4187 = vpop.f32.mrf.mxu0
      %v4188 = vadd.f32 %v3702, %v4187
      %v4189 = vpop.f32.mrf.mxu0
      %v4190 = vadd.f32 %v3706, %v4189
      %4191 = vmatprep.mubr.bf16.mxu0 %v3626
      %4192 = vmatmul.mubr.bf16.gmra.mxu0 %v3625
      %v4193 = vpop.f32.mrf.mxu0
      %v4194 = vadd.f32 %v3702, %v4193
      %v4195 = vpop.f32.mrf.mxu0
      %v4196 = vadd.f32 %v3706, %v4195
      %v4197 = vpop.f32.mrf.mxu0
      %v4198 = vadd.f32 %v3702, %v4197
      %v4199 = vpop.f32.mrf.mxu0
      %v4200 = vadd.f32 %v3706, %v4199
      %4201 = vmatprep.mubr.bf16.mxu0 %v3628
      %4202 = vmatmul.mubr.bf16.gmra.mxu0 %v3627
      %v4203 = vpop.f32.mrf.mxu0
      %v4204 = vadd.f32 %v3702, %v4203
      %v4205 = vpop.f32.mrf.mxu0
      %v4206 = vadd.f32 %v3706, %v4205
      %v4207 = vpop.f32.mrf.mxu0
      %v4208 = vadd.f32 %v3702, %v4207
      %v4209 = vpop.f32.mrf.mxu0
      %v4210 = vadd.f32 %v3706, %v4209
      %4211 = vmatprep.mubr.bf16.mxu0 %v3630
      %4212 = vmatmul.mubr.bf16.gmra.mxu0 %v3629
      %v4213 = vpop.f32.mrf.mxu0
      %v4214 = vadd.f32 %v3702, %v4213
      %v4215 = vpop.f32.mrf.mxu0
      %v4216 = vadd.f32 %v3706, %v4215
      %v4217 = vpop.f32.mrf.mxu0
      %v4218 = vadd.f32 %v3702, %v4217
      %v4219 = vpop.f32.mrf.mxu0
      %v4220 = vadd.f32 %v3706, %v4219
      %4221 = vmatprep.mubr.bf16.mxu0 %v3632
      %4222 = vmatmul.mubr.bf16.gmra.mxu0 %v3631
      %v4223 = vpop.f32.mrf.mxu0
      %v4224 = vadd.f32 %v3702, %v4223
      %v4225 = vpop.f32.mrf.mxu0
      %v4226 = vadd.f32 %v3706, %v4225
      %v4227 = vpop.f32.mrf.mxu0
      %v4228 = vadd.f32 %v3702, %v4227
      %v4229 = vpop.f32.mrf.mxu0
      %v4230 = vadd.f32 %v3706, %v4229
      %4231 = vdwg.mxu0
      %4232 = vmatprep.subr.bf16.mxu0 %v3942
      %4233 = vmatpush1.bf16.msra.mxu0 %v3941
      %4234 = vmatprep.subr.bf16.mxu0 %v3938
      %4235 = vmatpush1.bf16.msra.mxu0 %v3937
      %4236 = vmatprep.subr.bf16.mxu0 %v3934
      %4237 = vmatpush1.bf16.msra.mxu0 %v3933
      %4238 = vmatprep.subr.bf16.mxu0 %v3930
      %4239 = vmatpush1.bf16.msra.mxu0 %v3929
      %4240 = vmatprep.subr.bf16.mxu0 %v3926
      %4241 = vmatpush1.bf16.msra.mxu0 %v3925
      %4242 = vmatprep.subr.bf16.mxu0 %v3922
      %4243 = vmatpush1.bf16.msra.mxu0 %v3921
      %4244 = vmatprep.subr.bf16.mxu0 %v3918
      %4245 = vmatpush1.bf16.msra.mxu0 %v3917
      %4246 = vmatprep.subr.bf16.mxu0 %v3914
      %4247 = vmatpush1.bf16.msra.mxu0 %v3913
      %4248 = vmatprep.subr.bf16.mxu0 %v3974
      %4249 = vmatpush2.bf16.msra.mxu0 %v3973
      %4250 = vmatprep.subr.bf16.mxu0 %v3970
      %4251 = vmatpush2.bf16.msra.mxu0 %v3969
      %4252 = vmatprep.subr.bf16.mxu0 %v3966
      %4253 = vmatpush2.bf16.msra.mxu0 %v3965
      %4254 = vmatprep.subr.bf16.mxu0 %v3962
      %4255 = vmatpush2.bf16.msra.mxu0 %v3961
      %4256 = vmatprep.subr.bf16.mxu0 %v3958
      %4257 = vmatpush2.bf16.msra.mxu0 %v3957
      %4258 = vmatprep.subr.bf16.mxu0 %v3954
      %4259 = vmatpush2.bf16.msra.mxu0 %v3953
      %4260 = vmatprep.subr.bf16.mxu0 %v3950
      %4261 = vmatpush2.bf16.msra.mxu0 %v3949
      %4262 = vmatprep.subr.bf16.mxu0 %v3946
      %4263 = vmatpush2.bf16.msra.mxu0 %v3945
      %4264 = vmatprep.mubr.bf16.mxu0 %v3602
      %4265 = vmatmul.mubr.bf16.gmra.mxu0 %v3601
      %v4266 = vpop.f32.mrf.mxu0
      %v4267 = vadd.f32 %v3710, %v4266
      %v4268 = vpop.f32.mrf.mxu0
      %v4269 = vadd.f32 %v3714, %v4268
      %v4270 = vpop.f32.mrf.mxu0
      %v4271 = vadd.f32 %v3710, %v4270
      %v4272 = vpop.f32.mrf.mxu0
      %v4273 = vadd.f32 %v3714, %v4272
      %4274 = vmatprep.mubr.bf16.mxu0 %v3604
      %4275 = vmatmul.mubr.bf16.gmra.mxu0 %v3603
      %v4276 = vpop.f32.mrf.mxu0
      %v4277 = vadd.f32 %v3710, %v4276
      %v4278 = vpop.f32.mrf.mxu0
      %v4279 = vadd.f32 %v3714, %v4278
      %v4280 = vpop.f32.mrf.mxu0
      %v4281 = vadd.f32 %v3710, %v4280
      %v4282 = vpop.f32.mrf.mxu0
      %v4283 = vadd.f32 %v3714, %v4282
      %4284 = vmatprep.mubr.bf16.mxu0 %v3606
      %4285 = vmatmul.mubr.bf16.gmra.mxu0 %v3605
      %v4286 = vpop.f32.mrf.mxu0
      %v4287 = vadd.f32 %v3710, %v4286
      %v4288 = vpop.f32.mrf.mxu0
      %v4289 = vadd.f32 %v3714, %v4288
      %v4290 = vpop.f32.mrf.mxu0
      %v4291 = vadd.f32 %v3710, %v4290
      %v4292 = vpop.f32.mrf.mxu0
      %v4293 = vadd.f32 %v3714, %v4292
      %4294 = vmatprep.mubr.bf16.mxu0 %v3608
      %4295 = vmatmul.mubr.bf16.gmra.mxu0 %v3607
      %v4296 = vpop.f32.mrf.mxu0
      %v4297 = vadd.f32 %v3710, %v4296
      %v4298 = vpop.f32.mrf.mxu0
      %v4299 = vadd.f32 %v3714, %v4298
      %v4300 = vpop.f32.mrf.mxu0
      %v4301 = vadd.f32 %v3710, %v4300
      %v4302 = vpop.f32.mrf.mxu0
      %v4303 = vadd.f32 %v3714, %v4302
      %4304 = vmatprep.mubr.bf16.mxu0 %v3610
      %4305 = vmatmul.mubr.bf16.gmra.mxu0 %v3609
      %v4306 = vpop.f32.mrf.mxu0
      %v4307 = vadd.f32 %v3710, %v4306
      %v4308 = vpop.f32.mrf.mxu0
      %v4309 = vadd.f32 %v3714, %v4308
      %v4310 = vpop.f32.mrf.mxu0
      %v4311 = vadd.f32 %v3710, %v4310
      %v4312 = vpop.f32.mrf.mxu0
      %v4313 = vadd.f32 %v3714, %v4312
      %4314 = vmatprep.mubr.bf16.mxu0 %v3612
      %4315 = vmatmul.mubr.bf16.gmra.mxu0 %v3611
      %v4316 = vpop.f32.mrf.mxu0
      %v4317 = vadd.f32 %v3710, %v4316
      %v4318 = vpop.f32.mrf.mxu0
      %v4319 = vadd.f32 %v3714, %v4318
      %v4320 = vpop.f32.mrf.mxu0
      %v4321 = vadd.f32 %v3710, %v4320
      %v4322 = vpop.f32.mrf.mxu0
      %v4323 = vadd.f32 %v3714, %v4322
      %4324 = vmatprep.mubr.bf16.mxu0 %v3614
      %4325 = vmatmul.mubr.bf16.gmra.mxu0 %v3613
      %v4326 = vpop.f32.mrf.mxu0
      %v4327 = vadd.f32 %v3710, %v4326
      %v4328 = vpop.f32.mrf.mxu0
      %v4329 = vadd.f32 %v3714, %v4328
      %v4330 = vpop.f32.mrf.mxu0
      %v4331 = vadd.f32 %v3710, %v4330
      %v4332 = vpop.f32.mrf.mxu0
      %v4333 = vadd.f32 %v3714, %v4332
      %4334 = vmatprep.mubr.bf16.mxu0 %v3616
      %4335 = vmatmul.mubr.bf16.gmra.mxu0 %v3615
      %v4336 = vpop.f32.mrf.mxu0
      %v4337 = vadd.f32 %v3710, %v4336
      %v4338 = vpop.f32.mrf.mxu0
      %v4339 = vadd.f32 %v3714, %v4338
      %v4340 = vpop.f32.mrf.mxu0
      %v4341 = vadd.f32 %v3710, %v4340
      %v4342 = vpop.f32.mrf.mxu0
      %v4343 = vadd.f32 %v3714, %v4342
      %4344 = vmatprep.mubr.bf16.mxu0 %v3618
      %4345 = vmatmul.mubr.bf16.gmra.mxu0 %v3617
      %v4346 = vpop.f32.mrf.mxu0
      %v4347 = vadd.f32 %v3710, %v4346
      %v4348 = vpop.f32.mrf.mxu0
      %v4349 = vadd.f32 %v3714, %v4348
      %v4350 = vpop.f32.mrf.mxu0
      %v4351 = vadd.f32 %v3710, %v4350
      %v4352 = vpop.f32.mrf.mxu0
      %v4353 = vadd.f32 %v3714, %v4352
      %4354 = vmatprep.mubr.bf16.mxu0 %v3620
      %4355 = vmatmul.mubr.bf16.gmra.mxu0 %v3619
      %v4356 = vpop.f32.mrf.mxu0
      %v4357 = vadd.f32 %v3710, %v4356
      %v4358 = vpop.f32.mrf.mxu0
      %v4359 = vadd.f32 %v3714, %v4358
      %v4360 = vpop.f32.mrf.mxu0
      %v4361 = vadd.f32 %v3710, %v4360
      %v4362 = vpop.f32.mrf.mxu0
      %v4363 = vadd.f32 %v3714, %v4362
      %4364 = vmatprep.mubr.bf16.mxu0 %v3622
      %4365 = vmatmul.mubr.bf16.gmra.mxu0 %v3621
      %v4366 = vpop.f32.mrf.mxu0
      %v4367 = vadd.f32 %v3710, %v4366
      %v4368 = vpop.f32.mrf.mxu0
      %v4369 = vadd.f32 %v3714, %v4368
      %v4370 = vpop.f32.mrf.mxu0
      %v4371 = vadd.f32 %v3710, %v4370
      %v4372 = vpop.f32.mrf.mxu0
      %v4373 = vadd.f32 %v3714, %v4372
      %4374 = vmatprep.mubr.bf16.mxu0 %v3624
      %4375 = vmatmul.mubr.bf16.gmra.mxu0 %v3623
      %v4376 = vpop.f32.mrf.mxu0
      %v4377 = vadd.f32 %v3710, %v4376
      %v4378 = vpop.f32.mrf.mxu0
      %v4379 = vadd.f32 %v3714, %v4378
      %v4380 = vpop.f32.mrf.mxu0
      %v4381 = vadd.f32 %v3710, %v4380
      %v4382 = vpop.f32.mrf.mxu0
      %v4383 = vadd.f32 %v3714, %v4382
      %4384 = vmatprep.mubr.bf16.mxu0 %v3626
      %4385 = vmatmul.mubr.bf16.gmra.mxu0 %v3625
      %v4386 = vpop.f32.mrf.mxu0
      %v4387 = vadd.f32 %v3710, %v4386
      %v4388 = vpop.f32.mrf.mxu0
      %v4389 = vadd.f32 %v3714, %v4388
      %v4390 = vpop.f32.mrf.mxu0
      %v4391 = vadd.f32 %v3710, %v4390
      %v4392 = vpop.f32.mrf.mxu0
      %v4393 = vadd.f32 %v3714, %v4392
      %4394 = vmatprep.mubr.bf16.mxu0 %v3628
      %4395 = vmatmul.mubr.bf16.gmra.mxu0 %v3627
      %v4396 = vpop.f32.mrf.mxu0
      %v4397 = vadd.f32 %v3710, %v4396
      %v4398 = vpop.f32.mrf.mxu0
      %v4399 = vadd.f32 %v3714, %v4398
      %v4400 = vpop.f32.mrf.mxu0
      %v4401 = vadd.f32 %v3710, %v4400
      %v4402 = vpop.f32.mrf.mxu0
      %v4403 = vadd.f32 %v3714, %v4402
      %4404 = vmatprep.mubr.bf16.mxu0 %v3630
      %4405 = vmatmul.mubr.bf16.gmra.mxu0 %v3629
      %v4406 = vpop.f32.mrf.mxu0
      %v4407 = vadd.f32 %v3710, %v4406
      %v4408 = vpop.f32.mrf.mxu0
      %v4409 = vadd.f32 %v3714, %v4408
      %v4410 = vpop.f32.mrf.mxu0
      %v4411 = vadd.f32 %v3710, %v4410
      %v4412 = vpop.f32.mrf.mxu0
      %v4413 = vadd.f32 %v3714, %v4412
      %4414 = vmatprep.mubr.bf16.mxu0 %v3632
      %4415 = vmatmul.mubr.bf16.gmra.mxu0 %v3631
      %v4416 = vpop.f32.mrf.mxu0
      %v4417 = vadd.f32 %v3710, %v4416
      %v4418 = vpop.f32.mrf.mxu0
      %v4419 = vadd.f32 %v3714, %v4418
      %v4420 = vpop.f32.mrf.mxu0
      %v4421 = vadd.f32 %v3710, %v4420
      %v4422 = vpop.f32.mrf.mxu0
      %v4423 = vadd.f32 %v3714, %v4422
      %4424 = vdwg.mxu0
      %v4425 = vmul.f32 %v4074, 0.5
      %v4426 = vmul.f32 %v4076, 0.5
      %v4427 = vmul.f32 %v4267, 0.5
      %v4428 = vmul.f32 %v4269, 0.5
      %v4429 = vmul.f32 %v4078, 0.5
      %v4430 = vmul.f32 %v4080, 0.5
      %v4431 = vmul.f32 %v4271, 0.5
      %v4432 = vmul.f32 %v4273, 0.5
      %v4433 = vmul.f32 %v4084, 0.5
      %v4434 = vmul.f32 %v4086, 0.5
      %v4435 = vmul.f32 %v4277, 0.5
      %v4436 = vmul.f32 %v4279, 0.5
      %v4437 = vmul.f32 %v4088, 0.5
      %v4438 = vmul.f32 %v4090, 0.5
      %v4439 = vmul.f32 %v4281, 0.5
      %v4440 = vmul.f32 %v4283, 0.5
      %v4441 = vmul.f32 %v4094, 0.5
      %v4442 = vmul.f32 %v4096, 0.5
      %v4443 = vmul.f32 %v4287, 0.5
      %v4444 = vmul.f32 %v4289, 0.5
      %v4445 = vmul.f32 %v4098, 0.5
      %v4446 = vmul.f32 %v4100, 0.5
      %v4447 = vmul.f32 %v4291, 0.5
      %v4448 = vmul.f32 %v4293, 0.5
      %v4449 = vmul.f32 %v4104, 0.5
      %v4450 = vmul.f32 %v4106, 0.5
      %v4451 = vmul.f32 %v4297, 0.5
      %v4452 = vmul.f32 %v4299, 0.5
      %v4453 = vmul.f32 %v4108, 0.5
      %v4454 = vmul.f32 %v4110, 0.5
      %v4455 = vmul.f32 %v4301, 0.5
      %v4456 = vmul.f32 %v4303, 0.5
      %v4457 = vmul.f32 %v4114, 0.5
      %v4458 = vmul.f32 %v4116, 0.5
      %v4459 = vmul.f32 %v4307, 0.5
      %v4460 = vmul.f32 %v4309, 0.5
      %v4461 = vmul.f32 %v4118, 0.5
      %v4462 = vmul.f32 %v4120, 0.5
      %v4463 = vmul.f32 %v4311, 0.5
      %v4464 = vmul.f32 %v4313, 0.5
      %v4465 = vmul.f32 %v4124, 0.5
      %v4466 = vmul.f32 %v4126, 0.5
      %v4467 = vmul.f32 %v4317, 0.5
      %v4468 = vmul.f32 %v4319, 0.5
      %v4469 = vmul.f32 %v4128, 0.5
      %v4470 = vmul.f32 %v4130, 0.5
      %v4471 = vmul.f32 %v4321, 0.5
      %v4472 = vmul.f32 %v4323, 0.5
      %v4473 = vmul.f32 %v4134, 0.5
      %v4474 = vmul.f32 %v4136, 0.5
      %v4475 = vmul.f32 %v4327, 0.5
      %v4476 = vmul.f32 %v4329, 0.5
      %v4477 = vmul.f32 %v4138, 0.5
      %v4478 = vmul.f32 %v4140, 0.5
      %v4479 = vmul.f32 %v4331, 0.5
      %v4480 = vmul.f32 %v4333, 0.5
      %v4481 = vmul.f32 %v4144, 0.5
      %v4482 = vmul.f32 %v4146, 0.5
      %v4483 = vmul.f32 %v4337, 0.5
      %v4484 = vmul.f32 %v4339, 0.5
      %v4485 = vmul.f32 %v4148, 0.5
      %v4486 = vmul.f32 %v4150, 0.5
      %v4487 = vmul.f32 %v4341, 0.5
      %v4488 = vmul.f32 %v4343, 0.5
      %v4489 = vmul.f32 %v4154, 0.5
      %v4490 = vmul.f32 %v4156, 0.5
      %v4491 = vmul.f32 %v4347, 0.5
      %v4492 = vmul.f32 %v4349, 0.5
      %v4493 = vmul.f32 %v4158, 0.5
      %v4494 = vmul.f32 %v4160, 0.5
      %v4495 = vmul.f32 %v4351, 0.5
      %v4496 = vmul.f32 %v4353, 0.5
      %v4497 = vmul.f32 %v4164, 0.5
      %v4498 = vmul.f32 %v4166, 0.5
      %v4499 = vmul.f32 %v4357, 0.5
      %v4500 = vmul.f32 %v4359, 0.5
      %v4501 = vmul.f32 %v4168, 0.5
      %v4502 = vmul.f32 %v4170, 0.5
      %v4503 = vmul.f32 %v4361, 0.5
      %v4504 = vmul.f32 %v4363, 0.5
      %v4505 = vmul.f32 %v4174, 0.5
      %v4506 = vmul.f32 %v4176, 0.5
      %v4507 = vmul.f32 %v4367, 0.5
      %v4508 = vmul.f32 %v4369, 0.5
      %v4509 = vmul.f32 %v4178, 0.5
      %v4510 = vmul.f32 %v4180, 0.5
      %v4511 = vmul.f32 %v4371, 0.5
      %v4512 = vmul.f32 %v4373, 0.5
      %v4513 = vmul.f32 %v4184, 0.5
      %v4514 = vmul.f32 %v4186, 0.5
      %v4515 = vmul.f32 %v4377, 0.5
      %v4516 = vmul.f32 %v4379, 0.5
      %v4517 = vmul.f32 %v4188, 0.5
      %v4518 = vmul.f32 %v4190, 0.5
      %v4519 = vmul.f32 %v4381, 0.5
      %v4520 = vmul.f32 %v4383, 0.5
      %v4521 = vmul.f32 %v4194, 0.5
      %v4522 = vmul.f32 %v4196, 0.5
      %v4523 = vmul.f32 %v4387, 0.5
      %v4524 = vmul.f32 %v4389, 0.5
      %v4525 = vmul.f32 %v4198, 0.5
      %v4526 = vmul.f32 %v4200, 0.5
      %v4527 = vmul.f32 %v4391, 0.5
      %v4528 = vmul.f32 %v4393, 0.5
      %v4529 = vmul.f32 %v4204, 0.5
      %v4530 = vmul.f32 %v4206, 0.5
      %v4531 = vmul.f32 %v4397, 0.5
      %v4532 = vmul.f32 %v4399, 0.5
      %v4533 = vmul.f32 %v4208, 0.5
      %v4534 = vmul.f32 %v4210, 0.5
      %v4535 = vmul.f32 %v4401, 0.5
      %v4536 = vmul.f32 %v4403, 0.5
      %v4537 = vmul.f32 %v4214, 0.5
      %v4538 = vmul.f32 %v4216, 0.5
      %v4539 = vmul.f32 %v4407, 0.5
      %v4540 = vmul.f32 %v4409, 0.5
      %v4541 = vmul.f32 %v4218, 0.5
      %v4542 = vmul.f32 %v4220, 0.5
      %v4543 = vmul.f32 %v4411, 0.5
      %v4544 = vmul.f32 %v4413, 0.5
      %v4545 = vmul.f32 %v4224, 0.5
      %v4546 = vmul.f32 %v4226, 0.5
      %v4547 = vmul.f32 %v4417, 0.5
      %v4548 = vmul.f32 %v4419, 0.5
      %v4549 = vmul.f32 %v4228, 0.5
      %v4550 = vmul.f32 %v4230, 0.5
      %v4551 = vmul.f32 %v4421, 0.5
      %v4552 = vmul.f32 %v4423, 0.5
      %v4553 = vtanh.pop %v4425
      %v4554 = vtanh.pop %v4426
      %v4555 = vtanh.pop %v4427
      %v4556 = vtanh.pop %v4428
      %v4557 = vtanh.pop %v4429
      %v4558 = vtanh.pop %v4430
      %v4559 = vtanh.pop %v4431
      %v4560 = vtanh.pop %v4432
      %v4561 = vtanh.pop %v4433
      %v4562 = vtanh.pop %v4434
      %v4563 = vtanh.pop %v4435
      %v4564 = vtanh.pop %v4436
      %v4565 = vtanh.pop %v4437
      %v4566 = vtanh.pop %v4438
      %v4567 = vtanh.pop %v4439
      %v4568 = vtanh.pop %v4440
      %v4569 = vtanh.pop %v4441
      %v4570 = vtanh.pop %v4442
      %v4571 = vtanh.pop %v4443
      %v4572 = vtanh.pop %v4444
      %v4573 = vtanh.pop %v4445
      %v4574 = vtanh.pop %v4446
      %v4575 = vtanh.pop %v4447
      %v4576 = vtanh.pop %v4448
      %v4577 = vtanh.pop %v4449
      %v4578 = vtanh.pop %v4450
      %v4579 = vtanh.pop %v4451
      %v4580 = vtanh.pop %v4452
      %v4581 = vtanh.pop %v4453
      %v4582 = vtanh.pop %v4454
      %v4583 = vtanh.pop %v4455
      %v4584 = vtanh.pop %v4456
      %v4585 = vtanh.pop %v4457
      %v4586 = vtanh.pop %v4458
      %v4587 = vtanh.pop %v4459
      %v4588 = vtanh.pop %v4460
      %v4589 = vtanh.pop %v4461
      %v4590 = vtanh.pop %v4462
      %v4591 = vtanh.pop %v4463
      %v4592 = vtanh.pop %v4464
      %v4593 = vtanh.pop %v4465
      %v4594 = vtanh.pop %v4466
      %v4595 = vtanh.pop %v4467
      %v4596 = vtanh.pop %v4468
      %v4597 = vtanh.pop %v4469
      %v4598 = vtanh.pop %v4470
      %v4599 = vtanh.pop %v4471
      %v4600 = vtanh.pop %v4472
      %v4601 = vtanh.pop %v4473
      %v4602 = vtanh.pop %v4474
      %v4603 = vtanh.pop %v4475
      %v4604 = vtanh.pop %v4476
      %v4605 = vtanh.pop %v4477
      %v4606 = vtanh.pop %v4478
      %v4607 = vtanh.pop %v4479
      %v4608 = vtanh.pop %v4480
      %v4609 = vtanh.pop %v4481
      %v4610 = vtanh.pop %v4482
      %v4611 = vtanh.pop %v4483
      %v4612 = vtanh.pop %v4484
      %v4613 = vtanh.pop %v4485
      %v4614 = vtanh.pop %v4486
      %v4615 = vtanh.pop %v4487
      %v4616 = vtanh.pop %v4488
      %v4617 = vtanh.pop %v4489
      %v4618 = vtanh.pop %v4490
      %v4619 = vtanh.pop %v4491
      %v4620 = vtanh.pop %v4492
      %v4621 = vtanh.pop %v4493
      %v4622 = vtanh.pop %v4494
      %v4623 = vtanh.pop %v4495
      %v4624 = vtanh.pop %v4496
      %v4625 = vtanh.pop %v4497
      %v4626 = vtanh.pop %v4498
      %v4627 = vtanh.pop %v4499
      %v4628 = vtanh.pop %v4500
      %v4629 = vtanh.pop %v4501
      %v4630 = vtanh.pop %v4502
      %v4631 = vtanh.pop %v4503
      %v4632 = vtanh.pop %v4504
      %v4633 = vtanh.pop %v4505
      %v4634 = vtanh.pop %v4506
      %v4635 = vtanh.pop %v4507
      %v4636 = vtanh.pop %v4508
      %v4637 = vtanh.pop %v4509
      %v4638 = vtanh.pop %v4510
      %v4639 = vtanh.pop %v4511
      %v4640 = vtanh.pop %v4512
      %v4641 = vtanh.pop %v4513
      %v4642 = vtanh.pop %v4514
      %v4643 = vtanh.pop %v4515
      %v4644 = vtanh.pop %v4516
      %v4645 = vtanh.pop %v4517
      %v4646 = vtanh.pop %v4518
      %v4647 = vtanh.pop %v4519
      %v4648 = vtanh.pop %v4520
      %v4649 = vtanh.pop %v4521
      %v4650 = vtanh.pop %v4522
      %v4651 = vtanh.pop %v4523
      %v4652 = vtanh.pop %v4524
      %v4653 = vtanh.pop %v4525
      %v4654 = vtanh.pop %v4526
      %v4655 = vtanh.pop %v4527
      %v4656 = vtanh.pop %v4528
      %v4657 = vtanh.pop %v4529
      %v4658 = vtanh.pop %v4530
      %v4659 = vtanh.pop %v4531
      %v4660 = vtanh.pop %v4532
      %v4661 = vtanh.pop %v4533
      %v4662 = vtanh.pop %v4534
      %v4663 = vtanh.pop %v4535
      %v4664 = vtanh.pop %v4536
      %v4665 = vtanh.pop %v4537
      %v4666 = vtanh.pop %v4538
      %v4667 = vtanh.pop %v4539
      %v4668 = vtanh.pop %v4540
      %v4669 = vtanh.pop %v4541
      %v4670 = vtanh.pop %v4542
      %v4671 = vtanh.pop %v4543
      %v4672 = vtanh.pop %v4544
      %v4673 = vtanh.pop %v4545
      %v4674 = vtanh.pop %v4546
      %v4675 = vtanh.pop %v4547
      %v4676 = vtanh.pop %v4548
      %v4677 = vtanh.pop %v4549
      %v4678 = vtanh.pop %v4550
      %v4679 = vtanh.pop %v4551
      %v4680 = vtanh.pop %v4552
      %v4681 = vmul.f32 %v4553, 0.5
      %v4682 = vmul.f32 %v4554, 0.5
      %v4683 = vmul.f32 %v4555, 0.5
      %v4684 = vmul.f32 %v4556, 0.5
      %v4685 = vmul.f32 %v4557, 0.5
      %v4686 = vmul.f32 %v4558, 0.5
      %v4687 = vmul.f32 %v4559, 0.5
      %v4688 = vmul.f32 %v4560, 0.5
      %v4689 = vmul.f32 %v4561, 0.5
      %v4690 = vmul.f32 %v4562, 0.5
      %v4691 = vmul.f32 %v4563, 0.5
      %v4692 = vmul.f32 %v4564, 0.5
      %v4693 = vmul.f32 %v4565, 0.5
      %v4694 = vmul.f32 %v4566, 0.5
      %v4695 = vmul.f32 %v4567, 0.5
      %v4696 = vmul.f32 %v4568, 0.5
      %v4697 = vmul.f32 %v4569, 0.5
      %v4698 = vmul.f32 %v4570, 0.5
      %v4699 = vmul.f32 %v4571, 0.5
      %v4700 = vmul.f32 %v4572, 0.5
      %v4701 = vmul.f32 %v4573, 0.5
      %v4702 = vmul.f32 %v4574, 0.5
      %v4703 = vmul.f32 %v4575, 0.5
      %v4704 = vmul.f32 %v4576, 0.5
      %v4705 = vmul.f32 %v4577, 0.5
      %v4706 = vmul.f32 %v4578, 0.5
      %v4707 = vmul.f32 %v4579, 0.5
      %v4708 = vmul.f32 %v4580, 0.5
      %v4709 = vmul.f32 %v4581, 0.5
      %v4710 = vmul.f32 %v4582, 0.5
      %v4711 = vmul.f32 %v4583, 0.5
      %v4712 = vmul.f32 %v4584, 0.5
      %v4713 = vmul.f32 %v4585, 0.5
      %v4714 = vmul.f32 %v4586, 0.5
      %v4715 = vmul.f32 %v4587, 0.5
      %v4716 = vmul.f32 %v4588, 0.5
      %v4717 = vmul.f32 %v4589, 0.5
      %v4718 = vmul.f32 %v4590, 0.5
      %v4719 = vmul.f32 %v4591, 0.5
      %v4720 = vmul.f32 %v4592, 0.5
      %v4721 = vmul.f32 %v4593, 0.5
      %v4722 = vmul.f32 %v4594, 0.5
      %v4723 = vmul.f32 %v4595, 0.5
      %v4724 = vmul.f32 %v4596, 0.5
      %v4725 = vmul.f32 %v4597, 0.5
      %v4726 = vmul.f32 %v4598, 0.5
      %v4727 = vmul.f32 %v4599, 0.5
      %v4728 = vmul.f32 %v4600, 0.5
      %v4729 = vmul.f32 %v4601, 0.5
      %v4730 = vmul.f32 %v4602, 0.5
      %v4731 = vmul.f32 %v4603, 0.5
      %v4732 = vmul.f32 %v4604, 0.5
      %v4733 = vmul.f32 %v4605, 0.5
      %v4734 = vmul.f32 %v4606, 0.5
      %v4735 = vmul.f32 %v4607, 0.5
      %v4736 = vmul.f32 %v4608, 0.5
      %v4737 = vmul.f32 %v4609, 0.5
      %v4738 = vmul.f32 %v4610, 0.5
      %v4739 = vmul.f32 %v4611, 0.5
      %v4740 = vmul.f32 %v4612, 0.5
      %v4741 = vmul.f32 %v4613, 0.5
      %v4742 = vmul.f32 %v4614, 0.5
      %v4743 = vmul.f32 %v4615, 0.5
      %v4744 = vmul.f32 %v4616, 0.5
      %v4745 = vmul.f32 %v4617, 0.5
      %v4746 = vmul.f32 %v4618, 0.5
      %v4747 = vmul.f32 %v4619, 0.5
      %v4748 = vmul.f32 %v4620, 0.5
      %v4749 = vmul.f32 %v4621, 0.5
      %v4750 = vmul.f32 %v4622, 0.5
      %v4751 = vmul.f32 %v4623, 0.5
      %v4752 = vmul.f32 %v4624, 0.5
      %v4753 = vmul.f32 %v4625, 0.5
      %v4754 = vmul.f32 %v4626, 0.5
      %v4755 = vmul.f32 %v4627, 0.5
      %v4756 = vmul.f32 %v4628, 0.5
      %v4757 = vmul.f32 %v4629, 0.5
      %v4758 = vmul.f32 %v4630, 0.5
      %v4759 = vmul.f32 %v4631, 0.5
      %v4760 = vmul.f32 %v4632, 0.5
      %v4761 = vmul.f32 %v4633, 0.5
      %v4762 = vmul.f32 %v4634, 0.5
      %v4763 = vmul.f32 %v4635, 0.5
      %v4764 = vmul.f32 %v4636, 0.5
      %v4765 = vmul.f32 %v4637, 0.5
      %v4766 = vmul.f32 %v4638, 0.5
      %v4767 = vmul.f32 %v4639, 0.5
      %v4768 = vmul.f32 %v4640, 0.5
      %v4769 = vmul.f32 %v4641, 0.5
      %v4770 = vmul.f32 %v4642, 0.5
      %v4771 = vmul.f32 %v4643, 0.5
      %v4772 = vmul.f32 %v4644, 0.5
      %v4773 = vmul.f32 %v4645, 0.5
      %v4774 = vmul.f32 %v4646, 0.5
      %v4775 = vmul.f32 %v4647, 0.5
      %v4776 = vmul.f32 %v4648, 0.5
      %v4777 = vmul.f32 %v4649, 0.5
      %v4778 = vmul.f32 %v4650, 0.5
      %v4779 = vmul.f32 %v4651, 0.5
      %v4780 = vmul.f32 %v4652, 0.5
      %v4781 = vmul.f32 %v4653, 0.5
      %v4782 = vmul.f32 %v4654, 0.5
      %v4783 = vmul.f32 %v4655, 0.5
      %v4784 = vmul.f32 %v4656, 0.5
      %v4785 = vmul.f32 %v4657, 0.5
      %v4786 = vmul.f32 %v4658, 0.5
      %v4787 = vmul.f32 %v4659, 0.5
      %v4788 = vmul.f32 %v4660, 0.5
      %v4789 = vmul.f32 %v4661, 0.5
      %v4790 = vmul.f32 %v4662, 0.5
      %v4791 = vmul.f32 %v4663, 0.5
      %v4792 = vmul.f32 %v4664, 0.5
      %v4793 = vmul.f32 %v4665, 0.5
      %v4794 = vmul.f32 %v4666, 0.5
      %v4795 = vmul.f32 %v4667, 0.5
      %v4796 = vmul.f32 %v4668, 0.5
      %v4797 = vmul.f32 %v4669, 0.5
      %v4798 = vmul.f32 %v4670, 0.5
      %v4799 = vmul.f32 %v4671, 0.5
      %v4800 = vmul.f32 %v4672, 0.5
      %v4801 = vmul.f32 %v4673, 0.5
      %v4802 = vmul.f32 %v4674, 0.5
      %v4803 = vmul.f32 %v4675, 0.5
      %v4804 = vmul.f32 %v4676, 0.5
      %v4805 = vmul.f32 %v4677, 0.5
      %v4806 = vmul.f32 %v4678, 0.5
      %v4807 = vmul.f32 %v4679, 0.5
      %v4808 = vmul.f32 %v4680, 0.5
      %v4809 = vadd.f32 %v4681, 0.5
      %v4810 = vadd.f32 %v4682, 0.5
      %v4811 = vadd.f32 %v4683, 0.5
      %v4812 = vadd.f32 %v4684, 0.5
      %v4813 = vadd.f32 %v4685, 0.5
      %v4814 = vadd.f32 %v4686, 0.5
      %v4815 = vadd.f32 %v4687, 0.5
      %v4816 = vadd.f32 %v4688, 0.5
      %v4817 = vadd.f32 %v4689, 0.5
      %v4818 = vadd.f32 %v4690, 0.5
      %v4819 = vadd.f32 %v4691, 0.5
      %v4820 = vadd.f32 %v4692, 0.5
      %v4821 = vadd.f32 %v4693, 0.5
      %v4822 = vadd.f32 %v4694, 0.5
      %v4823 = vadd.f32 %v4695, 0.5
      %v4824 = vadd.f32 %v4696, 0.5
      %v4825 = vadd.f32 %v4697, 0.5
      %v4826 = vadd.f32 %v4698, 0.5
      %v4827 = vadd.f32 %v4699, 0.5
      %v4828 = vadd.f32 %v4700, 0.5
      %v4829 = vadd.f32 %v4701, 0.5
      %v4830 = vadd.f32 %v4702, 0.5
      %v4831 = vadd.f32 %v4703, 0.5
      %v4832 = vadd.f32 %v4704, 0.5
      %v4833 = vadd.f32 %v4705, 0.5
      %v4834 = vadd.f32 %v4706, 0.5
      %v4835 = vadd.f32 %v4707, 0.5
      %v4836 = vadd.f32 %v4708, 0.5
      %v4837 = vadd.f32 %v4709, 0.5
      %v4838 = vadd.f32 %v4710, 0.5
      %v4839 = vadd.f32 %v4711, 0.5
      %v4840 = vadd.f32 %v4712, 0.5
      %v4841 = vadd.f32 %v4713, 0.5
      %v4842 = vadd.f32 %v4714, 0.5
      %v4843 = vadd.f32 %v4715, 0.5
      %v4844 = vadd.f32 %v4716, 0.5
      %v4845 = vadd.f32 %v4717, 0.5
      %v4846 = vadd.f32 %v4718, 0.5
      %v4847 = vadd.f32 %v4719, 0.5
      %v4848 = vadd.f32 %v4720, 0.5
      %v4849 = vadd.f32 %v4721, 0.5
      %v4850 = vadd.f32 %v4722, 0.5
      %v4851 = vadd.f32 %v4723, 0.5
      %v4852 = vadd.f32 %v4724, 0.5
      %v4853 = vadd.f32 %v4725, 0.5
      %v4854 = vadd.f32 %v4726, 0.5
      %v4855 = vadd.f32 %v4727, 0.5
      %v4856 = vadd.f32 %v4728, 0.5
      %v4857 = vadd.f32 %v4729, 0.5
      %v4858 = vadd.f32 %v4730, 0.5
      %v4859 = vadd.f32 %v4731, 0.5
      %v4860 = vadd.f32 %v4732, 0.5
      %v4861 = vadd.f32 %v4733, 0.5
      %v4862 = vadd.f32 %v4734, 0.5
      %v4863 = vadd.f32 %v4735, 0.5
      %v4864 = vadd.f32 %v4736, 0.5
      %v4865 = vadd.f32 %v4737, 0.5
      %v4866 = vadd.f32 %v4738, 0.5
      %v4867 = vadd.f32 %v4739, 0.5
      %v4868 = vadd.f32 %v4740, 0.5
      %v4869 = vadd.f32 %v4741, 0.5
      %v4870 = vadd.f32 %v4742, 0.5
      %v4871 = vadd.f32 %v4743, 0.5
      %v4872 = vadd.f32 %v4744, 0.5
      %v4873 = vadd.f32 %v4745, 0.5
      %v4874 = vadd.f32 %v4746, 0.5
      %v4875 = vadd.f32 %v4747, 0.5
      %v4876 = vadd.f32 %v4748, 0.5
      %v4877 = vadd.f32 %v4749, 0.5
      %v4878 = vadd.f32 %v4750, 0.5
      %v4879 = vadd.f32 %v4751, 0.5
      %v4880 = vadd.f32 %v4752, 0.5
      %v4881 = vadd.f32 %v4753, 0.5
      %v4882 = vadd.f32 %v4754, 0.5
      %v4883 = vadd.f32 %v4755, 0.5
      %v4884 = vadd.f32 %v4756, 0.5
      %v4885 = vadd.f32 %v4757, 0.5
      %v4886 = vadd.f32 %v4758, 0.5
      %v4887 = vadd.f32 %v4759, 0.5
      %v4888 = vadd.f32 %v4760, 0.5
      %v4889 = vadd.f32 %v4761, 0.5
      %v4890 = vadd.f32 %v4762, 0.5
      %v4891 = vadd.f32 %v4763, 0.5
      %v4892 = vadd.f32 %v4764, 0.5
      %v4893 = vadd.f32 %v4765, 0.5
      %v4894 = vadd.f32 %v4766, 0.5
      %v4895 = vadd.f32 %v4767, 0.5
      %v4896 = vadd.f32 %v4768, 0.5
      %v4897 = vadd.f32 %v4769, 0.5
      %v4898 = vadd.f32 %v4770, 0.5
      %v4899 = vadd.f32 %v4771, 0.5
      %v4900 = vadd.f32 %v4772, 0.5
      %v4901 = vadd.f32 %v4773, 0.5
      %v4902 = vadd.f32 %v4774, 0.5
      %v4903 = vadd.f32 %v4775, 0.5
      %v4904 = vadd.f32 %v4776, 0.5
      %v4905 = vadd.f32 %v4777, 0.5
      %v4906 = vadd.f32 %v4778, 0.5
      %v4907 = vadd.f32 %v4779, 0.5
      %v4908 = vadd.f32 %v4780, 0.5
      %v4909 = vadd.f32 %v4781, 0.5
      %v4910 = vadd.f32 %v4782, 0.5
      %v4911 = vadd.f32 %v4783, 0.5
      %v4912 = vadd.f32 %v4784, 0.5
      %v4913 = vadd.f32 %v4785, 0.5
      %v4914 = vadd.f32 %v4786, 0.5
      %v4915 = vadd.f32 %v4787, 0.5
      %v4916 = vadd.f32 %v4788, 0.5
      %v4917 = vadd.f32 %v4789, 0.5
      %v4918 = vadd.f32 %v4790, 0.5
      %v4919 = vadd.f32 %v4791, 0.5
      %v4920 = vadd.f32 %v4792, 0.5
      %v4921 = vadd.f32 %v4793, 0.5
      %v4922 = vadd.f32 %v4794, 0.5
      %v4923 = vadd.f32 %v4795, 0.5
      %v4924 = vadd.f32 %v4796, 0.5
      %v4925 = vadd.f32 %v4797, 0.5
      %v4926 = vadd.f32 %v4798, 0.5
      %v4927 = vadd.f32 %v4799, 0.5
      %v4928 = vadd.f32 %v4800, 0.5
      %v4929 = vadd.f32 %v4801, 0.5
      %v4930 = vadd.f32 %v4802, 0.5
      %v4931 = vadd.f32 %v4803, 0.5
      %v4932 = vadd.f32 %v4804, 0.5
      %v4933 = vadd.f32 %v4805, 0.5
      %v4934 = vadd.f32 %v4806, 0.5
      %v4935 = vadd.f32 %v4807, 0.5
      %v4936 = vadd.f32 %v4808, 0.5
      %4937 = vst [vmem:[%s482] sm:$0xff] %v4809
      %4938 = vst [vmem:[%s482 + $0x8] sm:$0xff] %v4810
      %4939 = vst [vmem:[%s482 + $0x10] sm:$0xff] %v4811
      %4940 = vst.msk [vmem:[%s482 + $0x18] sm:$0xff] %vm1073, %v4812
      %4941 = vst [vmem:[%s482 + $0x20] sm:$0xff] %v4813
      %4942 = vst [vmem:[%s482 + $0x28] sm:$0xff] %v4814
      %4943 = vst [vmem:[%s482 + $0x30] sm:$0xff] %v4815
      %4944 = vst.msk [vmem:[%s482 + $0x38] sm:$0xff] %vm1073, %v4816
      %4945 = vst [vmem:[%s482 + $0x40] sm:$0xff] %v4817
      %4946 = vst [vmem:[%s482 + $0x48] sm:$0xff] %v4818
      %4947 = vst [vmem:[%s482 + $0x50] sm:$0xff] %v4819
      %4948 = vst.msk [vmem:[%s482 + $0x58] sm:$0xff] %vm1073, %v4820
      %4949 = vst [vmem:[%s482 + $0x60] sm:$0xff] %v4821
      %4950 = vst [vmem:[%s482 + $0x68] sm:$0xff] %v4822
      %4951 = vst [vmem:[%s482 + $0x70] sm:$0xff] %v4823
      %4952 = vst.msk [vmem:[%s482 + $0x78] sm:$0xff] %vm1073, %v4824
      %4953 = vst [vmem:[%s482 + $0x80] sm:$0xff] %v4825
      %4954 = vst [vmem:[%s482 + $0x88] sm:$0xff] %v4826
      %4955 = vst [vmem:[%s482 + $0x90] sm:$0xff] %v4827
      %4956 = vst.msk [vmem:[%s482 + $0x98] sm:$0xff] %vm1073, %v4828
      %4957 = vst [vmem:[%s482 + $0xa0] sm:$0xff] %v4829
      %4958 = vst [vmem:[%s482 + $0xa8] sm:$0xff] %v4830
      %4959 = vst [vmem:[%s482 + $0xb0] sm:$0xff] %v4831
      %4960 = vst.msk [vmem:[%s482 + $0xb8] sm:$0xff] %vm1073, %v4832
      %4961 = vst [vmem:[%s482 + $0xc0] sm:$0xff] %v4833
      %4962 = vst [vmem:[%s482 + $0xc8] sm:$0xff] %v4834
      %4963 = vst [vmem:[%s482 + $0xd0] sm:$0xff] %v4835
      %4964 = vst.msk [vmem:[%s482 + $0xd8] sm:$0xff] %vm1073, %v4836
      %4965 = vst [vmem:[%s482 + $0xe0] sm:$0xff] %v4837
      %4966 = vst [vmem:[%s482 + $0xe8] sm:$0xff] %v4838
      %4967 = vst [vmem:[%s482 + $0xf0] sm:$0xff] %v4839
      %4968 = vst.msk [vmem:[%s482 + $0xf8] sm:$0xff] %vm1073, %v4840
      %4969 = vst [vmem:[%s482 + $0x100] sm:$0xff] %v4841
      %4970 = vst [vmem:[%s482 + $0x108] sm:$0xff] %v4842
      %4971 = vst [vmem:[%s482 + $0x110] sm:$0xff] %v4843
      %4972 = vst.msk [vmem:[%s482 + $0x118] sm:$0xff] %vm1073, %v4844
      %4973 = vst [vmem:[%s482 + $0x120] sm:$0xff] %v4845
      %4974 = vst [vmem:[%s482 + $0x128] sm:$0xff] %v4846
      %4975 = vst [vmem:[%s482 + $0x130] sm:$0xff] %v4847
      %4976 = vst.msk [vmem:[%s482 + $0x138] sm:$0xff] %vm1073, %v4848
      %4977 = vst [vmem:[%s482 + $0x140] sm:$0xff] %v4849
      %4978 = vst [vmem:[%s482 + $0x148] sm:$0xff] %v4850
      %4979 = vst [vmem:[%s482 + $0x150] sm:$0xff] %v4851
      %4980 = vst.msk [vmem:[%s482 + $0x158] sm:$0xff] %vm1073, %v4852
      %4981 = vst [vmem:[%s482 + $0x160] sm:$0xff] %v4853
      %4982 = vst [vmem:[%s482 + $0x168] sm:$0xff] %v4854
      %4983 = vst [vmem:[%s482 + $0x170] sm:$0xff] %v4855
      %4984 = vst.msk [vmem:[%s482 + $0x178] sm:$0xff] %vm1073, %v4856
      %4985 = vst [vmem:[%s482 + $0x180] sm:$0xff] %v4857
      %4986 = vst [vmem:[%s482 + $0x188] sm:$0xff] %v4858
      %4987 = vst [vmem:[%s482 + $0x190] sm:$0xff] %v4859
      %4988 = vst.msk [vmem:[%s482 + $0x198] sm:$0xff] %vm1073, %v4860
      %4989 = vst [vmem:[%s482 + $0x1a0] sm:$0xff] %v4861
      %4990 = vst [vmem:[%s482 + $0x1a8] sm:$0xff] %v4862
      %4991 = vst [vmem:[%s482 + $0x1b0] sm:$0xff] %v4863
      %4992 = vst.msk [vmem:[%s482 + $0x1b8] sm:$0xff] %vm1073, %v4864
      %4993 = vst [vmem:[%s482 + $0x1c0] sm:$0xff] %v4865
      %4994 = vst [vmem:[%s482 + $0x1c8] sm:$0xff] %v4866
      %4995 = vst [vmem:[%s482 + $0x1d0] sm:$0xff] %v4867
      %4996 = vst.msk [vmem:[%s482 + $0x1d8] sm:$0xff] %vm1073, %v4868
      %4997 = vst [vmem:[%s482 + $0x1e0] sm:$0xff] %v4869
      %4998 = vst [vmem:[%s482 + $0x1e8] sm:$0xff] %v4870
      %4999 = vst [vmem:[%s482 + $0x1f0] sm:$0xff] %v4871
      %5000 = vst.msk [vmem:[%s482 + $0x1f8] sm:$0xff] %vm1073, %v4872
      %5001 = vst [vmem:[%s482 + $0x200] sm:$0xff] %v4873
      %5002 = vst [vmem:[%s482 + $0x208] sm:$0xff] %v4874
      %5003 = vst [vmem:[%s482 + $0x210] sm:$0xff] %v4875
      %5004 = vst.msk [vmem:[%s482 + $0x218] sm:$0xff] %vm1073, %v4876
      %5005 = vst [vmem:[%s482 + $0x220] sm:$0xff] %v4877
      %5006 = vst [vmem:[%s482 + $0x228] sm:$0xff] %v4878
      %5007 = vst [vmem:[%s482 + $0x230] sm:$0xff] %v4879
      %5008 = vst.msk [vmem:[%s482 + $0x238] sm:$0xff] %vm1073, %v4880
      %5009 = vst [vmem:[%s482 + $0x240] sm:$0xff] %v4881
      %5010 = vst [vmem:[%s482 + $0x248] sm:$0xff] %v4882
      %5011 = vst [vmem:[%s482 + $0x250] sm:$0xff] %v4883
      %5012 = vst.msk [vmem:[%s482 + $0x258] sm:$0xff] %vm1073, %v4884
      %5013 = vst [vmem:[%s482 + $0x260] sm:$0xff] %v4885
      %5014 = vst [vmem:[%s482 + $0x268] sm:$0xff] %v4886
      %5015 = vst [vmem:[%s482 + $0x270] sm:$0xff] %v4887
      %5016 = vst.msk [vmem:[%s482 + $0x278] sm:$0xff] %vm1073, %v4888
      %5017 = vst [vmem:[%s482 + $0x280] sm:$0xff] %v4889
      %5018 = vst [vmem:[%s482 + $0x288] sm:$0xff] %v4890
      %5019 = vst [vmem:[%s482 + $0x290] sm:$0xff] %v4891
      %5020 = vst.msk [vmem:[%s482 + $0x298] sm:$0xff] %vm1073, %v4892
      %5021 = vst [vmem:[%s482 + $0x2a0] sm:$0xff] %v4893
      %5022 = vst [vmem:[%s482 + $0x2a8] sm:$0xff] %v4894
      %5023 = vst [vmem:[%s482 + $0x2b0] sm:$0xff] %v4895
      %5024 = vst.msk [vmem:[%s482 + $0x2b8] sm:$0xff] %vm1073, %v4896
      %5025 = vst [vmem:[%s482 + $0x2c0] sm:$0xff] %v4897
      %5026 = vst [vmem:[%s482 + $0x2c8] sm:$0xff] %v4898
      %5027 = vst [vmem:[%s482 + $0x2d0] sm:$0xff] %v4899
      %5028 = vst.msk [vmem:[%s482 + $0x2d8] sm:$0xff] %vm1073, %v4900
      %5029 = vst [vmem:[%s482 + $0x2e0] sm:$0xff] %v4901
      %5030 = vst [vmem:[%s482 + $0x2e8] sm:$0xff] %v4902
      %5031 = vst [vmem:[%s482 + $0x2f0] sm:$0xff] %v4903
      %5032 = vst.msk [vmem:[%s482 + $0x2f8] sm:$0xff] %vm1073, %v4904
      %5033 = vst [vmem:[%s482 + $0x300] sm:$0xff] %v4905
      %5034 = vst [vmem:[%s482 + $0x308] sm:$0xff] %v4906
      %5035 = vst [vmem:[%s482 + $0x310] sm:$0xff] %v4907
      %5036 = vst.msk [vmem:[%s482 + $0x318] sm:$0xff] %vm1073, %v4908
      %5037 = vst [vmem:[%s482 + $0x320] sm:$0xff] %v4909
      %5038 = vst [vmem:[%s482 + $0x328] sm:$0xff] %v4910
      %5039 = vst [vmem:[%s482 + $0x330] sm:$0xff] %v4911
      %5040 = vst.msk [vmem:[%s482 + $0x338] sm:$0xff] %vm1073, %v4912
      %5041 = vst [vmem:[%s482 + $0x340] sm:$0xff] %v4913
      %5042 = vst [vmem:[%s482 + $0x348] sm:$0xff] %v4914
      %5043 = vst [vmem:[%s482 + $0x350] sm:$0xff] %v4915
      %5044 = vst.msk [vmem:[%s482 + $0x358] sm:$0xff] %vm1073, %v4916
      %5045 = vst [vmem:[%s482 + $0x360] sm:$0xff] %v4917
      %5046 = vst [vmem:[%s482 + $0x368] sm:$0xff] %v4918
      %5047 = vst [vmem:[%s482 + $0x370] sm:$0xff] %v4919
      %5048 = vst.msk [vmem:[%s482 + $0x378] sm:$0xff] %vm1073, %v4920
      %5049 = vst [vmem:[%s482 + $0x380] sm:$0xff] %v4921
      %5050 = vst [vmem:[%s482 + $0x388] sm:$0xff] %v4922
      %5051 = vst [vmem:[%s482 + $0x390] sm:$0xff] %v4923
      %5052 = vst.msk [vmem:[%s482 + $0x398] sm:$0xff] %vm1073, %v4924
      %5053 = vst [vmem:[%s482 + $0x3a0] sm:$0xff] %v4925
      %5054 = vst [vmem:[%s482 + $0x3a8] sm:$0xff] %v4926
      %5055 = vst [vmem:[%s482 + $0x3b0] sm:$0xff] %v4927
      %5056 = vst.msk [vmem:[%s482 + $0x3b8] sm:$0xff] %vm1073, %v4928
      %5057 = vst [vmem:[%s482 + $0x3c0] sm:$0xff] %v4929
      %5058 = vst [vmem:[%s482 + $0x3c8] sm:$0xff] %v4930
      %5059 = vst [vmem:[%s482 + $0x3d0] sm:$0xff] %v4931
      %5060 = vst.msk [vmem:[%s482 + $0x3d8] sm:$0xff] %vm1073, %v4932
      %5061 = vst [vmem:[%s482 + $0x3e0] sm:$0xff] %v4933
      %5062 = vst [vmem:[%s482 + $0x3e8] sm:$0xff] %v4934
      %5063 = vst [vmem:[%s482 + $0x3f0] sm:$0xff] %v4935
      %5064 = vst.msk [vmem:[%s482 + $0x3f8] sm:$0xff] %vm1073, %v4936
      %s5065 = smul.u32 32, %s26
      %p5066 = scmp.lt.s32.totalorder %s5065, 63
      %s5067 = scalar_select %p5066, %s5065, 63
      %s5068 = smul.addr %s5067, 4
      %s5069 = smul.addr %s5068, 8
      %s5070 = scalar_lea.vmem %s13, %s5069
      %s5071 = smul.u32 32, %s26
      %p5072 = scmp.lt.s32.totalorder %s5071, 63
      %s5073 = scalar_select %p5072, %s5071, 63
      %s5074 = smul.addr %s5073, 8
      %s5075 = scalar_lea.vmem %s14, %s5074
      // Predicated region
      $region73: #{tpu_custom_call.1} parent=71 // pred_check
        %p5076 = pneg %p322
      $region74: #{tpu_custom_call.1} parent=71 // pred_check_branch
        %5078 = sbr.rel (%p5076) target = $region76
      $region75: #{tpu_custom_call.1} parent=71 // pred_region
        %s5079 = smul.u32 32, %s26
      $region76: #{tpu_custom_call.1} parent=71 // pred_fallthru
        _
      // Predicated region
      $region77: #{tpu_custom_call.1} parent=71 // pred_check
        %p5080 = pneg %p348
      $region78: #{tpu_custom_call.1} parent=71 // pred_check_branch
        %5082 = sbr.rel (%p5080) target = $region80
      $region79: #{tpu_custom_call.1} parent=71 // pred_region
        %s5083 = smul.u32 32, %s26
      $region80: #{tpu_custom_call.1} parent=71 // pred_fallthru
        _
    $region72: #{tpu_custom_call.1} parent=5 // pred_fallthru
      _
    %p5084 = scmp.le.s32.totalorder 2, %s21
    // Predicated region
    $region81: #{tpu_custom_call.1} parent=5 // pred_check
      %p5085 = pneg %p5084
    $region82: #{tpu_custom_call.1} parent=5 // pred_check_branch
      %5087 = sbr.rel (%p5085) target = $region84
    $region83: #{tpu_custom_call.1} parent=5 // pred_region
      %s5088 = ssub.s32 %s21, 2
      // Predicated region
      $region85: #{tpu_custom_call.1} parent=83 // pred_check
        %p5089 = pneg %p328
      $region86: #{tpu_custom_call.1} parent=83 // pred_check_branch
        %5091 = sbr.rel (%p5089) target = $region88
      $region87: #{tpu_custom_call.1} parent=83 // pred_region
        %s5092 = smul.u32 32, %s27
        %p5093 = scmp.lt.s32.totalorder %s5092, 63
        %s5094 = scalar_select %p5093, %s5092, 63
        %s5095 = smul.addr %s5094, 4
        %s5096 = smul.addr %s5095, 8
        %s5097 = scalar_lea.vmem %s13, %s5096
      $region88: #{tpu_custom_call.1} parent=83 // pred_fallthru
        _
      // Predicated region
      $region89: #{tpu_custom_call.1} parent=83 // pred_check
        %p5098 = pneg %p354
      $region90: #{tpu_custom_call.1} parent=83 // pred_check_branch
        %5100 = sbr.rel (%p5098) target = $region92
      $region91: #{tpu_custom_call.1} parent=83 // pred_region
        %s5101 = smul.u32 32, %s27
        %p5102 = scmp.lt.s32.totalorder %s5101, 63
        %s5103 = scalar_select %p5102, %s5101, 63
        %s5104 = smul.addr %s5103, 8
        %s5105 = scalar_lea.vmem %s14, %s5104
      $region92: #{tpu_custom_call.1} parent=83 // pred_fallthru
        _
    $region84: #{tpu_custom_call.1} parent=5 // pred_fallthru
      _
  $region6: #{tpu_custom_call.1} parent=0 // loop_footer
    %s25 = sadd.s32 1, %s21
  $region7: #{tpu_custom_call.1} parent=0 // loop_footer_branch
    %20 = sbr.rel target = $region3
  $region8: #{tpu_custom_call.1} parent=0 // loop_exit
    _

</llo_original>
